<compile_context>
chip_gen: v6e
topology: v6e:2x2x1
jax: 0.10.0
libtpu: 0.0.40
codegen_flags: <defaults>
</compile_context>

<pallas_src>
import math

import jax
import jax.numpy as jnp
from jax.experimental import pallas as pl
from jax.experimental.pallas import tpu as pltpu

BN_EPS = 1e-5
LANES = 128
NUM_BLOCKS = 5
BLOCK_DIMS = [(30, 50, 70), (70, 70, 70), (70, 70, 70), (70, 50, 30), (30, 30, 30)]
NUM_WEIGHTS = 2 + 4 * NUM_BLOCKS      # 22 weight bands
NUM_VECTORS = 2 + 7 * NUM_BLOCKS      # 37 vector rows (no pre-BN biases)


# ---------------------------------------------------------------------------
# Pallas kernel: entire forward pass fused, VMEM-resident, 3 inputs.
# ---------------------------------------------------------------------------
def _rnn_kernel(x_ref, w_ref, v_ref, out_ref):
    batch = x_ref.shape[0]
    inv_b = 1.0 / batch

    def mm(h, band, nbands=1):
        # f32 operands, f32 accumulation (multi-pass MXU); static lane bands.
        w = w_ref[:, band * LANES:(band + nbands) * LANES]
        return jnp.dot(h, w, preferred_element_type=jnp.float32)

    def vec(row):
        return v_ref[row:row + 1, :]                          # (1, 128)

    def batchnorm(h, g_row, b_row):
        # Training-mode BN: fused single-pass stats, applied as scale/shift.
        s1 = jnp.sum(h, axis=0, keepdims=True)
        s2 = jnp.sum(h * h, axis=0, keepdims=True)
        mean = s1 * inv_b
        var = jnp.maximum(s2 * inv_b - mean * mean, 0.0)
        scale = vec(g_row) * jax.lax.rsqrt(var + BN_EPS)       # (1,128)
        shift = vec(b_row) - mean * scale                      # (1,128)
        return h * scale + shift

    x = x_ref[...]                                            # (B, 128) f32
    # block1: Linear(inn, 30) + ReLU
    h = jnp.maximum(mm(x, 0) + vec(0), 0.0)
    # block2: 5 residual blocks
    for i in range(NUM_BLOCKS):
        wb = 1 + 4 * i
        vr = 1 + 7 * i
        # fused (B,128)@(128,256): cols [0:128] = residual, [128:256] = stack1
        fused = mm(h, wb, 2)
        res = fused[:, :LANES] + vec(vr)
        t = jnp.maximum(batchnorm(fused[:, LANES:], vr + 1, vr + 2), 0.0)
        t = jnp.maximum(batchnorm(mm(t, wb + 2), vr + 3, vr + 4), 0.0)
        t = batchnorm(mm(t, wb + 3), vr + 5, vr + 6)
        h = jnp.maximum(t + res, 0.0)
    # block3: Linear(30, 2*inn-2) + Sigmoid   (lane-dense (B,128) store;
    # wrapper slices to the real output width)
    logits = mm(h, 1 + 4 * NUM_BLOCKS) + vec(1 + 7 * NUM_BLOCKS)
    out_ref[...] = jax.nn.sigmoid(logits)


def rnn_forward(x, wslab, vslab, out_dim):
    batch, inn = x.shape
    # lane-pad the input to the uniform 128-wide activation slab
    x_pad = jnp.zeros((batch, LANES), jnp.float32).at[:, :inn].set(x)
    out = pl.pallas_call(
        _rnn_kernel,
        out_shape=jax.ShapeDtypeStruct((batch, LANES), jnp.float32),
        in_specs=[pl.BlockSpec(memory_space=pltpu.MemorySpace.VMEM)] * 3,
        out_specs=pl.BlockSpec(memory_space=pltpu.MemorySpace.VMEM),
    )(x_pad, wslab, vslab)
    return out[:, :out_dim]


# ---------------------------------------------------------------------------
# deterministic parameter init (PyTorch-style uniform fan-in bounds)
# ---------------------------------------------------------------------------
def _init_linear(key, fan_in, fan_out):
    k_w, k_b = jax.random.split(key)
    bound = 1.0 / math.sqrt(fan_in)
    w = jax.random.uniform(k_w, (fan_in, fan_out), jnp.float32, -bound, bound)
    b = jax.random.uniform(k_b, (fan_out,), jnp.float32, -bound, bound)
    return w, b


def _init_residual_block(key, inn, hidden, out):
    k0, k1, k2, k3 = jax.random.split(key, 4)
    rw, rb = _init_linear(k0, inn, out)
    w1, b1 = _init_linear(k1, inn, hidden)
    w2, b2 = _init_linear(k2, hidden, hidden)
    w3, b3 = _init_linear(k3, hidden, out)
    ones = lambda n: jnp.ones((n,), jnp.float32)
    zeros = lambda n: jnp.zeros((n,), jnp.float32)
    return dict(rw=rw, rb=rb,
                w1=w1, b1=b1, g1=ones(hidden), be1=zeros(hidden),
                w2=w2, b2=b2, g2=ones(hidden), be2=zeros(hidden),
                w3=w3, b3=b3, g3=ones(out), be3=zeros(out))


def init_rnn_params(key, inn):
    keys = jax.random.split(key, 2 + NUM_BLOCKS)
    b1w, b1b = _init_linear(keys[0], inn, 30)
    blocks = [_init_residual_block(k, *d) for k, d in zip(keys[1:-1], BLOCK_DIMS)]
    b3w, b3b = _init_linear(keys[-1], 30, inn * 2 - 2)
    return dict(b1w=b1w, b1b=b1b, blocks=blocks, b3w=b3w, b3b=b3b)


# ---------------------------------------------------------------------------
# parameter packing: 2 slabs (weights f32 (128, 22*128), vectors f32 (40,128))
# Per block the rw / w1 bands are adjacent so the kernel can read them as one
# (128, 256) tile for the fused matmul.
# ---------------------------------------------------------------------------
def pack_params(params):
    weights = [params["b1w"]]
    vectors = [params["b1b"]]
    for p in params["blocks"]:
        weights += [p["rw"], p["w1"], p["w2"], p["w3"]]
        # b1/b2/b3 intentionally omitted: a bias added right before a
        # training-mode BatchNorm is removed again by the batch mean.
        vectors += [p["rb"], p["g1"], p["be1"], p["g2"], p["be2"], p["g3"], p["be3"]]
    weights.append(params["b3w"])
    vectors.append(params["b3b"])
    assert len(weights) == NUM_WEIGHTS and len(vectors) == NUM_VECTORS

    wslab = jnp.zeros((LANES, NUM_WEIGHTS * LANES), jnp.float32)
    for k, w in enumerate(weights):
        wslab = wslab.at[: w.shape[0], k * LANES: k * LANES + w.shape[1]].set(w)

    n_rows = ((NUM_VECTORS + 7) // 8) * 8                     # 40 (sublane pad)
    vslab = jnp.zeros((n_rows, LANES), jnp.float32)
    for k, v in enumerate(vectors):
        vslab = vslab.at[k, : v.shape[0]].set(v)
    return wslab, vslab


# ---------------------------------------------------------------------------
# pure-JAX f32 reference of the exact PyTorch semantics (pre-BN biases kept,
# Precision.HIGHEST dots) used only to sanity-check the kernel.
# ---------------------------------------------------------------------------
def _linear_ref(x, w, b):
    return jnp.dot(x, w, precision=jax.lax.Precision.HIGHEST,
                   preferred_element_type=jnp.float32) + b


def _bn_ref(x, gamma, beta):
    mean = jnp.mean(x, axis=0, keepdims=True)
    var = jnp.mean((x - mean) ** 2, axis=0, keepdims=True)
    return (x - mean) * jax.lax.rsqrt(var + BN_EPS) * gamma + beta


def rnn_reference(x, params):
    h = jnp.maximum(_linear_ref(x, params["b1w"], params["b1b"]), 0.0)
    for p in params["blocks"]:
        res = _linear_ref(h, p["rw"], p["rb"])
        t = jnp.maximum(_bn_ref(_linear_ref(h, p["w1"], p["b1"]), p["g1"], p["be1"]), 0.0)
        t = jnp.maximum(_bn_ref(_linear_ref(t, p["w2"], p["b2"]), p["g2"], p["be2"]), 0.0)
        t = _bn_ref(_linear_ref(t, p["w3"], p["b3"]), p["g3"], p["be3"])
        h = jnp.maximum(t + res, 0.0)
    return jax.nn.sigmoid(_linear_ref(h, params["b3w"], params["b3b"]))


# ---------------------------------------------------------------------------
if __name__ == "__main__":
    INN = 16        # input feature dim -> output dim = 2*16 - 2 = 30
    BATCH = 8       # >1 so batch-statistics BatchNorm is well defined

    root = jax.random.PRNGKey(0)
    k_params, k_x = jax.random.split(root)
    params = init_rnn_params(k_params, INN)
    wslab, vslab = pack_params(params)
    x = jax.random.normal(k_x, (BATCH, INN), jnp.float32)

    out = jax.block_until_ready(rnn_forward(x, wslab, vslab, 2 * INN - 2))

    ref = jax.block_until_ready(rnn_reference(x, params))
    assert out.shape == (BATCH, 2 * INN - 2)
    err = float(jnp.max(jnp.abs(out - ref)))
    assert jnp.allclose(out, ref, atol=1e-2, rtol=1e-2), err

    print("KERNEL_OK")
</pallas_src>

<mosaic_0001>
module attributes {stable_mosaic.version = 11 : i64} {
  func.func @_rnn_kernel(%arg0: memref<8x128xf32, #tpu.memory_space<vmem>>, %arg1: memref<128x2816xf32, #tpu.memory_space<vmem>>, %arg2: memref<40x128xf32, #tpu.memory_space<vmem>>, %arg3: memref<8x128xf32, #tpu.memory_space<vmem>>) attributes {dimension_semantics = [], scalar_prefetch = 0 : i64, scratch_operands = 0 : i64, tpu.core_type = #tpu.core_type<tc>} {
    %c0 = arith.constant 0 : index
    %c0_0 = arith.constant 0 : index
    %0 = vector.load %arg0[%c0, %c0_0] : memref<8x128xf32, #tpu.memory_space<vmem>>, vector<8x128xf32>
    %c0_1 = arith.constant 0 : index
    %c0_2 = arith.constant 0 : index
    %1 = vector.load %arg1[%c0_1, %c0_2] : memref<128x2816xf32, #tpu.memory_space<vmem>>, vector<128x128xf32>
    %cst = arith.constant dense<0.000000e+00> : vector<8x128xf32>
    %2 = tpu.matmul %0, %1, %cst {dimension_numbers = #tpu.dot_dimension_numbers<[1], [0], [0], [1], [0, 0, 1, 1], [], []>} : vector<8x128xf32>, vector<128x128xf32>, vector<8x128xf32> -> vector<8x128xf32>
    %c0_3 = arith.constant 0 : index
    %c0_4 = arith.constant 0 : index
    %3 = vector.load %arg2[%c0_3, %c0_4] : memref<40x128xf32, #tpu.memory_space<vmem>>, vector<1x128xf32>
    %4 = vector.broadcast %3 : vector<1x128xf32> to vector<8x128xf32>
    %5 = arith.addf %2, %4 : vector<8x128xf32>
    %cst_5 = arith.constant 0.000000e+00 : f32
    %6 = vector.broadcast %cst_5 : f32 to vector<8x128xf32>
    %7 = arith.maximumf %5, %6 : vector<8x128xf32>
    %c0_6 = arith.constant 0 : index
    %c128 = arith.constant 128 : index
    %8 = vector.load %arg1[%c0_6, %c128] : memref<128x2816xf32, #tpu.memory_space<vmem>>, vector<128x256xf32>
    %cst_7 = arith.constant dense<0.000000e+00> : vector<8x256xf32>
    %9 = tpu.matmul %7, %8, %cst_7 {dimension_numbers = #tpu.dot_dimension_numbers<[1], [0], [0], [1], [0, 0, 1, 1], [], []>} : vector<8x128xf32>, vector<128x256xf32>, vector<8x256xf32> -> vector<8x256xf32>
    %10 = vector.extract_strided_slice %9 {offsets = [0, 0], sizes = [8, 128], strides = [1, 1]} : vector<8x256xf32> to vector<8x128xf32>
    %c1 = arith.constant 1 : index
    %c0_8 = arith.constant 0 : index
    %11 = vector.load %arg2[%c1, %c0_8] : memref<40x128xf32, #tpu.memory_space<vmem>>, vector<1x128xf32>
    %12 = vector.broadcast %11 : vector<1x128xf32> to vector<8x128xf32>
    %13 = arith.addf %10, %12 : vector<8x128xf32>
    %14 = vector.extract_strided_slice %9 {offsets = [0, 128], sizes = [8, 128], strides = [1, 1]} : vector<8x256xf32> to vector<8x128xf32>
    %cst_9 = arith.constant dense<0.000000e+00> : vector<128xf32>
    %15 = vector.multi_reduction <add>, %14, %cst_9 [0] : vector<8x128xf32> to vector<128xf32>
    %16 = vector.shape_cast %15 : vector<128xf32> to vector<1x128xf32>
    %17 = arith.mulf %14, %14 : vector<8x128xf32>
    %cst_10 = arith.constant dense<0.000000e+00> : vector<128xf32>
    %18 = vector.multi_reduction <add>, %17, %cst_10 [0] : vector<8x128xf32> to vector<128xf32>
    %19 = vector.shape_cast %18 : vector<128xf32> to vector<1x128xf32>
    %cst_11 = arith.constant 1.250000e-01 : f32
    %20 = vector.broadcast %cst_11 : f32 to vector<1x128xf32>
    %21 = arith.mulf %16, %20 : vector<1x128xf32>
    %cst_12 = arith.constant 1.250000e-01 : f32
    %22 = vector.broadcast %cst_12 : f32 to vector<1x128xf32>
    %23 = arith.mulf %19, %22 : vector<1x128xf32>
    %24 = arith.mulf %21, %21 : vector<1x128xf32>
    %25 = arith.subf %23, %24 : vector<1x128xf32>
    %cst_13 = arith.constant 0.000000e+00 : f32
    %26 = vector.broadcast %cst_13 : f32 to vector<1x128xf32>
    %27 = arith.maximumf %25, %26 : vector<1x128xf32>
    %c2 = arith.constant 2 : index
    %c0_14 = arith.constant 0 : index
    %28 = vector.load %arg2[%c2, %c0_14] : memref<40x128xf32, #tpu.memory_space<vmem>>, vector<1x128xf32>
    %cst_15 = arith.constant 9.99999974E-6 : f32
    %29 = vector.broadcast %cst_15 : f32 to vector<1x128xf32>
    %30 = arith.addf %27, %29 : vector<1x128xf32>
    %31 = math.rsqrt %30 : vector<1x128xf32>
    %32 = arith.mulf %28, %31 : vector<1x128xf32>
    %c3 = arith.constant 3 : index
    %c0_16 = arith.constant 0 : index
    %33 = vector.load %arg2[%c3, %c0_16] : memref<40x128xf32, #tpu.memory_space<vmem>>, vector<1x128xf32>
    %34 = arith.mulf %21, %32 : vector<1x128xf32>
    %35 = arith.subf %33, %34 : vector<1x128xf32>
    %36 = vector.broadcast %32 : vector<1x128xf32> to vector<8x128xf32>
    %37 = arith.mulf %14, %36 : vector<8x128xf32>
    %38 = vector.broadcast %35 : vector<1x128xf32> to vector<8x128xf32>
    %39 = arith.addf %37, %38 : vector<8x128xf32>
    %cst_17 = arith.constant 0.000000e+00 : f32
    %40 = vector.broadcast %cst_17 : f32 to vector<8x128xf32>
    %41 = arith.maximumf %39, %40 : vector<8x128xf32>
    %c0_18 = arith.constant 0 : index
    %c384 = arith.constant 384 : index
    %42 = vector.load %arg1[%c0_18, %c384] : memref<128x2816xf32, #tpu.memory_space<vmem>>, vector<128x128xf32>
    %cst_19 = arith.constant dense<0.000000e+00> : vector<8x128xf32>
    %43 = tpu.matmul %41, %42, %cst_19 {dimension_numbers = #tpu.dot_dimension_numbers<[1], [0], [0], [1], [0, 0, 1, 1], [], []>} : vector<8x128xf32>, vector<128x128xf32>, vector<8x128xf32> -> vector<8x128xf32>
    %cst_20 = arith.constant dense<0.000000e+00> : vector<128xf32>
    %44 = vector.multi_reduction <add>, %43, %cst_20 [0] : vector<8x128xf32> to vector<128xf32>
    %45 = vector.shape_cast %44 : vector<128xf32> to vector<1x128xf32>
    %46 = arith.mulf %43, %43 : vector<8x128xf32>
    %cst_21 = arith.constant dense<0.000000e+00> : vector<128xf32>
    %47 = vector.multi_reduction <add>, %46, %cst_21 [0] : vector<8x128xf32> to vector<128xf32>
    %48 = vector.shape_cast %47 : vector<128xf32> to vector<1x128xf32>
    %cst_22 = arith.constant 1.250000e-01 : f32
    %49 = vector.broadcast %cst_22 : f32 to vector<1x128xf32>
    %50 = arith.mulf %45, %49 : vector<1x128xf32>
    %cst_23 = arith.constant 1.250000e-01 : f32
    %51 = vector.broadcast %cst_23 : f32 to vector<1x128xf32>
    %52 = arith.mulf %48, %51 : vector<1x128xf32>
    %53 = arith.mulf %50, %50 : vector<1x128xf32>
    %54 = arith.subf %52, %53 : vector<1x128xf32>
    %cst_24 = arith.constant 0.000000e+00 : f32
    %55 = vector.broadcast %cst_24 : f32 to vector<1x128xf32>
    %56 = arith.maximumf %54, %55 : vector<1x128xf32>
    %c4 = arith.constant 4 : index
    %c0_25 = arith.constant 0 : index
    %57 = vector.load %arg2[%c4, %c0_25] : memref<40x128xf32, #tpu.memory_space<vmem>>, vector<1x128xf32>
    %cst_26 = arith.constant 9.99999974E-6 : f32
    %58 = vector.broadcast %cst_26 : f32 to vector<1x128xf32>
    %59 = arith.addf %56, %58 : vector<1x128xf32>
    %60 = math.rsqrt %59 : vector<1x128xf32>
    %61 = arith.mulf %57, %60 : vector<1x128xf32>
    %c5 = arith.constant 5 : index
    %c0_27 = arith.constant 0 : index
    %62 = vector.load %arg2[%c5, %c0_27] : memref<40x128xf32, #tpu.memory_space<vmem>>, vector<1x128xf32>
    %63 = arith.mulf %50, %61 : vector<1x128xf32>
    %64 = arith.subf %62, %63 : vector<1x128xf32>
    %65 = vector.broadcast %61 : vector<1x128xf32> to vector<8x128xf32>
    %66 = arith.mulf %43, %65 : vector<8x128xf32>
    %67 = vector.broadcast %64 : vector<1x128xf32> to vector<8x128xf32>
    %68 = arith.addf %66, %67 : vector<8x128xf32>
    %cst_28 = arith.constant 0.000000e+00 : f32
    %69 = vector.broadcast %cst_28 : f32 to vector<8x128xf32>
    %70 = arith.maximumf %68, %69 : vector<8x128xf32>
    %c0_29 = arith.constant 0 : index
    %c512 = arith.constant 512 : index
    %71 = vector.load %arg1[%c0_29, %c512] : memref<128x2816xf32, #tpu.memory_space<vmem>>, vector<128x128xf32>
    %cst_30 = arith.constant dense<0.000000e+00> : vector<8x128xf32>
    %72 = tpu.matmul %70, %71, %cst_30 {dimension_numbers = #tpu.dot_dimension_numbers<[1], [0], [0], [1], [0, 0, 1, 1], [], []>} : vector<8x128xf32>, vector<128x128xf32>, vector<8x128xf32> -> vector<8x128xf32>
    %cst_31 = arith.constant dense<0.000000e+00> : vector<128xf32>
    %73 = vector.multi_reduction <add>, %72, %cst_31 [0] : vector<8x128xf32> to vector<128xf32>
    %74 = vector.shape_cast %73 : vector<128xf32> to vector<1x128xf32>
    %75 = arith.mulf %72, %72 : vector<8x128xf32>
    %cst_32 = arith.constant dense<0.000000e+00> : vector<128xf32>
    %76 = vector.multi_reduction <add>, %75, %cst_32 [0] : vector<8x128xf32> to vector<128xf32>
    %77 = vector.shape_cast %76 : vector<128xf32> to vector<1x128xf32>
    %cst_33 = arith.constant 1.250000e-01 : f32
    %78 = vector.broadcast %cst_33 : f32 to vector<1x128xf32>
    %79 = arith.mulf %74, %78 : vector<1x128xf32>
    %cst_34 = arith.constant 1.250000e-01 : f32
    %80 = vector.broadcast %cst_34 : f32 to vector<1x128xf32>
    %81 = arith.mulf %77, %80 : vector<1x128xf32>
    %82 = arith.mulf %79, %79 : vector<1x128xf32>
    %83 = arith.subf %81, %82 : vector<1x128xf32>
    %cst_35 = arith.constant 0.000000e+00 : f32
    %84 = vector.broadcast %cst_35 : f32 to vector<1x128xf32>
    %85 = arith.maximumf %83, %84 : vector<1x128xf32>
    %c6 = arith.constant 6 : index
    %c0_36 = arith.constant 0 : index
    %86 = vector.load %arg2[%c6, %c0_36] : memref<40x128xf32, #tpu.memory_space<vmem>>, vector<1x128xf32>
    %cst_37 = arith.constant 9.99999974E-6 : f32
    %87 = vector.broadcast %cst_37 : f32 to vector<1x128xf32>
    %88 = arith.addf %85, %87 : vector<1x128xf32>
    %89 = math.rsqrt %88 : vector<1x128xf32>
    %90 = arith.mulf %86, %89 : vector<1x128xf32>
    %c7 = arith.constant 7 : index
    %c0_38 = arith.constant 0 : index
    %91 = vector.load %arg2[%c7, %c0_38] : memref<40x128xf32, #tpu.memory_space<vmem>>, vector<1x128xf32>
    %92 = arith.mulf %79, %90 : vector<1x128xf32>
    %93 = arith.subf %91, %92 : vector<1x128xf32>
    %94 = vector.broadcast %90 : vector<1x128xf32> to vector<8x128xf32>
    %95 = arith.mulf %72, %94 : vector<8x128xf32>
    %96 = vector.broadcast %93 : vector<1x128xf32> to vector<8x128xf32>
    %97 = arith.addf %95, %96 : vector<8x128xf32>
    %98 = arith.addf %97, %13 : vector<8x128xf32>
    %cst_39 = arith.constant 0.000000e+00 : f32
    %99 = vector.broadcast %cst_39 : f32 to vector<8x128xf32>
    %100 = arith.maximumf %98, %99 : vector<8x128xf32>
    %c0_40 = arith.constant 0 : index
    %c640 = arith.constant 640 : index
    %101 = vector.load %arg1[%c0_40, %c640] : memref<128x2816xf32, #tpu.memory_space<vmem>>, vector<128x256xf32>
    %cst_41 = arith.constant dense<0.000000e+00> : vector<8x256xf32>
    %102 = tpu.matmul %100, %101, %cst_41 {dimension_numbers = #tpu.dot_dimension_numbers<[1], [0], [0], [1], [0, 0, 1, 1], [], []>} : vector<8x128xf32>, vector<128x256xf32>, vector<8x256xf32> -> vector<8x256xf32>
    %103 = vector.extract_strided_slice %102 {offsets = [0, 0], sizes = [8, 128], strides = [1, 1]} : vector<8x256xf32> to vector<8x128xf32>
    %c8 = arith.constant 8 : index
    %c0_42 = arith.constant 0 : index
    %104 = vector.load %arg2[%c8, %c0_42] : memref<40x128xf32, #tpu.memory_space<vmem>>, vector<1x128xf32>
    %105 = vector.broadcast %104 : vector<1x128xf32> to vector<8x128xf32>
    %106 = arith.addf %103, %105 : vector<8x128xf32>
    %107 = vector.extract_strided_slice %102 {offsets = [0, 128], sizes = [8, 128], strides = [1, 1]} : vector<8x256xf32> to vector<8x128xf32>
    %cst_43 = arith.constant dense<0.000000e+00> : vector<128xf32>
    %108 = vector.multi_reduction <add>, %107, %cst_43 [0] : vector<8x128xf32> to vector<128xf32>
    %109 = vector.shape_cast %108 : vector<128xf32> to vector<1x128xf32>
    %110 = arith.mulf %107, %107 : vector<8x128xf32>
    %cst_44 = arith.constant dense<0.000000e+00> : vector<128xf32>
    %111 = vector.multi_reduction <add>, %110, %cst_44 [0] : vector<8x128xf32> to vector<128xf32>
    %112 = vector.shape_cast %111 : vector<128xf32> to vector<1x128xf32>
    %cst_45 = arith.constant 1.250000e-01 : f32
    %113 = vector.broadcast %cst_45 : f32 to vector<1x128xf32>
    %114 = arith.mulf %109, %113 : vector<1x128xf32>
    %cst_46 = arith.constant 1.250000e-01 : f32
    %115 = vector.broadcast %cst_46 : f32 to vector<1x128xf32>
    %116 = arith.mulf %112, %115 : vector<1x128xf32>
    %117 = arith.mulf %114, %114 : vector<1x128xf32>
    %118 = arith.subf %116, %117 : vector<1x128xf32>
    %cst_47 = arith.constant 0.000000e+00 : f32
    %119 = vector.broadcast %cst_47 : f32 to vector<1x128xf32>
    %120 = arith.maximumf %118, %119 : vector<1x128xf32>
    %c9 = arith.constant 9 : index
    %c0_48 = arith.constant 0 : index
    %121 = vector.load %arg2[%c9, %c0_48] : memref<40x128xf32, #tpu.memory_space<vmem>>, vector<1x128xf32>
    %cst_49 = arith.constant 9.99999974E-6 : f32
    %122 = vector.broadcast %cst_49 : f32 to vector<1x128xf32>
    %123 = arith.addf %120, %122 : vector<1x128xf32>
    %124 = math.rsqrt %123 : vector<1x128xf32>
    %125 = arith.mulf %121, %124 : vector<1x128xf32>
    %c10 = arith.constant 10 : index
    %c0_50 = arith.constant 0 : index
    %126 = vector.load %arg2[%c10, %c0_50] : memref<40x128xf32, #tpu.memory_space<vmem>>, vector<1x128xf32>
    %127 = arith.mulf %114, %125 : vector<1x128xf32>
    %128 = arith.subf %126, %127 : vector<1x128xf32>
    %129 = vector.broadcast %125 : vector<1x128xf32> to vector<8x128xf32>
    %130 = arith.mulf %107, %129 : vector<8x128xf32>
    %131 = vector.broadcast %128 : vector<1x128xf32> to vector<8x128xf32>
    %132 = arith.addf %130, %131 : vector<8x128xf32>
    %cst_51 = arith.constant 0.000000e+00 : f32
    %133 = vector.broadcast %cst_51 : f32 to vector<8x128xf32>
    %134 = arith.maximumf %132, %133 : vector<8x128xf32>
    %c0_52 = arith.constant 0 : index
    %c896 = arith.constant 896 : index
    %135 = vector.load %arg1[%c0_52, %c896] : memref<128x2816xf32, #tpu.memory_space<vmem>>, vector<128x128xf32>
    %cst_53 = arith.constant dense<0.000000e+00> : vector<8x128xf32>
    %136 = tpu.matmul %134, %135, %cst_53 {dimension_numbers = #tpu.dot_dimension_numbers<[1], [0], [0], [1], [0, 0, 1, 1], [], []>} : vector<8x128xf32>, vector<128x128xf32>, vector<8x128xf32> -> vector<8x128xf32>
    %cst_54 = arith.constant dense<0.000000e+00> : vector<128xf32>
    %137 = vector.multi_reduction <add>, %136, %cst_54 [0] : vector<8x128xf32> to vector<128xf32>
    %138 = vector.shape_cast %137 : vector<128xf32> to vector<1x128xf32>
    %139 = arith.mulf %136, %136 : vector<8x128xf32>
    %cst_55 = arith.constant dense<0.000000e+00> : vector<128xf32>
    %140 = vector.multi_reduction <add>, %139, %cst_55 [0] : vector<8x128xf32> to vector<128xf32>
    %141 = vector.shape_cast %140 : vector<128xf32> to vector<1x128xf32>
    %cst_56 = arith.constant 1.250000e-01 : f32
    %142 = vector.broadcast %cst_56 : f32 to vector<1x128xf32>
    %143 = arith.mulf %138, %142 : vector<1x128xf32>
    %cst_57 = arith.constant 1.250000e-01 : f32
    %144 = vector.broadcast %cst_57 : f32 to vector<1x128xf32>
    %145 = arith.mulf %141, %144 : vector<1x128xf32>
    %146 = arith.mulf %143, %143 : vector<1x128xf32>
    %147 = arith.subf %145, %146 : vector<1x128xf32>
    %cst_58 = arith.constant 0.000000e+00 : f32
    %148 = vector.broadcast %cst_58 : f32 to vector<1x128xf32>
    %149 = arith.maximumf %147, %148 : vector<1x128xf32>
    %c11 = arith.constant 11 : index
    %c0_59 = arith.constant 0 : index
    %150 = vector.load %arg2[%c11, %c0_59] : memref<40x128xf32, #tpu.memory_space<vmem>>, vector<1x128xf32>
    %cst_60 = arith.constant 9.99999974E-6 : f32
    %151 = vector.broadcast %cst_60 : f32 to vector<1x128xf32>
    %152 = arith.addf %149, %151 : vector<1x128xf32>
    %153 = math.rsqrt %152 : vector<1x128xf32>
    %154 = arith.mulf %150, %153 : vector<1x128xf32>
    %c12 = arith.constant 12 : index
    %c0_61 = arith.constant 0 : index
    %155 = vector.load %arg2[%c12, %c0_61] : memref<40x128xf32, #tpu.memory_space<vmem>>, vector<1x128xf32>
    %156 = arith.mulf %143, %154 : vector<1x128xf32>
    %157 = arith.subf %155, %156 : vector<1x128xf32>
    %158 = vector.broadcast %154 : vector<1x128xf32> to vector<8x128xf32>
    %159 = arith.mulf %136, %158 : vector<8x128xf32>
    %160 = vector.broadcast %157 : vector<1x128xf32> to vector<8x128xf32>
    %161 = arith.addf %159, %160 : vector<8x128xf32>
    %cst_62 = arith.constant 0.000000e+00 : f32
    %162 = vector.broadcast %cst_62 : f32 to vector<8x128xf32>
    %163 = arith.maximumf %161, %162 : vector<8x128xf32>
    %c0_63 = arith.constant 0 : index
    %c1024 = arith.constant 1024 : index
    %164 = vector.load %arg1[%c0_63, %c1024] : memref<128x2816xf32, #tpu.memory_space<vmem>>, vector<128x128xf32>
    %cst_64 = arith.constant dense<0.000000e+00> : vector<8x128xf32>
    %165 = tpu.matmul %163, %164, %cst_64 {dimension_numbers = #tpu.dot_dimension_numbers<[1], [0], [0], [1], [0, 0, 1, 1], [], []>} : vector<8x128xf32>, vector<128x128xf32>, vector<8x128xf32> -> vector<8x128xf32>
    %cst_65 = arith.constant dense<0.000000e+00> : vector<128xf32>
    %166 = vector.multi_reduction <add>, %165, %cst_65 [0] : vector<8x128xf32> to vector<128xf32>
    %167 = vector.shape_cast %166 : vector<128xf32> to vector<1x128xf32>
    %168 = arith.mulf %165, %165 : vector<8x128xf32>
    %cst_66 = arith.constant dense<0.000000e+00> : vector<128xf32>
    %169 = vector.multi_reduction <add>, %168, %cst_66 [0] : vector<8x128xf32> to vector<128xf32>
    %170 = vector.shape_cast %169 : vector<128xf32> to vector<1x128xf32>
    %cst_67 = arith.constant 1.250000e-01 : f32
    %171 = vector.broadcast %cst_67 : f32 to vector<1x128xf32>
    %172 = arith.mulf %167, %171 : vector<1x128xf32>
    %cst_68 = arith.constant 1.250000e-01 : f32
    %173 = vector.broadcast %cst_68 : f32 to vector<1x128xf32>
    %174 = arith.mulf %170, %173 : vector<1x128xf32>
    %175 = arith.mulf %172, %172 : vector<1x128xf32>
    %176 = arith.subf %174, %175 : vector<1x128xf32>
    %cst_69 = arith.constant 0.000000e+00 : f32
    %177 = vector.broadcast %cst_69 : f32 to vector<1x128xf32>
    %178 = arith.maximumf %176, %177 : vector<1x128xf32>
    %c13 = arith.constant 13 : index
    %c0_70 = arith.constant 0 : index
    %179 = vector.load %arg2[%c13, %c0_70] : memref<40x128xf32, #tpu.memory_space<vmem>>, vector<1x128xf32>
    %cst_71 = arith.constant 9.99999974E-6 : f32
    %180 = vector.broadcast %cst_71 : f32 to vector<1x128xf32>
    %181 = arith.addf %178, %180 : vector<1x128xf32>
    %182 = math.rsqrt %181 : vector<1x128xf32>
    %183 = arith.mulf %179, %182 : vector<1x128xf32>
    %c14 = arith.constant 14 : index
    %c0_72 = arith.constant 0 : index
    %184 = vector.load %arg2[%c14, %c0_72] : memref<40x128xf32, #tpu.memory_space<vmem>>, vector<1x128xf32>
    %185 = arith.mulf %172, %183 : vector<1x128xf32>
    %186 = arith.subf %184, %185 : vector<1x128xf32>
    %187 = vector.broadcast %183 : vector<1x128xf32> to vector<8x128xf32>
    %188 = arith.mulf %165, %187 : vector<8x128xf32>
    %189 = vector.broadcast %186 : vector<1x128xf32> to vector<8x128xf32>
    %190 = arith.addf %188, %189 : vector<8x128xf32>
    %191 = arith.addf %190, %106 : vector<8x128xf32>
    %cst_73 = arith.constant 0.000000e+00 : f32
    %192 = vector.broadcast %cst_73 : f32 to vector<8x128xf32>
    %193 = arith.maximumf %191, %192 : vector<8x128xf32>
    %c0_74 = arith.constant 0 : index
    %c1152 = arith.constant 1152 : index
    %194 = vector.load %arg1[%c0_74, %c1152] : memref<128x2816xf32, #tpu.memory_space<vmem>>, vector<128x256xf32>
    %cst_75 = arith.constant dense<0.000000e+00> : vector<8x256xf32>
    %195 = tpu.matmul %193, %194, %cst_75 {dimension_numbers = #tpu.dot_dimension_numbers<[1], [0], [0], [1], [0, 0, 1, 1], [], []>} : vector<8x128xf32>, vector<128x256xf32>, vector<8x256xf32> -> vector<8x256xf32>
    %196 = vector.extract_strided_slice %195 {offsets = [0, 0], sizes = [8, 128], strides = [1, 1]} : vector<8x256xf32> to vector<8x128xf32>
    %c15 = arith.constant 15 : index
    %c0_76 = arith.constant 0 : index
    %197 = vector.load %arg2[%c15, %c0_76] : memref<40x128xf32, #tpu.memory_space<vmem>>, vector<1x128xf32>
    %198 = vector.broadcast %197 : vector<1x128xf32> to vector<8x128xf32>
    %199 = arith.addf %196, %198 : vector<8x128xf32>
    %200 = vector.extract_strided_slice %195 {offsets = [0, 128], sizes = [8, 128], strides = [1, 1]} : vector<8x256xf32> to vector<8x128xf32>
    %cst_77 = arith.constant dense<0.000000e+00> : vector<128xf32>
    %201 = vector.multi_reduction <add>, %200, %cst_77 [0] : vector<8x128xf32> to vector<128xf32>
    %202 = vector.shape_cast %201 : vector<128xf32> to vector<1x128xf32>
    %203 = arith.mulf %200, %200 : vector<8x128xf32>
    %cst_78 = arith.constant dense<0.000000e+00> : vector<128xf32>
    %204 = vector.multi_reduction <add>, %203, %cst_78 [0] : vector<8x128xf32> to vector<128xf32>
    %205 = vector.shape_cast %204 : vector<128xf32> to vector<1x128xf32>
    %cst_79 = arith.constant 1.250000e-01 : f32
    %206 = vector.broadcast %cst_79 : f32 to vector<1x128xf32>
    %207 = arith.mulf %202, %206 : vector<1x128xf32>
    %cst_80 = arith.constant 1.250000e-01 : f32
    %208 = vector.broadcast %cst_80 : f32 to vector<1x128xf32>
    %209 = arith.mulf %205, %208 : vector<1x128xf32>
    %210 = arith.mulf %207, %207 : vector<1x128xf32>
    %211 = arith.subf %209, %210 : vector<1x128xf32>
    %cst_81 = arith.constant 0.000000e+00 : f32
    %212 = vector.broadcast %cst_81 : f32 to vector<1x128xf32>
    %213 = arith.maximumf %211, %212 : vector<1x128xf32>
    %c16 = arith.constant 16 : index
    %c0_82 = arith.constant 0 : index
    %214 = vector.load %arg2[%c16, %c0_82] : memref<40x128xf32, #tpu.memory_space<vmem>>, vector<1x128xf32>
    %cst_83 = arith.constant 9.99999974E-6 : f32
    %215 = vector.broadcast %cst_83 : f32 to vector<1x128xf32>
    %216 = arith.addf %213, %215 : vector<1x128xf32>
    %217 = math.rsqrt %216 : vector<1x128xf32>
    %218 = arith.mulf %214, %217 : vector<1x128xf32>
    %c17 = arith.constant 17 : index
    %c0_84 = arith.constant 0 : index
    %219 = vector.load %arg2[%c17, %c0_84] : memref<40x128xf32, #tpu.memory_space<vmem>>, vector<1x128xf32>
    %220 = arith.mulf %207, %218 : vector<1x128xf32>
    %221 = arith.subf %219, %220 : vector<1x128xf32>
    %222 = vector.broadcast %218 : vector<1x128xf32> to vector<8x128xf32>
    %223 = arith.mulf %200, %222 : vector<8x128xf32>
    %224 = vector.broadcast %221 : vector<1x128xf32> to vector<8x128xf32>
    %225 = arith.addf %223, %224 : vector<8x128xf32>
    %cst_85 = arith.constant 0.000000e+00 : f32
    %226 = vector.broadcast %cst_85 : f32 to vector<8x128xf32>
    %227 = arith.maximumf %225, %226 : vector<8x128xf32>
    %c0_86 = arith.constant 0 : index
    %c1408 = arith.constant 1408 : index
    %228 = vector.load %arg1[%c0_86, %c1408] : memref<128x2816xf32, #tpu.memory_space<vmem>>, vector<128x128xf32>
    %cst_87 = arith.constant dense<0.000000e+00> : vector<8x128xf32>
    %229 = tpu.matmul %227, %228, %cst_87 {dimension_numbers = #tpu.dot_dimension_numbers<[1], [0], [0], [1], [0, 0, 1, 1], [], []>} : vector<8x128xf32>, vector<128x128xf32>, vector<8x128xf32> -> vector<8x128xf32>
    %cst_88 = arith.constant dense<0.000000e+00> : vector<128xf32>
    %230 = vector.multi_reduction <add>, %229, %cst_88 [0] : vector<8x128xf32> to vector<128xf32>
    %231 = vector.shape_cast %230 : vector<128xf32> to vector<1x128xf32>
    %232 = arith.mulf %229, %229 : vector<8x128xf32>
    %cst_89 = arith.constant dense<0.000000e+00> : vector<128xf32>
    %233 = vector.multi_reduction <add>, %232, %cst_89 [0] : vector<8x128xf32> to vector<128xf32>
    %234 = vector.shape_cast %233 : vector<128xf32> to vector<1x128xf32>
    %cst_90 = arith.constant 1.250000e-01 : f32
    %235 = vector.broadcast %cst_90 : f32 to vector<1x128xf32>
    %236 = arith.mulf %231, %235 : vector<1x128xf32>
    %cst_91 = arith.constant 1.250000e-01 : f32
    %237 = vector.broadcast %cst_91 : f32 to vector<1x128xf32>
    %238 = arith.mulf %234, %237 : vector<1x128xf32>
    %239 = arith.mulf %236, %236 : vector<1x128xf32>
    %240 = arith.subf %238, %239 : vector<1x128xf32>
    %cst_92 = arith.constant 0.000000e+00 : f32
    %241 = vector.broadcast %cst_92 : f32 to vector<1x128xf32>
    %242 = arith.maximumf %240, %241 : vector<1x128xf32>
    %c18 = arith.constant 18 : index
    %c0_93 = arith.constant 0 : index
    %243 = vector.load %arg2[%c18, %c0_93] : memref<40x128xf32, #tpu.memory_space<vmem>>, vector<1x128xf32>
    %cst_94 = arith.constant 9.99999974E-6 : f32
    %244 = vector.broadcast %cst_94 : f32 to vector<1x128xf32>
    %245 = arith.addf %242, %244 : vector<1x128xf32>
    %246 = math.rsqrt %245 : vector<1x128xf32>
    %247 = arith.mulf %243, %246 : vector<1x128xf32>
    %c19 = arith.constant 19 : index
    %c0_95 = arith.constant 0 : index
    %248 = vector.load %arg2[%c19, %c0_95] : memref<40x128xf32, #tpu.memory_space<vmem>>, vector<1x128xf32>
    %249 = arith.mulf %236, %247 : vector<1x128xf32>
    %250 = arith.subf %248, %249 : vector<1x128xf32>
    %251 = vector.broadcast %247 : vector<1x128xf32> to vector<8x128xf32>
    %252 = arith.mulf %229, %251 : vector<8x128xf32>
    %253 = vector.broadcast %250 : vector<1x128xf32> to vector<8x128xf32>
    %254 = arith.addf %252, %253 : vector<8x128xf32>
    %cst_96 = arith.constant 0.000000e+00 : f32
    %255 = vector.broadcast %cst_96 : f32 to vector<8x128xf32>
    %256 = arith.maximumf %254, %255 : vector<8x128xf32>
    %c0_97 = arith.constant 0 : index
    %c1536 = arith.constant 1536 : index
    %257 = vector.load %arg1[%c0_97, %c1536] : memref<128x2816xf32, #tpu.memory_space<vmem>>, vector<128x128xf32>
    %cst_98 = arith.constant dense<0.000000e+00> : vector<8x128xf32>
    %258 = tpu.matmul %256, %257, %cst_98 {dimension_numbers = #tpu.dot_dimension_numbers<[1], [0], [0], [1], [0, 0, 1, 1], [], []>} : vector<8x128xf32>, vector<128x128xf32>, vector<8x128xf32> -> vector<8x128xf32>
    %cst_99 = arith.constant dense<0.000000e+00> : vector<128xf32>
    %259 = vector.multi_reduction <add>, %258, %cst_99 [0] : vector<8x128xf32> to vector<128xf32>
    %260 = vector.shape_cast %259 : vector<128xf32> to vector<1x128xf32>
    %261 = arith.mulf %258, %258 : vector<8x128xf32>
    %cst_100 = arith.constant dense<0.000000e+00> : vector<128xf32>
    %262 = vector.multi_reduction <add>, %261, %cst_100 [0] : vector<8x128xf32> to vector<128xf32>
    %263 = vector.shape_cast %262 : vector<128xf32> to vector<1x128xf32>
    %cst_101 = arith.constant 1.250000e-01 : f32
    %264 = vector.broadcast %cst_101 : f32 to vector<1x128xf32>
    %265 = arith.mulf %260, %264 : vector<1x128xf32>
    %cst_102 = arith.constant 1.250000e-01 : f32
    %266 = vector.broadcast %cst_102 : f32 to vector<1x128xf32>
    %267 = arith.mulf %263, %266 : vector<1x128xf32>
    %268 = arith.mulf %265, %265 : vector<1x128xf32>
    %269 = arith.subf %267, %268 : vector<1x128xf32>
    %cst_103 = arith.constant 0.000000e+00 : f32
    %270 = vector.broadcast %cst_103 : f32 to vector<1x128xf32>
    %271 = arith.maximumf %269, %270 : vector<1x128xf32>
    %c20 = arith.constant 20 : index
    %c0_104 = arith.constant 0 : index
    %272 = vector.load %arg2[%c20, %c0_104] : memref<40x128xf32, #tpu.memory_space<vmem>>, vector<1x128xf32>
    %cst_105 = arith.constant 9.99999974E-6 : f32
    %273 = vector.broadcast %cst_105 : f32 to vector<1x128xf32>
    %274 = arith.addf %271, %273 : vector<1x128xf32>
    %275 = math.rsqrt %274 : vector<1x128xf32>
    %276 = arith.mulf %272, %275 : vector<1x128xf32>
    %c21 = arith.constant 21 : index
    %c0_106 = arith.constant 0 : index
    %277 = vector.load %arg2[%c21, %c0_106] : memref<40x128xf32, #tpu.memory_space<vmem>>, vector<1x128xf32>
    %278 = arith.mulf %265, %276 : vector<1x128xf32>
    %279 = arith.subf %277, %278 : vector<1x128xf32>
    %280 = vector.broadcast %276 : vector<1x128xf32> to vector<8x128xf32>
    %281 = arith.mulf %258, %280 : vector<8x128xf32>
    %282 = vector.broadcast %279 : vector<1x128xf32> to vector<8x128xf32>
    %283 = arith.addf %281, %282 : vector<8x128xf32>
    %284 = arith.addf %283, %199 : vector<8x128xf32>
    %cst_107 = arith.constant 0.000000e+00 : f32
    %285 = vector.broadcast %cst_107 : f32 to vector<8x128xf32>
    %286 = arith.maximumf %284, %285 : vector<8x128xf32>
    %c0_108 = arith.constant 0 : index
    %c1664 = arith.constant 1664 : index
    %287 = vector.load %arg1[%c0_108, %c1664] : memref<128x2816xf32, #tpu.memory_space<vmem>>, vector<128x256xf32>
    %cst_109 = arith.constant dense<0.000000e+00> : vector<8x256xf32>
    %288 = tpu.matmul %286, %287, %cst_109 {dimension_numbers = #tpu.dot_dimension_numbers<[1], [0], [0], [1], [0, 0, 1, 1], [], []>} : vector<8x128xf32>, vector<128x256xf32>, vector<8x256xf32> -> vector<8x256xf32>
    %289 = vector.extract_strided_slice %288 {offsets = [0, 0], sizes = [8, 128], strides = [1, 1]} : vector<8x256xf32> to vector<8x128xf32>
    %c22 = arith.constant 22 : index
    %c0_110 = arith.constant 0 : index
    %290 = vector.load %arg2[%c22, %c0_110] : memref<40x128xf32, #tpu.memory_space<vmem>>, vector<1x128xf32>
    %291 = vector.broadcast %290 : vector<1x128xf32> to vector<8x128xf32>
    %292 = arith.addf %289, %291 : vector<8x128xf32>
    %293 = vector.extract_strided_slice %288 {offsets = [0, 128], sizes = [8, 128], strides = [1, 1]} : vector<8x256xf32> to vector<8x128xf32>
    %cst_111 = arith.constant dense<0.000000e+00> : vector<128xf32>
    %294 = vector.multi_reduction <add>, %293, %cst_111 [0] : vector<8x128xf32> to vector<128xf32>
    %295 = vector.shape_cast %294 : vector<128xf32> to vector<1x128xf32>
    %296 = arith.mulf %293, %293 : vector<8x128xf32>
    %cst_112 = arith.constant dense<0.000000e+00> : vector<128xf32>
    %297 = vector.multi_reduction <add>, %296, %cst_112 [0] : vector<8x128xf32> to vector<128xf32>
    %298 = vector.shape_cast %297 : vector<128xf32> to vector<1x128xf32>
    %cst_113 = arith.constant 1.250000e-01 : f32
    %299 = vector.broadcast %cst_113 : f32 to vector<1x128xf32>
    %300 = arith.mulf %295, %299 : vector<1x128xf32>
    %cst_114 = arith.constant 1.250000e-01 : f32
    %301 = vector.broadcast %cst_114 : f32 to vector<1x128xf32>
    %302 = arith.mulf %298, %301 : vector<1x128xf32>
    %303 = arith.mulf %300, %300 : vector<1x128xf32>
    %304 = arith.subf %302, %303 : vector<1x128xf32>
    %cst_115 = arith.constant 0.000000e+00 : f32
    %305 = vector.broadcast %cst_115 : f32 to vector<1x128xf32>
    %306 = arith.maximumf %304, %305 : vector<1x128xf32>
    %c23 = arith.constant 23 : index
    %c0_116 = arith.constant 0 : index
    %307 = vector.load %arg2[%c23, %c0_116] : memref<40x128xf32, #tpu.memory_space<vmem>>, vector<1x128xf32>
    %cst_117 = arith.constant 9.99999974E-6 : f32
    %308 = vector.broadcast %cst_117 : f32 to vector<1x128xf32>
    %309 = arith.addf %306, %308 : vector<1x128xf32>
    %310 = math.rsqrt %309 : vector<1x128xf32>
    %311 = arith.mulf %307, %310 : vector<1x128xf32>
    %c24 = arith.constant 24 : index
    %c0_118 = arith.constant 0 : index
    %312 = vector.load %arg2[%c24, %c0_118] : memref<40x128xf32, #tpu.memory_space<vmem>>, vector<1x128xf32>
    %313 = arith.mulf %300, %311 : vector<1x128xf32>
    %314 = arith.subf %312, %313 : vector<1x128xf32>
    %315 = vector.broadcast %311 : vector<1x128xf32> to vector<8x128xf32>
    %316 = arith.mulf %293, %315 : vector<8x128xf32>
    %317 = vector.broadcast %314 : vector<1x128xf32> to vector<8x128xf32>
    %318 = arith.addf %316, %317 : vector<8x128xf32>
    %cst_119 = arith.constant 0.000000e+00 : f32
    %319 = vector.broadcast %cst_119 : f32 to vector<8x128xf32>
    %320 = arith.maximumf %318, %319 : vector<8x128xf32>
    %c0_120 = arith.constant 0 : index
    %c1920 = arith.constant 1920 : index
    %321 = vector.load %arg1[%c0_120, %c1920] : memref<128x2816xf32, #tpu.memory_space<vmem>>, vector<128x128xf32>
    %cst_121 = arith.constant dense<0.000000e+00> : vector<8x128xf32>
    %322 = tpu.matmul %320, %321, %cst_121 {dimension_numbers = #tpu.dot_dimension_numbers<[1], [0], [0], [1], [0, 0, 1, 1], [], []>} : vector<8x128xf32>, vector<128x128xf32>, vector<8x128xf32> -> vector<8x128xf32>
    %cst_122 = arith.constant dense<0.000000e+00> : vector<128xf32>
    %323 = vector.multi_reduction <add>, %322, %cst_122 [0] : vector<8x128xf32> to vector<128xf32>
    %324 = vector.shape_cast %323 : vector<128xf32> to vector<1x128xf32>
    %325 = arith.mulf %322, %322 : vector<8x128xf32>
    %cst_123 = arith.constant dense<0.000000e+00> : vector<128xf32>
    %326 = vector.multi_reduction <add>, %325, %cst_123 [0] : vector<8x128xf32> to vector<128xf32>
    %327 = vector.shape_cast %326 : vector<128xf32> to vector<1x128xf32>
    %cst_124 = arith.constant 1.250000e-01 : f32
    %328 = vector.broadcast %cst_124 : f32 to vector<1x128xf32>
    %329 = arith.mulf %324, %328 : vector<1x128xf32>
    %cst_125 = arith.constant 1.250000e-01 : f32
    %330 = vector.broadcast %cst_125 : f32 to vector<1x128xf32>
    %331 = arith.mulf %327, %330 : vector<1x128xf32>
    %332 = arith.mulf %329, %329 : vector<1x128xf32>
    %333 = arith.subf %331, %332 : vector<1x128xf32>
    %cst_126 = arith.constant 0.000000e+00 : f32
    %334 = vector.broadcast %cst_126 : f32 to vector<1x128xf32>
    %335 = arith.maximumf %333, %334 : vector<1x128xf32>
    %c25 = arith.constant 25 : index
    %c0_127 = arith.constant 0 : index
    %336 = vector.load %arg2[%c25, %c0_127] : memref<40x128xf32, #tpu.memory_space<vmem>>, vector<1x128xf32>
    %cst_128 = arith.constant 9.99999974E-6 : f32
    %337 = vector.broadcast %cst_128 : f32 to vector<1x128xf32>
    %338 = arith.addf %335, %337 : vector<1x128xf32>
    %339 = math.rsqrt %338 : vector<1x128xf32>
    %340 = arith.mulf %336, %339 : vector<1x128xf32>
    %c26 = arith.constant 26 : index
    %c0_129 = arith.constant 0 : index
    %341 = vector.load %arg2[%c26, %c0_129] : memref<40x128xf32, #tpu.memory_space<vmem>>, vector<1x128xf32>
    %342 = arith.mulf %329, %340 : vector<1x128xf32>
    %343 = arith.subf %341, %342 : vector<1x128xf32>
    %344 = vector.broadcast %340 : vector<1x128xf32> to vector<8x128xf32>
    %345 = arith.mulf %322, %344 : vector<8x128xf32>
    %346 = vector.broadcast %343 : vector<1x128xf32> to vector<8x128xf32>
    %347 = arith.addf %345, %346 : vector<8x128xf32>
    %cst_130 = arith.constant 0.000000e+00 : f32
    %348 = vector.broadcast %cst_130 : f32 to vector<8x128xf32>
    %349 = arith.maximumf %347, %348 : vector<8x128xf32>
    %c0_131 = arith.constant 0 : index
    %c2048 = arith.constant 2048 : index
    %350 = vector.load %arg1[%c0_131, %c2048] : memref<128x2816xf32, #tpu.memory_space<vmem>>, vector<128x128xf32>
    %cst_132 = arith.constant dense<0.000000e+00> : vector<8x128xf32>
    %351 = tpu.matmul %349, %350, %cst_132 {dimension_numbers = #tpu.dot_dimension_numbers<[1], [0], [0], [1], [0, 0, 1, 1], [], []>} : vector<8x128xf32>, vector<128x128xf32>, vector<8x128xf32> -> vector<8x128xf32>
    %cst_133 = arith.constant dense<0.000000e+00> : vector<128xf32>
    %352 = vector.multi_reduction <add>, %351, %cst_133 [0] : vector<8x128xf32> to vector<128xf32>
    %353 = vector.shape_cast %352 : vector<128xf32> to vector<1x128xf32>
    %354 = arith.mulf %351, %351 : vector<8x128xf32>
    %cst_134 = arith.constant dense<0.000000e+00> : vector<128xf32>
    %355 = vector.multi_reduction <add>, %354, %cst_134 [0] : vector<8x128xf32> to vector<128xf32>
    %356 = vector.shape_cast %355 : vector<128xf32> to vector<1x128xf32>
    %cst_135 = arith.constant 1.250000e-01 : f32
    %357 = vector.broadcast %cst_135 : f32 to vector<1x128xf32>
    %358 = arith.mulf %353, %357 : vector<1x128xf32>
    %cst_136 = arith.constant 1.250000e-01 : f32
    %359 = vector.broadcast %cst_136 : f32 to vector<1x128xf32>
    %360 = arith.mulf %356, %359 : vector<1x128xf32>
    %361 = arith.mulf %358, %358 : vector<1x128xf32>
    %362 = arith.subf %360, %361 : vector<1x128xf32>
    %cst_137 = arith.constant 0.000000e+00 : f32
    %363 = vector.broadcast %cst_137 : f32 to vector<1x128xf32>
    %364 = arith.maximumf %362, %363 : vector<1x128xf32>
    %c27 = arith.constant 27 : index
    %c0_138 = arith.constant 0 : index
    %365 = vector.load %arg2[%c27, %c0_138] : memref<40x128xf32, #tpu.memory_space<vmem>>, vector<1x128xf32>
    %cst_139 = arith.constant 9.99999974E-6 : f32
    %366 = vector.broadcast %cst_139 : f32 to vector<1x128xf32>
    %367 = arith.addf %364, %366 : vector<1x128xf32>
    %368 = math.rsqrt %367 : vector<1x128xf32>
    %369 = arith.mulf %365, %368 : vector<1x128xf32>
    %c28 = arith.constant 28 : index
    %c0_140 = arith.constant 0 : index
    %370 = vector.load %arg2[%c28, %c0_140] : memref<40x128xf32, #tpu.memory_space<vmem>>, vector<1x128xf32>
    %371 = arith.mulf %358, %369 : vector<1x128xf32>
    %372 = arith.subf %370, %371 : vector<1x128xf32>
    %373 = vector.broadcast %369 : vector<1x128xf32> to vector<8x128xf32>
    %374 = arith.mulf %351, %373 : vector<8x128xf32>
    %375 = vector.broadcast %372 : vector<1x128xf32> to vector<8x128xf32>
    %376 = arith.addf %374, %375 : vector<8x128xf32>
    %377 = arith.addf %376, %292 : vector<8x128xf32>
    %cst_141 = arith.constant 0.000000e+00 : f32
    %378 = vector.broadcast %cst_141 : f32 to vector<8x128xf32>
    %379 = arith.maximumf %377, %378 : vector<8x128xf32>
    %c0_142 = arith.constant 0 : index
    %c2176 = arith.constant 2176 : index
    %380 = vector.load %arg1[%c0_142, %c2176] : memref<128x2816xf32, #tpu.memory_space<vmem>>, vector<128x256xf32>
    %cst_143 = arith.constant dense<0.000000e+00> : vector<8x256xf32>
    %381 = tpu.matmul %379, %380, %cst_143 {dimension_numbers = #tpu.dot_dimension_numbers<[1], [0], [0], [1], [0, 0, 1, 1], [], []>} : vector<8x128xf32>, vector<128x256xf32>, vector<8x256xf32> -> vector<8x256xf32>
    %382 = vector.extract_strided_slice %381 {offsets = [0, 0], sizes = [8, 128], strides = [1, 1]} : vector<8x256xf32> to vector<8x128xf32>
    %c29 = arith.constant 29 : index
    %c0_144 = arith.constant 0 : index
    %383 = vector.load %arg2[%c29, %c0_144] : memref<40x128xf32, #tpu.memory_space<vmem>>, vector<1x128xf32>
    %384 = vector.broadcast %383 : vector<1x128xf32> to vector<8x128xf32>
    %385 = arith.addf %382, %384 : vector<8x128xf32>
    %386 = vector.extract_strided_slice %381 {offsets = [0, 128], sizes = [8, 128], strides = [1, 1]} : vector<8x256xf32> to vector<8x128xf32>
    %cst_145 = arith.constant dense<0.000000e+00> : vector<128xf32>
    %387 = vector.multi_reduction <add>, %386, %cst_145 [0] : vector<8x128xf32> to vector<128xf32>
    %388 = vector.shape_cast %387 : vector<128xf32> to vector<1x128xf32>
    %389 = arith.mulf %386, %386 : vector<8x128xf32>
    %cst_146 = arith.constant dense<0.000000e+00> : vector<128xf32>
    %390 = vector.multi_reduction <add>, %389, %cst_146 [0] : vector<8x128xf32> to vector<128xf32>
    %391 = vector.shape_cast %390 : vector<128xf32> to vector<1x128xf32>
    %cst_147 = arith.constant 1.250000e-01 : f32
    %392 = vector.broadcast %cst_147 : f32 to vector<1x128xf32>
    %393 = arith.mulf %388, %392 : vector<1x128xf32>
    %cst_148 = arith.constant 1.250000e-01 : f32
    %394 = vector.broadcast %cst_148 : f32 to vector<1x128xf32>
    %395 = arith.mulf %391, %394 : vector<1x128xf32>
    %396 = arith.mulf %393, %393 : vector<1x128xf32>
    %397 = arith.subf %395, %396 : vector<1x128xf32>
    %cst_149 = arith.constant 0.000000e+00 : f32
    %398 = vector.broadcast %cst_149 : f32 to vector<1x128xf32>
    %399 = arith.maximumf %397, %398 : vector<1x128xf32>
    %c30 = arith.constant 30 : index
    %c0_150 = arith.constant 0 : index
    %400 = vector.load %arg2[%c30, %c0_150] : memref<40x128xf32, #tpu.memory_space<vmem>>, vector<1x128xf32>
    %cst_151 = arith.constant 9.99999974E-6 : f32
    %401 = vector.broadcast %cst_151 : f32 to vector<1x128xf32>
    %402 = arith.addf %399, %401 : vector<1x128xf32>
    %403 = math.rsqrt %402 : vector<1x128xf32>
    %404 = arith.mulf %400, %403 : vector<1x128xf32>
    %c31 = arith.constant 31 : index
    %c0_152 = arith.constant 0 : index
    %405 = vector.load %arg2[%c31, %c0_152] : memref<40x128xf32, #tpu.memory_space<vmem>>, vector<1x128xf32>
    %406 = arith.mulf %393, %404 : vector<1x128xf32>
    %407 = arith.subf %405, %406 : vector<1x128xf32>
    %408 = vector.broadcast %404 : vector<1x128xf32> to vector<8x128xf32>
    %409 = arith.mulf %386, %408 : vector<8x128xf32>
    %410 = vector.broadcast %407 : vector<1x128xf32> to vector<8x128xf32>
    %411 = arith.addf %409, %410 : vector<8x128xf32>
    %cst_153 = arith.constant 0.000000e+00 : f32
    %412 = vector.broadcast %cst_153 : f32 to vector<8x128xf32>
    %413 = arith.maximumf %411, %412 : vector<8x128xf32>
    %c0_154 = arith.constant 0 : index
    %c2432 = arith.constant 2432 : index
    %414 = vector.load %arg1[%c0_154, %c2432] : memref<128x2816xf32, #tpu.memory_space<vmem>>, vector<128x128xf32>
    %cst_155 = arith.constant dense<0.000000e+00> : vector<8x128xf32>
    %415 = tpu.matmul %413, %414, %cst_155 {dimension_numbers = #tpu.dot_dimension_numbers<[1], [0], [0], [1], [0, 0, 1, 1], [], []>} : vector<8x128xf32>, vector<128x128xf32>, vector<8x128xf32> -> vector<8x128xf32>
    %cst_156 = arith.constant dense<0.000000e+00> : vector<128xf32>
    %416 = vector.multi_reduction <add>, %415, %cst_156 [0] : vector<8x128xf32> to vector<128xf32>
    %417 = vector.shape_cast %416 : vector<128xf32> to vector<1x128xf32>
    %418 = arith.mulf %415, %415 : vector<8x128xf32>
    %cst_157 = arith.constant dense<0.000000e+00> : vector<128xf32>
    %419 = vector.multi_reduction <add>, %418, %cst_157 [0] : vector<8x128xf32> to vector<128xf32>
    %420 = vector.shape_cast %419 : vector<128xf32> to vector<1x128xf32>
    %cst_158 = arith.constant 1.250000e-01 : f32
    %421 = vector.broadcast %cst_158 : f32 to vector<1x128xf32>
    %422 = arith.mulf %417, %421 : vector<1x128xf32>
    %cst_159 = arith.constant 1.250000e-01 : f32
    %423 = vector.broadcast %cst_159 : f32 to vector<1x128xf32>
    %424 = arith.mulf %420, %423 : vector<1x128xf32>
    %425 = arith.mulf %422, %422 : vector<1x128xf32>
    %426 = arith.subf %424, %425 : vector<1x128xf32>
    %cst_160 = arith.constant 0.000000e+00 : f32
    %427 = vector.broadcast %cst_160 : f32 to vector<1x128xf32>
    %428 = arith.maximumf %426, %427 : vector<1x128xf32>
    %c32 = arith.constant 32 : index
    %c0_161 = arith.constant 0 : index
    %429 = vector.load %arg2[%c32, %c0_161] : memref<40x128xf32, #tpu.memory_space<vmem>>, vector<1x128xf32>
    %cst_162 = arith.constant 9.99999974E-6 : f32
    %430 = vector.broadcast %cst_162 : f32 to vector<1x128xf32>
    %431 = arith.addf %428, %430 : vector<1x128xf32>
    %432 = math.rsqrt %431 : vector<1x128xf32>
    %433 = arith.mulf %429, %432 : vector<1x128xf32>
    %c33 = arith.constant 33 : index
    %c0_163 = arith.constant 0 : index
    %434 = vector.load %arg2[%c33, %c0_163] : memref<40x128xf32, #tpu.memory_space<vmem>>, vector<1x128xf32>
    %435 = arith.mulf %422, %433 : vector<1x128xf32>
    %436 = arith.subf %434, %435 : vector<1x128xf32>
    %437 = vector.broadcast %433 : vector<1x128xf32> to vector<8x128xf32>
    %438 = arith.mulf %415, %437 : vector<8x128xf32>
    %439 = vector.broadcast %436 : vector<1x128xf32> to vector<8x128xf32>
    %440 = arith.addf %438, %439 : vector<8x128xf32>
    %cst_164 = arith.constant 0.000000e+00 : f32
    %441 = vector.broadcast %cst_164 : f32 to vector<8x128xf32>
    %442 = arith.maximumf %440, %441 : vector<8x128xf32>
    %c0_165 = arith.constant 0 : index
    %c2560 = arith.constant 2560 : index
    %443 = vector.load %arg1[%c0_165, %c2560] : memref<128x2816xf32, #tpu.memory_space<vmem>>, vector<128x128xf32>
    %cst_166 = arith.constant dense<0.000000e+00> : vector<8x128xf32>
    %444 = tpu.matmul %442, %443, %cst_166 {dimension_numbers = #tpu.dot_dimension_numbers<[1], [0], [0], [1], [0, 0, 1, 1], [], []>} : vector<8x128xf32>, vector<128x128xf32>, vector<8x128xf32> -> vector<8x128xf32>
    %cst_167 = arith.constant dense<0.000000e+00> : vector<128xf32>
    %445 = vector.multi_reduction <add>, %444, %cst_167 [0] : vector<8x128xf32> to vector<128xf32>
    %446 = vector.shape_cast %445 : vector<128xf32> to vector<1x128xf32>
    %447 = arith.mulf %444, %444 : vector<8x128xf32>
    %cst_168 = arith.constant dense<0.000000e+00> : vector<128xf32>
    %448 = vector.multi_reduction <add>, %447, %cst_168 [0] : vector<8x128xf32> to vector<128xf32>
    %449 = vector.shape_cast %448 : vector<128xf32> to vector<1x128xf32>
    %cst_169 = arith.constant 1.250000e-01 : f32
    %450 = vector.broadcast %cst_169 : f32 to vector<1x128xf32>
    %451 = arith.mulf %446, %450 : vector<1x128xf32>
    %cst_170 = arith.constant 1.250000e-01 : f32
    %452 = vector.broadcast %cst_170 : f32 to vector<1x128xf32>
    %453 = arith.mulf %449, %452 : vector<1x128xf32>
    %454 = arith.mulf %451, %451 : vector<1x128xf32>
    %455 = arith.subf %453, %454 : vector<1x128xf32>
    %cst_171 = arith.constant 0.000000e+00 : f32
    %456 = vector.broadcast %cst_171 : f32 to vector<1x128xf32>
    %457 = arith.maximumf %455, %456 : vector<1x128xf32>
    %c34 = arith.constant 34 : index
    %c0_172 = arith.constant 0 : index
    %458 = vector.load %arg2[%c34, %c0_172] : memref<40x128xf32, #tpu.memory_space<vmem>>, vector<1x128xf32>
    %cst_173 = arith.constant 9.99999974E-6 : f32
    %459 = vector.broadcast %cst_173 : f32 to vector<1x128xf32>
    %460 = arith.addf %457, %459 : vector<1x128xf32>
    %461 = math.rsqrt %460 : vector<1x128xf32>
    %462 = arith.mulf %458, %461 : vector<1x128xf32>
    %c35 = arith.constant 35 : index
    %c0_174 = arith.constant 0 : index
    %463 = vector.load %arg2[%c35, %c0_174] : memref<40x128xf32, #tpu.memory_space<vmem>>, vector<1x128xf32>
    %464 = arith.mulf %451, %462 : vector<1x128xf32>
    %465 = arith.subf %463, %464 : vector<1x128xf32>
    %466 = vector.broadcast %462 : vector<1x128xf32> to vector<8x128xf32>
    %467 = arith.mulf %444, %466 : vector<8x128xf32>
    %468 = vector.broadcast %465 : vector<1x128xf32> to vector<8x128xf32>
    %469 = arith.addf %467, %468 : vector<8x128xf32>
    %470 = arith.addf %469, %385 : vector<8x128xf32>
    %cst_175 = arith.constant 0.000000e+00 : f32
    %471 = vector.broadcast %cst_175 : f32 to vector<8x128xf32>
    %472 = arith.maximumf %470, %471 : vector<8x128xf32>
    %c0_176 = arith.constant 0 : index
    %c2688 = arith.constant 2688 : index
    %473 = vector.load %arg1[%c0_176, %c2688] : memref<128x2816xf32, #tpu.memory_space<vmem>>, vector<128x128xf32>
    %cst_177 = arith.constant dense<0.000000e+00> : vector<8x128xf32>
    %474 = tpu.matmul %472, %473, %cst_177 {dimension_numbers = #tpu.dot_dimension_numbers<[1], [0], [0], [1], [0, 0, 1, 1], [], []>} : vector<8x128xf32>, vector<128x128xf32>, vector<8x128xf32> -> vector<8x128xf32>
    %c36 = arith.constant 36 : index
    %c0_178 = arith.constant 0 : index
    %475 = vector.load %arg2[%c36, %c0_178] : memref<40x128xf32, #tpu.memory_space<vmem>>, vector<1x128xf32>
    %476 = vector.broadcast %475 : vector<1x128xf32> to vector<8x128xf32>
    %477 = arith.addf %474, %476 : vector<8x128xf32>
    %478 = arith.negf %477 : vector<8x128xf32>
    %479 = math.exp %478 : vector<8x128xf32>
    %cst_179 = arith.constant 1.000000e+00 : f32
    %480 = vector.broadcast %cst_179 : f32 to vector<8x128xf32>
    %481 = arith.addf %480, %479 : vector<8x128xf32>
    %482 = arith.divf %480, %481 : vector<8x128xf32>
    %c0_180 = arith.constant 0 : index
    %c0_181 = arith.constant 0 : index
    %483 = vector.load %arg3[%c0_180, %c0_181] : memref<8x128xf32, #tpu.memory_space<vmem>>, vector<8x128xf32>
    tpu.vector_store %arg3[%c0_180, %c0_181], %482 {strides = array<i32>} : memref<8x128xf32, #tpu.memory_space<vmem>>, vector<8x128xf32>,
    return
  }
}

</mosaic_0001>

<llo_original>
// kernel: tpu_custom_call.1
$region0: #{tpu_custom_call.1}
  #allocation0 [shape = 'u32[]', space=smem, size = 0x4, offset = 0x4, fixed_abs, tag = 'smem constant byte address 0x4 - core index']
  #allocation1 [shape = 'u32[144,128]{1,0:T(1,128)}', space=vmem, size = 0x12000, scoped, tag = 'internal scratch']
  %s0 = inlined_call_operand.hbm [shape: f32[8,128], index: 0, kind: input, shape index: {}]
  %s1 = inlined_call_operand.hbm [shape: f32[128,2816], index: 1, kind: input, shape index: {}]
  %s2 = inlined_call_operand.hbm [shape: f32[40,128], index: 2, kind: input, shape index: {}]
  %s3 = inlined_call_operand.hbm [shape: f32[8,128], index: 3, kind: output, shape index: {}]
  %s4 = sld [smem:[#allocation0]]
  $region34: #{tpu_custom_call.1} parent=0
    _
  %s6 = ssub.s32 1, %s4
  %s7 = scalar_select 0, %s6, %s4
  $region1: #{tpu_custom_call.1} parent=0
    #allocation2 [shape = 'u8[4096]{0}', space=vmem, size = 0x1000, scoped, tag = 'input window, operand 0, single buffered']
    #allocation3 [shape = 's32[1]{0}', space=sflag, size = 0x4, scoped, tag = 'scoped memory for tpu_custom_call.1']
    #allocation4 [shape = 's32[1]{0}', space=sflag, size = 0x4, scoped, tag = 'scoped memory for tpu_custom_call.1']
    #allocation5 [shape = 'u8[1441792]{0}', space=vmem, size = 0x160000, scoped, tag = 'input window, operand 1, single buffered']
    #allocation6 [shape = 's32[1]{0}', space=sflag, size = 0x4, scoped, tag = 'scoped memory for tpu_custom_call.1']
    #allocation7 [shape = 'u8[20480]{0}', space=vmem, size = 0x5000, scoped, tag = 'input window, operand 2, single buffered']
    #allocation8 [shape = 'u8[4096]{0}', space=vmem, size = 0x1000, scoped, tag = 'output window, operand 0, single buffered']
    %8 = vsyncpa [#allocation3], 0
    %9 = vsyncpa [#allocation6], 0
    %10 = vsyncpa [#allocation4], 0
    // Predicated region
    $region2: #{tpu_custom_call.1} parent=1 // pred_check
      _
    $region3: #{tpu_custom_call.1} parent=1 // pred_check_branch
      %12 = sbr.rel (0) target = $region5
    $region4: #{tpu_custom_call.1} parent=1 // pred_region
      %s14 = ssub.s32 128, 128
      %15 = vsyncadd [#allocation3], %s14
      %s17 = sshll.u32 [#allocation2], 4
      %s18 = int_to_ptr.vmem [resolvable:$true] %s17
      %20 = dma.hbm_to_vmem [thread:$0]  %s0, 128, %s18, [#allocation3]
    $region5: #{tpu_custom_call.1} parent=1 // pred_fallthru
      _
    // Predicated region
    $region6: #{tpu_custom_call.1} parent=1 // pred_check
      _
    $region7: #{tpu_custom_call.1} parent=1 // pred_check_branch
      %22 = sbr.rel (0) target = $region9
    $region8: #{tpu_custom_call.1} parent=1 // pred_region
      %s24 = ssub.s32 45056, 45056
      %25 = vsyncadd [#allocation6], %s24
      %s26 = sshll.u32 [#allocation5], 4
      %s27 = int_to_ptr.vmem [resolvable:$true] %s26
      %32 = dma.hbm_to_vmem [thread:$0]  %s1, 45056, %s27, [#allocation6], 2816, 2816, 176
    $region9: #{tpu_custom_call.1} parent=1 // pred_fallthru
      _
    // Predicated region
    $region10: #{tpu_custom_call.1} parent=1 // pred_check
      _
    $region11: #{tpu_custom_call.1} parent=1 // pred_check_branch
      %34 = sbr.rel (0) target = $region13
    $region12: #{tpu_custom_call.1} parent=1 // pred_region
      %s36 = ssub.s32 640, 640
      %37 = vsyncadd [#allocation6], %s36
      %s38 = sshll.u32 [#allocation7], 4
      %s39 = int_to_ptr.vmem [resolvable:$true] %s38
      %44 = dma.hbm_to_vmem [thread:$0]  %s2, 640, %s39, [#allocation6], 128, 128, 8
    $region13: #{tpu_custom_call.1} parent=1 // pred_fallthru
      _
    // Predicated region
    $region14: #{tpu_custom_call.1} parent=1 // pred_check
      _
    $region15: #{tpu_custom_call.1} parent=1 // pred_check_branch
      %46 = sbr.rel (0) target = $region17
    $region16: #{tpu_custom_call.1} parent=1 // pred_region
      %47 = dma.done [#allocation3], 128
    $region17: #{tpu_custom_call.1} parent=1 // pred_fallthru
      _
    // Predicated region
    $region18: #{tpu_custom_call.1} parent=1 // pred_check
      _
    $region19: #{tpu_custom_call.1} parent=1 // pred_check_branch
      %49 = sbr.rel (0) target = $region21
    $region20: #{tpu_custom_call.1} parent=1 // pred_region
      %50 = dma.done [#allocation6], 45056
    $region21: #{tpu_custom_call.1} parent=1 // pred_fallthru
      _
    // Predicated region
    $region22: #{tpu_custom_call.1} parent=1 // pred_check
      _
    $region23: #{tpu_custom_call.1} parent=1 // pred_check_branch
      %52 = sbr.rel (0) target = $region25
    $region24: #{tpu_custom_call.1} parent=1 // pred_region
      %53 = dma.done [#allocation6], 640
    $region25: #{tpu_custom_call.1} parent=1 // pred_fallthru
      _
    %v54 = vld [vmem:[#allocation2] sm:$0xff]
    %v55 = vld [vmem:[#allocation5] sm:$0xff]
    %v56 = vld [vmem:[#allocation5 + $0xb0] sm:$0xff]
    %v57 = vld [vmem:[#allocation5 + $0x160] sm:$0xff]
    %v58 = vld [vmem:[#allocation5 + $0x210] sm:$0xff]
    %v59 = vld [vmem:[#allocation5 + $0x2c0] sm:$0xff]
    %v60 = vld [vmem:[#allocation5 + $0x370] sm:$0xff]
    %v61 = vld [vmem:[#allocation5 + $0x420] sm:$0xff]
    %v62 = vld [vmem:[#allocation5 + $0x4d0] sm:$0xff]
    %v63 = vld [vmem:[#allocation5 + $0x580] sm:$0xff]
    %v64 = vld [vmem:[#allocation5 + $0x630] sm:$0xff]
    %v65 = vld [vmem:[#allocation5 + $0x6e0] sm:$0xff]
    %v66 = vld [vmem:[#allocation5 + $0x790] sm:$0xff]
    %v67 = vld [vmem:[#allocation5 + $0x840] sm:$0xff]
    %v68 = vld [vmem:[#allocation5 + $0x8f0] sm:$0xff]
    %v69 = vld [vmem:[#allocation5 + $0x9a0] sm:$0xff]
    %v70 = vld [vmem:[#allocation5 + $0xa50] sm:$0xff]
    %v71 = vld [vmem:[#allocation7] sm:$0x1]
    %v72 = vlaneseq
    %v73 = vshrl.u32 %v72, 7
    %v74 = vsub.s32 0, %v73
    %v75 = vrot.slane %v71, %v74
    %76 = vmatprep.subr.mxu0 0.0
    %77 = vmatpush1.msra.mxu0 %v70
    %78 = vmatprep.subr.mxu0 0.0
    %79 = vmatpush1.msra.mxu0 %v69
    %80 = vmatprep.subr.mxu0 0.0
    %81 = vmatpush1.msra.mxu0 %v68
    %82 = vmatprep.subr.mxu0 0.0
    %83 = vmatpush1.msra.mxu0 %v67
    %84 = vmatprep.subr.mxu0 0.0
    %85 = vmatpush1.msra.mxu0 %v66
    %86 = vmatprep.subr.mxu0 0.0
    %87 = vmatpush1.msra.mxu0 %v65
    %88 = vmatprep.subr.mxu0 0.0
    %89 = vmatpush1.msra.mxu0 %v64
    %90 = vmatprep.subr.mxu0 0.0
    %91 = vmatpush1.msra.mxu0 %v63
    %92 = vmatprep.subr.mxu0 0.0
    %93 = vmatpush1.msra.mxu0 %v62
    %94 = vmatprep.subr.mxu0 0.0
    %95 = vmatpush1.msra.mxu0 %v61
    %96 = vmatprep.subr.mxu0 0.0
    %97 = vmatpush1.msra.mxu0 %v60
    %98 = vmatprep.subr.mxu0 0.0
    %99 = vmatpush1.msra.mxu0 %v59
    %100 = vmatprep.subr.mxu0 0.0
    %101 = vmatpush1.msra.mxu0 %v58
    %102 = vmatprep.subr.mxu0 0.0
    %103 = vmatpush1.msra.mxu0 %v57
    %104 = vmatprep.subr.mxu0 0.0
    %105 = vmatpush1.msra.mxu0 %v56
    %106 = vmatprep.subr.mxu0 0.0
    %107 = vmatpush1.msra.mxu0 %v55
    %108 = vmatprep.subr.mxu0 0.0
    %109 = vmatpush2.msra.mxu0 0.0
    %110 = vmatprep.subr.mxu0 0.0
    %111 = vmatpush2.msra.mxu0 0.0
    %112 = vmatprep.subr.mxu0 0.0
    %113 = vmatpush2.msra.mxu0 0.0
    %114 = vmatprep.subr.mxu0 0.0
    %115 = vmatpush2.msra.mxu0 0.0
    %116 = vmatprep.subr.mxu0 0.0
    %117 = vmatpush2.msra.mxu0 0.0
    %118 = vmatprep.subr.mxu0 0.0
    %119 = vmatpush2.msra.mxu0 0.0
    %120 = vmatprep.subr.mxu0 0.0
    %121 = vmatpush2.msra.mxu0 0.0
    %122 = vmatprep.subr.mxu0 0.0
    %123 = vmatpush2.msra.mxu0 0.0
    %124 = vmatprep.subr.mxu0 0.0
    %125 = vmatpush2.msra.mxu0 0.0
    %126 = vmatprep.subr.mxu0 0.0
    %127 = vmatpush2.msra.mxu0 0.0
    %128 = vmatprep.subr.mxu0 0.0
    %129 = vmatpush2.msra.mxu0 0.0
    %130 = vmatprep.subr.mxu0 0.0
    %131 = vmatpush2.msra.mxu0 0.0
    %132 = vmatprep.subr.mxu0 0.0
    %133 = vmatpush2.msra.mxu0 0.0
    %134 = vmatprep.subr.mxu0 0.0
    %135 = vmatpush2.msra.mxu0 0.0
    %136 = vmatprep.subr.mxu0 0.0
    %137 = vmatpush2.msra.mxu0 0.0
    %138 = vmatprep.subr.mxu0 0.0
    %139 = vmatpush2.msra.mxu0 0.0
    %140 = vmatprep.mubr.f32.mxu0 0.0
    %141 = vmatmul.mubr.f32.gmra.mxu0 %v54
    %v142 = vpop.f32.mrf.mxu0
    %v143 = vadd.f32 %v75, %v142
    %v144 = vpop.f32.mrf.mxu0
    %145 = vdwg.mxu0
    %v146 = vmax.f32 %v143, 0.0
    %v147 = vld [vmem:[#allocation5 + $0x8] sm:$0xff]
    %v148 = vld [vmem:[#allocation5 + $0x10] sm:$0xff]
    %v149 = vld [vmem:[#allocation5 + $0xb8] sm:$0xff]
    %v150 = vld [vmem:[#allocation5 + $0xc0] sm:$0xff]
    %v151 = vld [vmem:[#allocation5 + $0x168] sm:$0xff]
    %v152 = vld [vmem:[#allocation5 + $0x170] sm:$0xff]
    %v153 = vld [vmem:[#allocation5 + $0x218] sm:$0xff]
    %v154 = vld [vmem:[#allocation5 + $0x220] sm:$0xff]
    %v155 = vld [vmem:[#allocation5 + $0x2c8] sm:$0xff]
    %v156 = vld [vmem:[#allocation5 + $0x2d0] sm:$0xff]
    %v157 = vld [vmem:[#allocation5 + $0x378] sm:$0xff]
    %v158 = vld [vmem:[#allocation5 + $0x380] sm:$0xff]
    %v159 = vld [vmem:[#allocation5 + $0x428] sm:$0xff]
    %v160 = vld [vmem:[#allocation5 + $0x430] sm:$0xff]
    %v161 = vld [vmem:[#allocation5 + $0x4d8] sm:$0xff]
    %v162 = vld [vmem:[#allocation5 + $0x4e0] sm:$0xff]
    %v163 = vld [vmem:[#allocation5 + $0x588] sm:$0xff]
    %v164 = vld [vmem:[#allocation5 + $0x590] sm:$0xff]
    %v165 = vld [vmem:[#allocation5 + $0x638] sm:$0xff]
    %v166 = vld [vmem:[#allocation5 + $0x640] sm:$0xff]
    %v167 = vld [vmem:[#allocation5 + $0x6e8] sm:$0xff]
    %v168 = vld [vmem:[#allocation5 + $0x6f0] sm:$0xff]
    %v169 = vld [vmem:[#allocation5 + $0x798] sm:$0xff]
    %v170 = vld [vmem:[#allocation5 + $0x7a0] sm:$0xff]
    %v171 = vld [vmem:[#allocation5 + $0x848] sm:$0xff]
    %v172 = vld [vmem:[#allocation5 + $0x850] sm:$0xff]
    %v173 = vld [vmem:[#allocation5 + $0x8f8] sm:$0xff]
    %v174 = vld [vmem:[#allocation5 + $0x900] sm:$0xff]
    %v175 = vld [vmem:[#allocation5 + $0x9a8] sm:$0xff]
    %v176 = vld [vmem:[#allocation5 + $0x9b0] sm:$0xff]
    %v177 = vld [vmem:[#allocation5 + $0xa58] sm:$0xff]
    %v178 = vld [vmem:[#allocation5 + $0xa60] sm:$0xff]
    %179 = vmatprep.subr.mxu0 %v178
    %180 = vmatpush1.msra.mxu0 %v177
    %181 = vmatprep.subr.mxu0 %v176
    %182 = vmatpush1.msra.mxu0 %v175
    %183 = vmatprep.subr.mxu0 %v174
    %184 = vmatpush1.msra.mxu0 %v173
    %185 = vmatprep.subr.mxu0 %v172
    %186 = vmatpush1.msra.mxu0 %v171
    %187 = vmatprep.subr.mxu0 %v170
    %188 = vmatpush1.msra.mxu0 %v169
    %189 = vmatprep.subr.mxu0 %v168
    %190 = vmatpush1.msra.mxu0 %v167
    %191 = vmatprep.subr.mxu0 %v166
    %192 = vmatpush1.msra.mxu0 %v165
    %193 = vmatprep.subr.mxu0 %v164
    %194 = vmatpush1.msra.mxu0 %v163
    %195 = vmatprep.subr.mxu0 %v162
    %196 = vmatpush1.msra.mxu0 %v161
    %197 = vmatprep.subr.mxu0 %v160
    %198 = vmatpush1.msra.mxu0 %v159
    %199 = vmatprep.subr.mxu0 %v158
    %200 = vmatpush1.msra.mxu0 %v157
    %201 = vmatprep.subr.mxu0 %v156
    %202 = vmatpush1.msra.mxu0 %v155
    %203 = vmatprep.subr.mxu0 %v154
    %204 = vmatpush1.msra.mxu0 %v153
    %205 = vmatprep.subr.mxu0 %v152
    %206 = vmatpush1.msra.mxu0 %v151
    %207 = vmatprep.subr.mxu0 %v150
    %208 = vmatpush1.msra.mxu0 %v149
    %209 = vmatprep.subr.mxu0 %v148
    %210 = vmatpush1.msra.mxu0 %v147
    %211 = vmatprep.subr.mxu0 0.0
    %212 = vmatpush2.msra.mxu0 0.0
    %213 = vmatprep.subr.mxu0 0.0
    %214 = vmatpush2.msra.mxu0 0.0
    %215 = vmatprep.subr.mxu0 0.0
    %216 = vmatpush2.msra.mxu0 0.0
    %217 = vmatprep.subr.mxu0 0.0
    %218 = vmatpush2.msra.mxu0 0.0
    %219 = vmatprep.subr.mxu0 0.0
    %220 = vmatpush2.msra.mxu0 0.0
    %221 = vmatprep.subr.mxu0 0.0
    %222 = vmatpush2.msra.mxu0 0.0
    %223 = vmatprep.subr.mxu0 0.0
    %224 = vmatpush2.msra.mxu0 0.0
    %225 = vmatprep.subr.mxu0 0.0
    %226 = vmatpush2.msra.mxu0 0.0
    %227 = vmatprep.subr.mxu0 0.0
    %228 = vmatpush2.msra.mxu0 0.0
    %229 = vmatprep.subr.mxu0 0.0
    %230 = vmatpush2.msra.mxu0 0.0
    %231 = vmatprep.subr.mxu0 0.0
    %232 = vmatpush2.msra.mxu0 0.0
    %233 = vmatprep.subr.mxu0 0.0
    %234 = vmatpush2.msra.mxu0 0.0
    %235 = vmatprep.subr.mxu0 0.0
    %236 = vmatpush2.msra.mxu0 0.0
    %237 = vmatprep.subr.mxu0 0.0
    %238 = vmatpush2.msra.mxu0 0.0
    %239 = vmatprep.subr.mxu0 0.0
    %240 = vmatpush2.msra.mxu0 0.0
    %241 = vmatprep.subr.mxu0 0.0
    %242 = vmatpush2.msra.mxu0 0.0
    %243 = vmatprep.mubr.f32.mxu0 0.0
    %244 = vmatmul.mubr.f32.gmra.mxu0 %v146
    %v245 = vpop.f32.mrf.mxu0
    %v246 = vadd.f32 0.0, %v245
    %v247 = vpop.f32.mrf.mxu0
    %v248 = vadd.f32 0.0, %v247
    %249 = vdwg.mxu0
    %v250 = vld [vmem:[#allocation7 + $0x1] sm:$0x1]
    %v251 = vlaneseq
    %v252 = vshrl.u32 %v251, 7
    %v253 = vsub.s32 0, %v252
    %v254 = vrot.slane %v250, %v253
    %v255 = vadd.f32 %v246, %v254
    %v256 = vrot.slane %v248, 4
    %v257 = vadd.f32 %v248, %v256
    %v258 = vrot.slane %v257, 2
    %v259 = vadd.f32 %v257, %v258
    %v260 = vrot.slane %v259, 1
    %v261 = vadd.f32 %v259, %v260
    %v262 = vmul.f32 %v248, %v248
    %v263 = vrot.slane %v262, 4
    %v264 = vadd.f32 %v262, %v263
    %v265 = vrot.slane %v264, 2
    %v266 = vadd.f32 %v264, %v265
    %v267 = vrot.slane %v266, 1
    %v268 = vadd.f32 %v266, %v267
    %v269 = vmul.f32 %v261, 0.125
    %v270 = vmul.f32 %v268, 0.125
    %v271 = vmul.f32 %v269, %v269
    %v272 = vsub.f32 %v270, %v271
    %v273 = vmax.f32 %v272, 0.0
    %v274 = vld [vmem:[#allocation7 + $0x2] sm:$0x1]
    %v275 = vadd.f32 %v273, 1e-05
    %v276 = vrsqrt.pop %v275
    %v277 = vmul.f32 %v274, %v276
    %v278 = vld [vmem:[#allocation7 + $0x3] sm:$0x1]
    %v279 = vmul.f32 %v269, %v277
    %v280 = vsub.f32 %v278, %v279
    %v281 = vlaneseq
    %v282 = vshrl.u32 %v281, 7
    %v283 = vsub.s32 0, %v282
    %v284 = vrot.slane %v277, %v283
    %v285 = vmul.f32 %v248, %v284
    %v286 = vlaneseq
    %v287 = vshrl.u32 %v286, 7
    %v288 = vsub.s32 0, %v287
    %v289 = vrot.slane %v280, %v288
    %v290 = vadd.f32 %v285, %v289
    %v291 = vmax.f32 %v290, 0.0
    %v292 = vld [vmem:[#allocation5 + $0x18] sm:$0xff]
    %v293 = vld [vmem:[#allocation5 + $0xc8] sm:$0xff]
    %v294 = vld [vmem:[#allocation5 + $0x178] sm:$0xff]
    %v295 = vld [vmem:[#allocation5 + $0x228] sm:$0xff]
    %v296 = vld [vmem:[#allocation5 + $0x2d8] sm:$0xff]
    %v297 = vld [vmem:[#allocation5 + $0x388] sm:$0xff]
    %v298 = vld [vmem:[#allocation5 + $0x438] sm:$0xff]
    %v299 = vld [vmem:[#allocation5 + $0x4e8] sm:$0xff]
    %v300 = vld [vmem:[#allocation5 + $0x598] sm:$0xff]
    %v301 = vld [vmem:[#allocation5 + $0x648] sm:$0xff]
    %v302 = vld [vmem:[#allocation5 + $0x6f8] sm:$0xff]
    %v303 = vld [vmem:[#allocation5 + $0x7a8] sm:$0xff]
    %v304 = vld [vmem:[#allocation5 + $0x858] sm:$0xff]
    %v305 = vld [vmem:[#allocation5 + $0x908] sm:$0xff]
    %v306 = vld [vmem:[#allocation5 + $0x9b8] sm:$0xff]
    %v307 = vld [vmem:[#allocation5 + $0xa68] sm:$0xff]
    %308 = vmatprep.subr.mxu0 0.0
    %309 = vmatpush1.msra.mxu0 %v307
    %310 = vmatprep.subr.mxu0 0.0
    %311 = vmatpush1.msra.mxu0 %v306
    %312 = vmatprep.subr.mxu0 0.0
    %313 = vmatpush1.msra.mxu0 %v305
    %314 = vmatprep.subr.mxu0 0.0
    %315 = vmatpush1.msra.mxu0 %v304
    %316 = vmatprep.subr.mxu0 0.0
    %317 = vmatpush1.msra.mxu0 %v303
    %318 = vmatprep.subr.mxu0 0.0
    %319 = vmatpush1.msra.mxu0 %v302
    %320 = vmatprep.subr.mxu0 0.0
    %321 = vmatpush1.msra.mxu0 %v301
    %322 = vmatprep.subr.mxu0 0.0
    %323 = vmatpush1.msra.mxu0 %v300
    %324 = vmatprep.subr.mxu0 0.0
    %325 = vmatpush1.msra.mxu0 %v299
    %326 = vmatprep.subr.mxu0 0.0
    %327 = vmatpush1.msra.mxu0 %v298
    %328 = vmatprep.subr.mxu0 0.0
    %329 = vmatpush1.msra.mxu0 %v297
    %330 = vmatprep.subr.mxu0 0.0
    %331 = vmatpush1.msra.mxu0 %v296
    %332 = vmatprep.subr.mxu0 0.0
    %333 = vmatpush1.msra.mxu0 %v295
    %334 = vmatprep.subr.mxu0 0.0
    %335 = vmatpush1.msra.mxu0 %v294
    %336 = vmatprep.subr.mxu0 0.0
    %337 = vmatpush1.msra.mxu0 %v293
    %338 = vmatprep.subr.mxu0 0.0
    %339 = vmatpush1.msra.mxu0 %v292
    %340 = vmatprep.subr.mxu0 0.0
    %341 = vmatpush2.msra.mxu0 0.0
    %342 = vmatprep.subr.mxu0 0.0
    %343 = vmatpush2.msra.mxu0 0.0
    %344 = vmatprep.subr.mxu0 0.0
    %345 = vmatpush2.msra.mxu0 0.0
    %346 = vmatprep.subr.mxu0 0.0
    %347 = vmatpush2.msra.mxu0 0.0
    %348 = vmatprep.subr.mxu0 0.0
    %349 = vmatpush2.msra.mxu0 0.0
    %350 = vmatprep.subr.mxu0 0.0
    %351 = vmatpush2.msra.mxu0 0.0
    %352 = vmatprep.subr.mxu0 0.0
    %353 = vmatpush2.msra.mxu0 0.0
    %354 = vmatprep.subr.mxu0 0.0
    %355 = vmatpush2.msra.mxu0 0.0
    %356 = vmatprep.subr.mxu0 0.0
    %357 = vmatpush2.msra.mxu0 0.0
    %358 = vmatprep.subr.mxu0 0.0
    %359 = vmatpush2.msra.mxu0 0.0
    %360 = vmatprep.subr.mxu0 0.0
    %361 = vmatpush2.msra.mxu0 0.0
    %362 = vmatprep.subr.mxu0 0.0
    %363 = vmatpush2.msra.mxu0 0.0
    %364 = vmatprep.subr.mxu0 0.0
    %365 = vmatpush2.msra.mxu0 0.0
    %366 = vmatprep.subr.mxu0 0.0
    %367 = vmatpush2.msra.mxu0 0.0
    %368 = vmatprep.subr.mxu0 0.0
    %369 = vmatpush2.msra.mxu0 0.0
    %370 = vmatprep.subr.mxu0 0.0
    %371 = vmatpush2.msra.mxu0 0.0
    %372 = vmatprep.mubr.f32.mxu0 0.0
    %373 = vmatmul.mubr.f32.gmra.mxu0 %v291
    %v374 = vpop.f32.mrf.mxu0
    %v375 = vadd.f32 0.0, %v374
    %v376 = vpop.f32.mrf.mxu0
    %377 = vdwg.mxu0
    %v378 = vrot.slane %v375, 4
    %v379 = vadd.f32 %v375, %v378
    %v380 = vrot.slane %v379, 2
    %v381 = vadd.f32 %v379, %v380
    %v382 = vrot.slane %v381, 1
    %v383 = vadd.f32 %v381, %v382
    %v384 = vmul.f32 %v375, %v375
    %v385 = vrot.slane %v384, 4
    %v386 = vadd.f32 %v384, %v385
    %v387 = vrot.slane %v386, 2
    %v388 = vadd.f32 %v386, %v387
    %v389 = vrot.slane %v388, 1
    %v390 = vadd.f32 %v388, %v389
    %v391 = vmul.f32 %v383, 0.125
    %v392 = vmul.f32 %v390, 0.125
    %v393 = vmul.f32 %v391, %v391
    %v394 = vsub.f32 %v392, %v393
    %v395 = vmax.f32 %v394, 0.0
    %v396 = vld [vmem:[#allocation7 + $0x4] sm:$0x1]
    %v397 = vadd.f32 %v395, 1e-05
    %v398 = vrsqrt.pop %v397
    %v399 = vmul.f32 %v396, %v398
    %v400 = vld [vmem:[#allocation7 + $0x5] sm:$0x1]
    %v401 = vmul.f32 %v391, %v399
    %v402 = vsub.f32 %v400, %v401
    %v403 = vlaneseq
    %v404 = vshrl.u32 %v403, 7
    %v405 = vsub.s32 0, %v404
    %v406 = vrot.slane %v399, %v405
    %v407 = vmul.f32 %v375, %v406
    %v408 = vlaneseq
    %v409 = vshrl.u32 %v408, 7
    %v410 = vsub.s32 0, %v409
    %v411 = vrot.slane %v402, %v410
    %v412 = vadd.f32 %v407, %v411
    %v413 = vmax.f32 %v412, 0.0
    %v414 = vld [vmem:[#allocation5 + $0x20] sm:$0xff]
    %v415 = vld [vmem:[#allocation5 + $0xd0] sm:$0xff]
    %v416 = vld [vmem:[#allocation5 + $0x180] sm:$0xff]
    %v417 = vld [vmem:[#allocation5 + $0x230] sm:$0xff]
    %v418 = vld [vmem:[#allocation5 + $0x2e0] sm:$0xff]
    %v419 = vld [vmem:[#allocation5 + $0x390] sm:$0xff]
    %v420 = vld [vmem:[#allocation5 + $0x440] sm:$0xff]
    %v421 = vld [vmem:[#allocation5 + $0x4f0] sm:$0xff]
    %v422 = vld [vmem:[#allocation5 + $0x5a0] sm:$0xff]
    %v423 = vld [vmem:[#allocation5 + $0x650] sm:$0xff]
    %v424 = vld [vmem:[#allocation5 + $0x700] sm:$0xff]
    %v425 = vld [vmem:[#allocation5 + $0x7b0] sm:$0xff]
    %v426 = vld [vmem:[#allocation5 + $0x860] sm:$0xff]
    %v427 = vld [vmem:[#allocation5 + $0x910] sm:$0xff]
    %v428 = vld [vmem:[#allocation5 + $0x9c0] sm:$0xff]
    %v429 = vld [vmem:[#allocation5 + $0xa70] sm:$0xff]
    %430 = vmatprep.subr.mxu0 0.0
    %431 = vmatpush1.msra.mxu0 %v429
    %432 = vmatprep.subr.mxu0 0.0
    %433 = vmatpush1.msra.mxu0 %v428
    %434 = vmatprep.subr.mxu0 0.0
    %435 = vmatpush1.msra.mxu0 %v427
    %436 = vmatprep.subr.mxu0 0.0
    %437 = vmatpush1.msra.mxu0 %v426
    %438 = vmatprep.subr.mxu0 0.0
    %439 = vmatpush1.msra.mxu0 %v425
    %440 = vmatprep.subr.mxu0 0.0
    %441 = vmatpush1.msra.mxu0 %v424
    %442 = vmatprep.subr.mxu0 0.0
    %443 = vmatpush1.msra.mxu0 %v423
    %444 = vmatprep.subr.mxu0 0.0
    %445 = vmatpush1.msra.mxu0 %v422
    %446 = vmatprep.subr.mxu0 0.0
    %447 = vmatpush1.msra.mxu0 %v421
    %448 = vmatprep.subr.mxu0 0.0
    %449 = vmatpush1.msra.mxu0 %v420
    %450 = vmatprep.subr.mxu0 0.0
    %451 = vmatpush1.msra.mxu0 %v419
    %452 = vmatprep.subr.mxu0 0.0
    %453 = vmatpush1.msra.mxu0 %v418
    %454 = vmatprep.subr.mxu0 0.0
    %455 = vmatpush1.msra.mxu0 %v417
    %456 = vmatprep.subr.mxu0 0.0
    %457 = vmatpush1.msra.mxu0 %v416
    %458 = vmatprep.subr.mxu0 0.0
    %459 = vmatpush1.msra.mxu0 %v415
    %460 = vmatprep.subr.mxu0 0.0
    %461 = vmatpush1.msra.mxu0 %v414
    %462 = vmatprep.subr.mxu0 0.0
    %463 = vmatpush2.msra.mxu0 0.0
    %464 = vmatprep.subr.mxu0 0.0
    %465 = vmatpush2.msra.mxu0 0.0
    %466 = vmatprep.subr.mxu0 0.0
    %467 = vmatpush2.msra.mxu0 0.0
    %468 = vmatprep.subr.mxu0 0.0
    %469 = vmatpush2.msra.mxu0 0.0
    %470 = vmatprep.subr.mxu0 0.0
    %471 = vmatpush2.msra.mxu0 0.0
    %472 = vmatprep.subr.mxu0 0.0
    %473 = vmatpush2.msra.mxu0 0.0
    %474 = vmatprep.subr.mxu0 0.0
    %475 = vmatpush2.msra.mxu0 0.0
    %476 = vmatprep.subr.mxu0 0.0
    %477 = vmatpush2.msra.mxu0 0.0
    %478 = vmatprep.subr.mxu0 0.0
    %479 = vmatpush2.msra.mxu0 0.0
    %480 = vmatprep.subr.mxu0 0.0
    %481 = vmatpush2.msra.mxu0 0.0
    %482 = vmatprep.subr.mxu0 0.0
    %483 = vmatpush2.msra.mxu0 0.0
    %484 = vmatprep.subr.mxu0 0.0
    %485 = vmatpush2.msra.mxu0 0.0
    %486 = vmatprep.subr.mxu0 0.0
    %487 = vmatpush2.msra.mxu0 0.0
    %488 = vmatprep.subr.mxu0 0.0
    %489 = vmatpush2.msra.mxu0 0.0
    %490 = vmatprep.subr.mxu0 0.0
    %491 = vmatpush2.msra.mxu0 0.0
    %492 = vmatprep.subr.mxu0 0.0
    %493 = vmatpush2.msra.mxu0 0.0
    %494 = vmatprep.mubr.f32.mxu0 0.0
    %495 = vmatmul.mubr.f32.gmra.mxu0 %v413
    %v496 = vpop.f32.mrf.mxu0
    %v497 = vadd.f32 0.0, %v496
    %v498 = vpop.f32.mrf.mxu0
    %499 = vdwg.mxu0
    %v500 = vrot.slane %v497, 4
    %v501 = vadd.f32 %v497, %v500
    %v502 = vrot.slane %v501, 2
    %v503 = vadd.f32 %v501, %v502
    %v504 = vrot.slane %v503, 1
    %v505 = vadd.f32 %v503, %v504
    %v506 = vmul.f32 %v497, %v497
    %v507 = vrot.slane %v506, 4
    %v508 = vadd.f32 %v506, %v507
    %v509 = vrot.slane %v508, 2
    %v510 = vadd.f32 %v508, %v509
    %v511 = vrot.slane %v510, 1
    %v512 = vadd.f32 %v510, %v511
    %v513 = vmul.f32 %v505, 0.125
    %v514 = vmul.f32 %v512, 0.125
    %v515 = vmul.f32 %v513, %v513
    %v516 = vsub.f32 %v514, %v515
    %v517 = vmax.f32 %v516, 0.0
    %v518 = vld [vmem:[#allocation7 + $0x6] sm:$0x1]
    %v519 = vadd.f32 %v517, 1e-05
    %v520 = vrsqrt.pop %v519
    %v521 = vmul.f32 %v518, %v520
    %v522 = vld [vmem:[#allocation7 + $0x7] sm:$0x1]
    %v523 = vmul.f32 %v513, %v521
    %v524 = vsub.f32 %v522, %v523
    %v525 = vlaneseq
    %v526 = vshrl.u32 %v525, 7
    %v527 = vsub.s32 0, %v526
    %v528 = vrot.slane %v521, %v527
    %v529 = vmul.f32 %v497, %v528
    %v530 = vlaneseq
    %v531 = vshrl.u32 %v530, 7
    %v532 = vsub.s32 0, %v531
    %v533 = vrot.slane %v524, %v532
    %v534 = vadd.f32 %v529, %v533
    %v535 = vadd.f32 %v534, %v255
    %v536 = vmax.f32 %v535, 0.0
    %v537 = vld [vmem:[#allocation5 + $0x28] sm:$0xff]
    %v538 = vld [vmem:[#allocation5 + $0x30] sm:$0xff]
    %v539 = vld [vmem:[#allocation5 + $0xd8] sm:$0xff]
    %v540 = vld [vmem:[#allocation5 + $0xe0] sm:$0xff]
    %v541 = vld [vmem:[#allocation5 + $0x188] sm:$0xff]
    %v542 = vld [vmem:[#allocation5 + $0x190] sm:$0xff]
    %v543 = vld [vmem:[#allocation5 + $0x238] sm:$0xff]
    %v544 = vld [vmem:[#allocation5 + $0x240] sm:$0xff]
    %v545 = vld [vmem:[#allocation5 + $0x2e8] sm:$0xff]
    %v546 = vld [vmem:[#allocation5 + $0x2f0] sm:$0xff]
    %v547 = vld [vmem:[#allocation5 + $0x398] sm:$0xff]
    %v548 = vld [vmem:[#allocation5 + $0x3a0] sm:$0xff]
    %v549 = vld [vmem:[#allocation5 + $0x448] sm:$0xff]
    %v550 = vld [vmem:[#allocation5 + $0x450] sm:$0xff]
    %v551 = vld [vmem:[#allocation5 + $0x4f8] sm:$0xff]
    %v552 = vld [vmem:[#allocation5 + $0x500] sm:$0xff]
    %v553 = vld [vmem:[#allocation5 + $0x5a8] sm:$0xff]
    %v554 = vld [vmem:[#allocation5 + $0x5b0] sm:$0xff]
    %v555 = vld [vmem:[#allocation5 + $0x658] sm:$0xff]
    %v556 = vld [vmem:[#allocation5 + $0x660] sm:$0xff]
    %v557 = vld [vmem:[#allocation5 + $0x708] sm:$0xff]
    %v558 = vld [vmem:[#allocation5 + $0x710] sm:$0xff]
    %v559 = vld [vmem:[#allocation5 + $0x7b8] sm:$0xff]
    %v560 = vld [vmem:[#allocation5 + $0x7c0] sm:$0xff]
    %v561 = vld [vmem:[#allocation5 + $0x868] sm:$0xff]
    %v562 = vld [vmem:[#allocation5 + $0x870] sm:$0xff]
    %v563 = vld [vmem:[#allocation5 + $0x918] sm:$0xff]
    %v564 = vld [vmem:[#allocation5 + $0x920] sm:$0xff]
    %v565 = vld [vmem:[#allocation5 + $0x9c8] sm:$0xff]
    %v566 = vld [vmem:[#allocation5 + $0x9d0] sm:$0xff]
    %v567 = vld [vmem:[#allocation5 + $0xa78] sm:$0xff]
    %v568 = vld [vmem:[#allocation5 + $0xa80] sm:$0xff]
    %569 = vmatprep.subr.mxu0 %v568
    %570 = vmatpush1.msra.mxu0 %v567
    %571 = vmatprep.subr.mxu0 %v566
    %572 = vmatpush1.msra.mxu0 %v565
    %573 = vmatprep.subr.mxu0 %v564
    %574 = vmatpush1.msra.mxu0 %v563
    %575 = vmatprep.subr.mxu0 %v562
    %576 = vmatpush1.msra.mxu0 %v561
    %577 = vmatprep.subr.mxu0 %v560
    %578 = vmatpush1.msra.mxu0 %v559
    %579 = vmatprep.subr.mxu0 %v558
    %580 = vmatpush1.msra.mxu0 %v557
    %581 = vmatprep.subr.mxu0 %v556
    %582 = vmatpush1.msra.mxu0 %v555
    %583 = vmatprep.subr.mxu0 %v554
    %584 = vmatpush1.msra.mxu0 %v553
    %585 = vmatprep.subr.mxu0 %v552
    %586 = vmatpush1.msra.mxu0 %v551
    %587 = vmatprep.subr.mxu0 %v550
    %588 = vmatpush1.msra.mxu0 %v549
    %589 = vmatprep.subr.mxu0 %v548
    %590 = vmatpush1.msra.mxu0 %v547
    %591 = vmatprep.subr.mxu0 %v546
    %592 = vmatpush1.msra.mxu0 %v545
    %593 = vmatprep.subr.mxu0 %v544
    %594 = vmatpush1.msra.mxu0 %v543
    %595 = vmatprep.subr.mxu0 %v542
    %596 = vmatpush1.msra.mxu0 %v541
    %597 = vmatprep.subr.mxu0 %v540
    %598 = vmatpush1.msra.mxu0 %v539
    %599 = vmatprep.subr.mxu0 %v538
    %600 = vmatpush1.msra.mxu0 %v537
    %601 = vmatprep.subr.mxu0 0.0
    %602 = vmatpush2.msra.mxu0 0.0
    %603 = vmatprep.subr.mxu0 0.0
    %604 = vmatpush2.msra.mxu0 0.0
    %605 = vmatprep.subr.mxu0 0.0
    %606 = vmatpush2.msra.mxu0 0.0
    %607 = vmatprep.subr.mxu0 0.0
    %608 = vmatpush2.msra.mxu0 0.0
    %609 = vmatprep.subr.mxu0 0.0
    %610 = vmatpush2.msra.mxu0 0.0
    %611 = vmatprep.subr.mxu0 0.0
    %612 = vmatpush2.msra.mxu0 0.0
    %613 = vmatprep.subr.mxu0 0.0
    %614 = vmatpush2.msra.mxu0 0.0
    %615 = vmatprep.subr.mxu0 0.0
    %616 = vmatpush2.msra.mxu0 0.0
    %617 = vmatprep.subr.mxu0 0.0
    %618 = vmatpush2.msra.mxu0 0.0
    %619 = vmatprep.subr.mxu0 0.0
    %620 = vmatpush2.msra.mxu0 0.0
    %621 = vmatprep.subr.mxu0 0.0
    %622 = vmatpush2.msra.mxu0 0.0
    %623 = vmatprep.subr.mxu0 0.0
    %624 = vmatpush2.msra.mxu0 0.0
    %625 = vmatprep.subr.mxu0 0.0
    %626 = vmatpush2.msra.mxu0 0.0
    %627 = vmatprep.subr.mxu0 0.0
    %628 = vmatpush2.msra.mxu0 0.0
    %629 = vmatprep.subr.mxu0 0.0
    %630 = vmatpush2.msra.mxu0 0.0
    %631 = vmatprep.subr.mxu0 0.0
    %632 = vmatpush2.msra.mxu0 0.0
    %633 = vmatprep.mubr.f32.mxu0 0.0
    %634 = vmatmul.mubr.f32.gmra.mxu0 %v536
    %v635 = vpop.f32.mrf.mxu0
    %v636 = vadd.f32 0.0, %v635
    %v637 = vpop.f32.mrf.mxu0
    %v638 = vadd.f32 0.0, %v637
    %639 = vdwg.mxu0
    %v640 = vld [vmem:[#allocation7 + $0x8] sm:$0x1]
    %v641 = vlaneseq
    %v642 = vshrl.u32 %v641, 7
    %v643 = vsub.s32 0, %v642
    %v644 = vrot.slane %v640, %v643
    %v645 = vadd.f32 %v636, %v644
    %v646 = vrot.slane %v638, 4
    %v647 = vadd.f32 %v638, %v646
    %v648 = vrot.slane %v647, 2
    %v649 = vadd.f32 %v647, %v648
    %v650 = vrot.slane %v649, 1
    %v651 = vadd.f32 %v649, %v650
    %v652 = vmul.f32 %v638, %v638
    %v653 = vrot.slane %v652, 4
    %v654 = vadd.f32 %v652, %v653
    %v655 = vrot.slane %v654, 2
    %v656 = vadd.f32 %v654, %v655
    %v657 = vrot.slane %v656, 1
    %v658 = vadd.f32 %v656, %v657
    %v659 = vmul.f32 %v651, 0.125
    %v660 = vmul.f32 %v658, 0.125
    %v661 = vmul.f32 %v659, %v659
    %v662 = vsub.f32 %v660, %v661
    %v663 = vmax.f32 %v662, 0.0
    %v664 = vld [vmem:[#allocation7 + $0x9] sm:$0x1]
    %v665 = vadd.f32 %v663, 1e-05
    %v666 = vrsqrt.pop %v665
    %v667 = vmul.f32 %v664, %v666
    %v668 = vld [vmem:[#allocation7 + $0xa] sm:$0x1]
    %v669 = vmul.f32 %v659, %v667
    %v670 = vsub.f32 %v668, %v669
    %v671 = vlaneseq
    %v672 = vshrl.u32 %v671, 7
    %v673 = vsub.s32 0, %v672
    %v674 = vrot.slane %v667, %v673
    %v675 = vmul.f32 %v638, %v674
    %v676 = vlaneseq
    %v677 = vshrl.u32 %v676, 7
    %v678 = vsub.s32 0, %v677
    %v679 = vrot.slane %v670, %v678
    %v680 = vadd.f32 %v675, %v679
    %v681 = vmax.f32 %v680, 0.0
    %v682 = vld [vmem:[#allocation5 + $0x38] sm:$0xff]
    %v683 = vld [vmem:[#allocation5 + $0xe8] sm:$0xff]
    %v684 = vld [vmem:[#allocation5 + $0x198] sm:$0xff]
    %v685 = vld [vmem:[#allocation5 + $0x248] sm:$0xff]
    %v686 = vld [vmem:[#allocation5 + $0x2f8] sm:$0xff]
    %v687 = vld [vmem:[#allocation5 + $0x3a8] sm:$0xff]
    %v688 = vld [vmem:[#allocation5 + $0x458] sm:$0xff]
    %v689 = vld [vmem:[#allocation5 + $0x508] sm:$0xff]
    %v690 = vld [vmem:[#allocation5 + $0x5b8] sm:$0xff]
    %v691 = vld [vmem:[#allocation5 + $0x668] sm:$0xff]
    %v692 = vld [vmem:[#allocation5 + $0x718] sm:$0xff]
    %v693 = vld [vmem:[#allocation5 + $0x7c8] sm:$0xff]
    %v694 = vld [vmem:[#allocation5 + $0x878] sm:$0xff]
    %v695 = vld [vmem:[#allocation5 + $0x928] sm:$0xff]
    %v696 = vld [vmem:[#allocation5 + $0x9d8] sm:$0xff]
    %v697 = vld [vmem:[#allocation5 + $0xa88] sm:$0xff]
    %698 = vmatprep.subr.mxu0 0.0
    %699 = vmatpush1.msra.mxu0 %v697
    %700 = vmatprep.subr.mxu0 0.0
    %701 = vmatpush1.msra.mxu0 %v696
    %702 = vmatprep.subr.mxu0 0.0
    %703 = vmatpush1.msra.mxu0 %v695
    %704 = vmatprep.subr.mxu0 0.0
    %705 = vmatpush1.msra.mxu0 %v694
    %706 = vmatprep.subr.mxu0 0.0
    %707 = vmatpush1.msra.mxu0 %v693
    %708 = vmatprep.subr.mxu0 0.0
    %709 = vmatpush1.msra.mxu0 %v692
    %710 = vmatprep.subr.mxu0 0.0
    %711 = vmatpush1.msra.mxu0 %v691
    %712 = vmatprep.subr.mxu0 0.0
    %713 = vmatpush1.msra.mxu0 %v690
    %714 = vmatprep.subr.mxu0 0.0
    %715 = vmatpush1.msra.mxu0 %v689
    %716 = vmatprep.subr.mxu0 0.0
    %717 = vmatpush1.msra.mxu0 %v688
    %718 = vmatprep.subr.mxu0 0.0
    %719 = vmatpush1.msra.mxu0 %v687
    %720 = vmatprep.subr.mxu0 0.0
    %721 = vmatpush1.msra.mxu0 %v686
    %722 = vmatprep.subr.mxu0 0.0
    %723 = vmatpush1.msra.mxu0 %v685
    %724 = vmatprep.subr.mxu0 0.0
    %725 = vmatpush1.msra.mxu0 %v684
    %726 = vmatprep.subr.mxu0 0.0
    %727 = vmatpush1.msra.mxu0 %v683
    %728 = vmatprep.subr.mxu0 0.0
    %729 = vmatpush1.msra.mxu0 %v682
    %730 = vmatprep.subr.mxu0 0.0
    %731 = vmatpush2.msra.mxu0 0.0
    %732 = vmatprep.subr.mxu0 0.0
    %733 = vmatpush2.msra.mxu0 0.0
    %734 = vmatprep.subr.mxu0 0.0
    %735 = vmatpush2.msra.mxu0 0.0
    %736 = vmatprep.subr.mxu0 0.0
    %737 = vmatpush2.msra.mxu0 0.0
    %738 = vmatprep.subr.mxu0 0.0
    %739 = vmatpush2.msra.mxu0 0.0
    %740 = vmatprep.subr.mxu0 0.0
    %741 = vmatpush2.msra.mxu0 0.0
    %742 = vmatprep.subr.mxu0 0.0
    %743 = vmatpush2.msra.mxu0 0.0
    %744 = vmatprep.subr.mxu0 0.0
    %745 = vmatpush2.msra.mxu0 0.0
    %746 = vmatprep.subr.mxu0 0.0
    %747 = vmatpush2.msra.mxu0 0.0
    %748 = vmatprep.subr.mxu0 0.0
    %749 = vmatpush2.msra.mxu0 0.0
    %750 = vmatprep.subr.mxu0 0.0
    %751 = vmatpush2.msra.mxu0 0.0
    %752 = vmatprep.subr.mxu0 0.0
    %753 = vmatpush2.msra.mxu0 0.0
    %754 = vmatprep.subr.mxu0 0.0
    %755 = vmatpush2.msra.mxu0 0.0
    %756 = vmatprep.subr.mxu0 0.0
    %757 = vmatpush2.msra.mxu0 0.0
    %758 = vmatprep.subr.mxu0 0.0
    %759 = vmatpush2.msra.mxu0 0.0
    %760 = vmatprep.subr.mxu0 0.0
    %761 = vmatpush2.msra.mxu0 0.0
    %762 = vmatprep.mubr.f32.mxu0 0.0
    %763 = vmatmul.mubr.f32.gmra.mxu0 %v681
    %v764 = vpop.f32.mrf.mxu0
    %v765 = vadd.f32 0.0, %v764
    %v766 = vpop.f32.mrf.mxu0
    %767 = vdwg.mxu0
    %v768 = vrot.slane %v765, 4
    %v769 = vadd.f32 %v765, %v768
    %v770 = vrot.slane %v769, 2
    %v771 = vadd.f32 %v769, %v770
    %v772 = vrot.slane %v771, 1
    %v773 = vadd.f32 %v771, %v772
    %v774 = vmul.f32 %v765, %v765
    %v775 = vrot.slane %v774, 4
    %v776 = vadd.f32 %v774, %v775
    %v777 = vrot.slane %v776, 2
    %v778 = vadd.f32 %v776, %v777
    %v779 = vrot.slane %v778, 1
    %v780 = vadd.f32 %v778, %v779
    %v781 = vmul.f32 %v773, 0.125
    %v782 = vmul.f32 %v780, 0.125
    %v783 = vmul.f32 %v781, %v781
    %v784 = vsub.f32 %v782, %v783
    %v785 = vmax.f32 %v784, 0.0
    %v786 = vld [vmem:[#allocation7 + $0xb] sm:$0x1]
    %v787 = vadd.f32 %v785, 1e-05
    %v788 = vrsqrt.pop %v787
    %v789 = vmul.f32 %v786, %v788
    %v790 = vld [vmem:[#allocation7 + $0xc] sm:$0x1]
    %v791 = vmul.f32 %v781, %v789
    %v792 = vsub.f32 %v790, %v791
    %v793 = vlaneseq
    %v794 = vshrl.u32 %v793, 7
    %v795 = vsub.s32 0, %v794
    %v796 = vrot.slane %v789, %v795
    %v797 = vmul.f32 %v765, %v796
    %v798 = vlaneseq
    %v799 = vshrl.u32 %v798, 7
    %v800 = vsub.s32 0, %v799
    %v801 = vrot.slane %v792, %v800
    %v802 = vadd.f32 %v797, %v801
    %v803 = vmax.f32 %v802, 0.0
    %v804 = vld [vmem:[#allocation5 + $0x40] sm:$0xff]
    %v805 = vld [vmem:[#allocation5 + $0xf0] sm:$0xff]
    %v806 = vld [vmem:[#allocation5 + $0x1a0] sm:$0xff]
    %v807 = vld [vmem:[#allocation5 + $0x250] sm:$0xff]
    %v808 = vld [vmem:[#allocation5 + $0x300] sm:$0xff]
    %v809 = vld [vmem:[#allocation5 + $0x3b0] sm:$0xff]
    %v810 = vld [vmem:[#allocation5 + $0x460] sm:$0xff]
    %v811 = vld [vmem:[#allocation5 + $0x510] sm:$0xff]
    %v812 = vld [vmem:[#allocation5 + $0x5c0] sm:$0xff]
    %v813 = vld [vmem:[#allocation5 + $0x670] sm:$0xff]
    %v814 = vld [vmem:[#allocation5 + $0x720] sm:$0xff]
    %v815 = vld [vmem:[#allocation5 + $0x7d0] sm:$0xff]
    %v816 = vld [vmem:[#allocation5 + $0x880] sm:$0xff]
    %v817 = vld [vmem:[#allocation5 + $0x930] sm:$0xff]
    %v818 = vld [vmem:[#allocation5 + $0x9e0] sm:$0xff]
    %v819 = vld [vmem:[#allocation5 + $0xa90] sm:$0xff]
    %820 = vmatprep.subr.mxu0 0.0
    %821 = vmatpush1.msra.mxu0 %v819
    %822 = vmatprep.subr.mxu0 0.0
    %823 = vmatpush1.msra.mxu0 %v818
    %824 = vmatprep.subr.mxu0 0.0
    %825 = vmatpush1.msra.mxu0 %v817
    %826 = vmatprep.subr.mxu0 0.0
    %827 = vmatpush1.msra.mxu0 %v816
    %828 = vmatprep.subr.mxu0 0.0
    %829 = vmatpush1.msra.mxu0 %v815
    %830 = vmatprep.subr.mxu0 0.0
    %831 = vmatpush1.msra.mxu0 %v814
    %832 = vmatprep.subr.mxu0 0.0
    %833 = vmatpush1.msra.mxu0 %v813
    %834 = vmatprep.subr.mxu0 0.0
    %835 = vmatpush1.msra.mxu0 %v812
    %836 = vmatprep.subr.mxu0 0.0
    %837 = vmatpush1.msra.mxu0 %v811
    %838 = vmatprep.subr.mxu0 0.0
    %839 = vmatpush1.msra.mxu0 %v810
    %840 = vmatprep.subr.mxu0 0.0
    %841 = vmatpush1.msra.mxu0 %v809
    %842 = vmatprep.subr.mxu0 0.0
    %843 = vmatpush1.msra.mxu0 %v808
    %844 = vmatprep.subr.mxu0 0.0
    %845 = vmatpush1.msra.mxu0 %v807
    %846 = vmatprep.subr.mxu0 0.0
    %847 = vmatpush1.msra.mxu0 %v806
    %848 = vmatprep.subr.mxu0 0.0
    %849 = vmatpush1.msra.mxu0 %v805
    %850 = vmatprep.subr.mxu0 0.0
    %851 = vmatpush1.msra.mxu0 %v804
    %852 = vmatprep.subr.mxu0 0.0
    %853 = vmatpush2.msra.mxu0 0.0
    %854 = vmatprep.subr.mxu0 0.0
    %855 = vmatpush2.msra.mxu0 0.0
    %856 = vmatprep.subr.mxu0 0.0
    %857 = vmatpush2.msra.mxu0 0.0
    %858 = vmatprep.subr.mxu0 0.0
    %859 = vmatpush2.msra.mxu0 0.0
    %860 = vmatprep.subr.mxu0 0.0
    %861 = vmatpush2.msra.mxu0 0.0
    %862 = vmatprep.subr.mxu0 0.0
    %863 = vmatpush2.msra.mxu0 0.0
    %864 = vmatprep.subr.mxu0 0.0
    %865 = vmatpush2.msra.mxu0 0.0
    %866 = vmatprep.subr.mxu0 0.0
    %867 = vmatpush2.msra.mxu0 0.0
    %868 = vmatprep.subr.mxu0 0.0
    %869 = vmatpush2.msra.mxu0 0.0
    %870 = vmatprep.subr.mxu0 0.0
    %871 = vmatpush2.msra.mxu0 0.0
    %872 = vmatprep.subr.mxu0 0.0
    %873 = vmatpush2.msra.mxu0 0.0
    %874 = vmatprep.subr.mxu0 0.0
    %875 = vmatpush2.msra.mxu0 0.0
    %876 = vmatprep.subr.mxu0 0.0
    %877 = vmatpush2.msra.mxu0 0.0
    %878 = vmatprep.subr.mxu0 0.0
    %879 = vmatpush2.msra.mxu0 0.0
    %880 = vmatprep.subr.mxu0 0.0
    %881 = vmatpush2.msra.mxu0 0.0
    %882 = vmatprep.subr.mxu0 0.0
    %883 = vmatpush2.msra.mxu0 0.0
    %884 = vmatprep.mubr.f32.mxu0 0.0
    %885 = vmatmul.mubr.f32.gmra.mxu0 %v803
    %v886 = vpop.f32.mrf.mxu0
    %v887 = vadd.f32 0.0, %v886
    %v888 = vpop.f32.mrf.mxu0
    %889 = vdwg.mxu0
    %v890 = vrot.slane %v887, 4
    %v891 = vadd.f32 %v887, %v890
    %v892 = vrot.slane %v891, 2
    %v893 = vadd.f32 %v891, %v892
    %v894 = vrot.slane %v893, 1
    %v895 = vadd.f32 %v893, %v894
    %v896 = vmul.f32 %v887, %v887
    %v897 = vrot.slane %v896, 4
    %v898 = vadd.f32 %v896, %v897
    %v899 = vrot.slane %v898, 2
    %v900 = vadd.f32 %v898, %v899
    %v901 = vrot.slane %v900, 1
    %v902 = vadd.f32 %v900, %v901
    %v903 = vmul.f32 %v895, 0.125
    %v904 = vmul.f32 %v902, 0.125
    %v905 = vmul.f32 %v903, %v903
    %v906 = vsub.f32 %v904, %v905
    %v907 = vmax.f32 %v906, 0.0
    %v908 = vld [vmem:[#allocation7 + $0xd] sm:$0x1]
    %v909 = vadd.f32 %v907, 1e-05
    %v910 = vrsqrt.pop %v909
    %v911 = vmul.f32 %v908, %v910
    %v912 = vld [vmem:[#allocation7 + $0xe] sm:$0x1]
    %v913 = vmul.f32 %v903, %v911
    %v914 = vsub.f32 %v912, %v913
    %v915 = vlaneseq
    %v916 = vshrl.u32 %v915, 7
    %v917 = vsub.s32 0, %v916
    %v918 = vrot.slane %v911, %v917
    %v919 = vmul.f32 %v887, %v918
    %v920 = vlaneseq
    %v921 = vshrl.u32 %v920, 7
    %v922 = vsub.s32 0, %v921
    %v923 = vrot.slane %v914, %v922
    %v924 = vadd.f32 %v919, %v923
    %v925 = vadd.f32 %v924, %v645
    %v926 = vmax.f32 %v925, 0.0
    %v927 = vld [vmem:[#allocation5 + $0x48] sm:$0xff]
    %v928 = vld [vmem:[#allocation5 + $0x50] sm:$0xff]
    %v929 = vld [vmem:[#allocation5 + $0xf8] sm:$0xff]
    %v930 = vld [vmem:[#allocation5 + $0x100] sm:$0xff]
    %v931 = vld [vmem:[#allocation5 + $0x1a8] sm:$0xff]
    %v932 = vld [vmem:[#allocation5 + $0x1b0] sm:$0xff]
    %v933 = vld [vmem:[#allocation5 + $0x258] sm:$0xff]
    %v934 = vld [vmem:[#allocation5 + $0x260] sm:$0xff]
    %v935 = vld [vmem:[#allocation5 + $0x308] sm:$0xff]
    %v936 = vld [vmem:[#allocation5 + $0x310] sm:$0xff]
    %v937 = vld [vmem:[#allocation5 + $0x3b8] sm:$0xff]
    %v938 = vld [vmem:[#allocation5 + $0x3c0] sm:$0xff]
    %v939 = vld [vmem:[#allocation5 + $0x468] sm:$0xff]
    %v940 = vld [vmem:[#allocation5 + $0x470] sm:$0xff]
    %v941 = vld [vmem:[#allocation5 + $0x518] sm:$0xff]
    %v942 = vld [vmem:[#allocation5 + $0x520] sm:$0xff]
    %v943 = vld [vmem:[#allocation5 + $0x5c8] sm:$0xff]
    %v944 = vld [vmem:[#allocation5 + $0x5d0] sm:$0xff]
    %v945 = vld [vmem:[#allocation5 + $0x678] sm:$0xff]
    %v946 = vld [vmem:[#allocation5 + $0x680] sm:$0xff]
    %v947 = vld [vmem:[#allocation5 + $0x728] sm:$0xff]
    %v948 = vld [vmem:[#allocation5 + $0x730] sm:$0xff]
    %v949 = vld [vmem:[#allocation5 + $0x7d8] sm:$0xff]
    %v950 = vld [vmem:[#allocation5 + $0x7e0] sm:$0xff]
    %v951 = vld [vmem:[#allocation5 + $0x888] sm:$0xff]
    %v952 = vld [vmem:[#allocation5 + $0x890] sm:$0xff]
    %v953 = vld [vmem:[#allocation5 + $0x938] sm:$0xff]
    %v954 = vld [vmem:[#allocation5 + $0x940] sm:$0xff]
    %v955 = vld [vmem:[#allocation5 + $0x9e8] sm:$0xff]
    %v956 = vld [vmem:[#allocation5 + $0x9f0] sm:$0xff]
    %v957 = vld [vmem:[#allocation5 + $0xa98] sm:$0xff]
    %v958 = vld [vmem:[#allocation5 + $0xaa0] sm:$0xff]
    %959 = vmatprep.subr.mxu0 %v958
    %960 = vmatpush1.msra.mxu0 %v957
    %961 = vmatprep.subr.mxu0 %v956
    %962 = vmatpush1.msra.mxu0 %v955
    %963 = vmatprep.subr.mxu0 %v954
    %964 = vmatpush1.msra.mxu0 %v953
    %965 = vmatprep.subr.mxu0 %v952
    %966 = vmatpush1.msra.mxu0 %v951
    %967 = vmatprep.subr.mxu0 %v950
    %968 = vmatpush1.msra.mxu0 %v949
    %969 = vmatprep.subr.mxu0 %v948
    %970 = vmatpush1.msra.mxu0 %v947
    %971 = vmatprep.subr.mxu0 %v946
    %972 = vmatpush1.msra.mxu0 %v945
    %973 = vmatprep.subr.mxu0 %v944
    %974 = vmatpush1.msra.mxu0 %v943
    %975 = vmatprep.subr.mxu0 %v942
    %976 = vmatpush1.msra.mxu0 %v941
    %977 = vmatprep.subr.mxu0 %v940
    %978 = vmatpush1.msra.mxu0 %v939
    %979 = vmatprep.subr.mxu0 %v938
    %980 = vmatpush1.msra.mxu0 %v937
    %981 = vmatprep.subr.mxu0 %v936
    %982 = vmatpush1.msra.mxu0 %v935
    %983 = vmatprep.subr.mxu0 %v934
    %984 = vmatpush1.msra.mxu0 %v933
    %985 = vmatprep.subr.mxu0 %v932
    %986 = vmatpush1.msra.mxu0 %v931
    %987 = vmatprep.subr.mxu0 %v930
    %988 = vmatpush1.msra.mxu0 %v929
    %989 = vmatprep.subr.mxu0 %v928
    %990 = vmatpush1.msra.mxu0 %v927
    %991 = vmatprep.subr.mxu0 0.0
    %992 = vmatpush2.msra.mxu0 0.0
    %993 = vmatprep.subr.mxu0 0.0
    %994 = vmatpush2.msra.mxu0 0.0
    %995 = vmatprep.subr.mxu0 0.0
    %996 = vmatpush2.msra.mxu0 0.0
    %997 = vmatprep.subr.mxu0 0.0
    %998 = vmatpush2.msra.mxu0 0.0
    %999 = vmatprep.subr.mxu0 0.0
    %1000 = vmatpush2.msra.mxu0 0.0
    %1001 = vmatprep.subr.mxu0 0.0
    %1002 = vmatpush2.msra.mxu0 0.0
    %1003 = vmatprep.subr.mxu0 0.0
    %1004 = vmatpush2.msra.mxu0 0.0
    %1005 = vmatprep.subr.mxu0 0.0
    %1006 = vmatpush2.msra.mxu0 0.0
    %1007 = vmatprep.subr.mxu0 0.0
    %1008 = vmatpush2.msra.mxu0 0.0
    %1009 = vmatprep.subr.mxu0 0.0
    %1010 = vmatpush2.msra.mxu0 0.0
    %1011 = vmatprep.subr.mxu0 0.0
    %1012 = vmatpush2.msra.mxu0 0.0
    %1013 = vmatprep.subr.mxu0 0.0
    %1014 = vmatpush2.msra.mxu0 0.0
    %1015 = vmatprep.subr.mxu0 0.0
    %1016 = vmatpush2.msra.mxu0 0.0
    %1017 = vmatprep.subr.mxu0 0.0
    %1018 = vmatpush2.msra.mxu0 0.0
    %1019 = vmatprep.subr.mxu0 0.0
    %1020 = vmatpush2.msra.mxu0 0.0
    %1021 = vmatprep.subr.mxu0 0.0
    %1022 = vmatpush2.msra.mxu0 0.0
    %1023 = vmatprep.mubr.f32.mxu0 0.0
    %1024 = vmatmul.mubr.f32.gmra.mxu0 %v926
    %v1025 = vpop.f32.mrf.mxu0
    %v1026 = vadd.f32 0.0, %v1025
    %v1027 = vpop.f32.mrf.mxu0
    %v1028 = vadd.f32 0.0, %v1027
    %1029 = vdwg.mxu0
    %v1030 = vld [vmem:[#allocation7 + $0xf] sm:$0x1]
    %v1031 = vlaneseq
    %v1032 = vshrl.u32 %v1031, 7
    %v1033 = vsub.s32 0, %v1032
    %v1034 = vrot.slane %v1030, %v1033
    %v1035 = vadd.f32 %v1026, %v1034
    %v1036 = vrot.slane %v1028, 4
    %v1037 = vadd.f32 %v1028, %v1036
    %v1038 = vrot.slane %v1037, 2
    %v1039 = vadd.f32 %v1037, %v1038
    %v1040 = vrot.slane %v1039, 1
    %v1041 = vadd.f32 %v1039, %v1040
    %v1042 = vmul.f32 %v1028, %v1028
    %v1043 = vrot.slane %v1042, 4
    %v1044 = vadd.f32 %v1042, %v1043
    %v1045 = vrot.slane %v1044, 2
    %v1046 = vadd.f32 %v1044, %v1045
    %v1047 = vrot.slane %v1046, 1
    %v1048 = vadd.f32 %v1046, %v1047
    %v1049 = vmul.f32 %v1041, 0.125
    %v1050 = vmul.f32 %v1048, 0.125
    %v1051 = vmul.f32 %v1049, %v1049
    %v1052 = vsub.f32 %v1050, %v1051
    %v1053 = vmax.f32 %v1052, 0.0
    %v1054 = vld [vmem:[#allocation7 + $0x10] sm:$0x1]
    %v1055 = vadd.f32 %v1053, 1e-05
    %v1056 = vrsqrt.pop %v1055
    %v1057 = vmul.f32 %v1054, %v1056
    %v1058 = vld [vmem:[#allocation7 + $0x11] sm:$0x1]
    %v1059 = vmul.f32 %v1049, %v1057
    %v1060 = vsub.f32 %v1058, %v1059
    %v1061 = vlaneseq
    %v1062 = vshrl.u32 %v1061, 7
    %v1063 = vsub.s32 0, %v1062
    %v1064 = vrot.slane %v1057, %v1063
    %v1065 = vmul.f32 %v1028, %v1064
    %v1066 = vlaneseq
    %v1067 = vshrl.u32 %v1066, 7
    %v1068 = vsub.s32 0, %v1067
    %v1069 = vrot.slane %v1060, %v1068
    %v1070 = vadd.f32 %v1065, %v1069
    %v1071 = vmax.f32 %v1070, 0.0
    %v1072 = vld [vmem:[#allocation5 + $0x58] sm:$0xff]
    %v1073 = vld [vmem:[#allocation5 + $0x108] sm:$0xff]
    %v1074 = vld [vmem:[#allocation5 + $0x1b8] sm:$0xff]
    %v1075 = vld [vmem:[#allocation5 + $0x268] sm:$0xff]
    %v1076 = vld [vmem:[#allocation5 + $0x318] sm:$0xff]
    %v1077 = vld [vmem:[#allocation5 + $0x3c8] sm:$0xff]
    %v1078 = vld [vmem:[#allocation5 + $0x478] sm:$0xff]
    %v1079 = vld [vmem:[#allocation5 + $0x528] sm:$0xff]
    %v1080 = vld [vmem:[#allocation5 + $0x5d8] sm:$0xff]
    %v1081 = vld [vmem:[#allocation5 + $0x688] sm:$0xff]
    %v1082 = vld [vmem:[#allocation5 + $0x738] sm:$0xff]
    %v1083 = vld [vmem:[#allocation5 + $0x7e8] sm:$0xff]
    %v1084 = vld [vmem:[#allocation5 + $0x898] sm:$0xff]
    %v1085 = vld [vmem:[#allocation5 + $0x948] sm:$0xff]
    %v1086 = vld [vmem:[#allocation5 + $0x9f8] sm:$0xff]
    %v1087 = vld [vmem:[#allocation5 + $0xaa8] sm:$0xff]
    %1088 = vmatprep.subr.mxu0 0.0
    %1089 = vmatpush1.msra.mxu0 %v1087
    %1090 = vmatprep.subr.mxu0 0.0
    %1091 = vmatpush1.msra.mxu0 %v1086
    %1092 = vmatprep.subr.mxu0 0.0
    %1093 = vmatpush1.msra.mxu0 %v1085
    %1094 = vmatprep.subr.mxu0 0.0
    %1095 = vmatpush1.msra.mxu0 %v1084
    %1096 = vmatprep.subr.mxu0 0.0
    %1097 = vmatpush1.msra.mxu0 %v1083
    %1098 = vmatprep.subr.mxu0 0.0
    %1099 = vmatpush1.msra.mxu0 %v1082
    %1100 = vmatprep.subr.mxu0 0.0
    %1101 = vmatpush1.msra.mxu0 %v1081
    %1102 = vmatprep.subr.mxu0 0.0
    %1103 = vmatpush1.msra.mxu0 %v1080
    %1104 = vmatprep.subr.mxu0 0.0
    %1105 = vmatpush1.msra.mxu0 %v1079
    %1106 = vmatprep.subr.mxu0 0.0
    %1107 = vmatpush1.msra.mxu0 %v1078
    %1108 = vmatprep.subr.mxu0 0.0
    %1109 = vmatpush1.msra.mxu0 %v1077
    %1110 = vmatprep.subr.mxu0 0.0
    %1111 = vmatpush1.msra.mxu0 %v1076
    %1112 = vmatprep.subr.mxu0 0.0
    %1113 = vmatpush1.msra.mxu0 %v1075
    %1114 = vmatprep.subr.mxu0 0.0
    %1115 = vmatpush1.msra.mxu0 %v1074
    %1116 = vmatprep.subr.mxu0 0.0
    %1117 = vmatpush1.msra.mxu0 %v1073
    %1118 = vmatprep.subr.mxu0 0.0
    %1119 = vmatpush1.msra.mxu0 %v1072
    %1120 = vmatprep.subr.mxu0 0.0
    %1121 = vmatpush2.msra.mxu0 0.0
    %1122 = vmatprep.subr.mxu0 0.0
    %1123 = vmatpush2.msra.mxu0 0.0
    %1124 = vmatprep.subr.mxu0 0.0
    %1125 = vmatpush2.msra.mxu0 0.0
    %1126 = vmatprep.subr.mxu0 0.0
    %1127 = vmatpush2.msra.mxu0 0.0
    %1128 = vmatprep.subr.mxu0 0.0
    %1129 = vmatpush2.msra.mxu0 0.0
    %1130 = vmatprep.subr.mxu0 0.0
    %1131 = vmatpush2.msra.mxu0 0.0
    %1132 = vmatprep.subr.mxu0 0.0
    %1133 = vmatpush2.msra.mxu0 0.0
    %1134 = vmatprep.subr.mxu0 0.0
    %1135 = vmatpush2.msra.mxu0 0.0
    %1136 = vmatprep.subr.mxu0 0.0
    %1137 = vmatpush2.msra.mxu0 0.0
    %1138 = vmatprep.subr.mxu0 0.0
    %1139 = vmatpush2.msra.mxu0 0.0
    %1140 = vmatprep.subr.mxu0 0.0
    %1141 = vmatpush2.msra.mxu0 0.0
    %1142 = vmatprep.subr.mxu0 0.0
    %1143 = vmatpush2.msra.mxu0 0.0
    %1144 = vmatprep.subr.mxu0 0.0
    %1145 = vmatpush2.msra.mxu0 0.0
    %1146 = vmatprep.subr.mxu0 0.0
    %1147 = vmatpush2.msra.mxu0 0.0
    %1148 = vmatprep.subr.mxu0 0.0
    %1149 = vmatpush2.msra.mxu0 0.0
    %1150 = vmatprep.subr.mxu0 0.0
    %1151 = vmatpush2.msra.mxu0 0.0
    %1152 = vmatprep.mubr.f32.mxu0 0.0
    %1153 = vmatmul.mubr.f32.gmra.mxu0 %v1071
    %v1154 = vpop.f32.mrf.mxu0
    %v1155 = vadd.f32 0.0, %v1154
    %v1156 = vpop.f32.mrf.mxu0
    %1157 = vdwg.mxu0
    %v1158 = vrot.slane %v1155, 4
    %v1159 = vadd.f32 %v1155, %v1158
    %v1160 = vrot.slane %v1159, 2
    %v1161 = vadd.f32 %v1159, %v1160
    %v1162 = vrot.slane %v1161, 1
    %v1163 = vadd.f32 %v1161, %v1162
    %v1164 = vmul.f32 %v1155, %v1155
    %v1165 = vrot.slane %v1164, 4
    %v1166 = vadd.f32 %v1164, %v1165
    %v1167 = vrot.slane %v1166, 2
    %v1168 = vadd.f32 %v1166, %v1167
    %v1169 = vrot.slane %v1168, 1
    %v1170 = vadd.f32 %v1168, %v1169
    %v1171 = vmul.f32 %v1163, 0.125
    %v1172 = vmul.f32 %v1170, 0.125
    %v1173 = vmul.f32 %v1171, %v1171
    %v1174 = vsub.f32 %v1172, %v1173
    %v1175 = vmax.f32 %v1174, 0.0
    %v1176 = vld [vmem:[#allocation7 + $0x12] sm:$0x1]
    %v1177 = vadd.f32 %v1175, 1e-05
    %v1178 = vrsqrt.pop %v1177
    %v1179 = vmul.f32 %v1176, %v1178
    %v1180 = vld [vmem:[#allocation7 + $0x13] sm:$0x1]
    %v1181 = vmul.f32 %v1171, %v1179
    %v1182 = vsub.f32 %v1180, %v1181
    %v1183 = vlaneseq
    %v1184 = vshrl.u32 %v1183, 7
    %v1185 = vsub.s32 0, %v1184
    %v1186 = vrot.slane %v1179, %v1185
    %v1187 = vmul.f32 %v1155, %v1186
    %v1188 = vlaneseq
    %v1189 = vshrl.u32 %v1188, 7
    %v1190 = vsub.s32 0, %v1189
    %v1191 = vrot.slane %v1182, %v1190
    %v1192 = vadd.f32 %v1187, %v1191
    %v1193 = vmax.f32 %v1192, 0.0
    %v1194 = vld [vmem:[#allocation5 + $0x60] sm:$0xff]
    %v1195 = vld [vmem:[#allocation5 + $0x110] sm:$0xff]
    %v1196 = vld [vmem:[#allocation5 + $0x1c0] sm:$0xff]
    %v1197 = vld [vmem:[#allocation5 + $0x270] sm:$0xff]
    %v1198 = vld [vmem:[#allocation5 + $0x320] sm:$0xff]
    %v1199 = vld [vmem:[#allocation5 + $0x3d0] sm:$0xff]
    %v1200 = vld [vmem:[#allocation5 + $0x480] sm:$0xff]
    %v1201 = vld [vmem:[#allocation5 + $0x530] sm:$0xff]
    %v1202 = vld [vmem:[#allocation5 + $0x5e0] sm:$0xff]
    %v1203 = vld [vmem:[#allocation5 + $0x690] sm:$0xff]
    %v1204 = vld [vmem:[#allocation5 + $0x740] sm:$0xff]
    %v1205 = vld [vmem:[#allocation5 + $0x7f0] sm:$0xff]
    %v1206 = vld [vmem:[#allocation5 + $0x8a0] sm:$0xff]
    %v1207 = vld [vmem:[#allocation5 + $0x950] sm:$0xff]
    %v1208 = vld [vmem:[#allocation5 + $0xa00] sm:$0xff]
    %v1209 = vld [vmem:[#allocation5 + $0xab0] sm:$0xff]
    %1210 = vmatprep.subr.mxu0 0.0
    %1211 = vmatpush1.msra.mxu0 %v1209
    %1212 = vmatprep.subr.mxu0 0.0
    %1213 = vmatpush1.msra.mxu0 %v1208
    %1214 = vmatprep.subr.mxu0 0.0
    %1215 = vmatpush1.msra.mxu0 %v1207
    %1216 = vmatprep.subr.mxu0 0.0
    %1217 = vmatpush1.msra.mxu0 %v1206
    %1218 = vmatprep.subr.mxu0 0.0
    %1219 = vmatpush1.msra.mxu0 %v1205
    %1220 = vmatprep.subr.mxu0 0.0
    %1221 = vmatpush1.msra.mxu0 %v1204
    %1222 = vmatprep.subr.mxu0 0.0
    %1223 = vmatpush1.msra.mxu0 %v1203
    %1224 = vmatprep.subr.mxu0 0.0
    %1225 = vmatpush1.msra.mxu0 %v1202
    %1226 = vmatprep.subr.mxu0 0.0
    %1227 = vmatpush1.msra.mxu0 %v1201
    %1228 = vmatprep.subr.mxu0 0.0
    %1229 = vmatpush1.msra.mxu0 %v1200
    %1230 = vmatprep.subr.mxu0 0.0
    %1231 = vmatpush1.msra.mxu0 %v1199
    %1232 = vmatprep.subr.mxu0 0.0
    %1233 = vmatpush1.msra.mxu0 %v1198
    %1234 = vmatprep.subr.mxu0 0.0
    %1235 = vmatpush1.msra.mxu0 %v1197
    %1236 = vmatprep.subr.mxu0 0.0
    %1237 = vmatpush1.msra.mxu0 %v1196
    %1238 = vmatprep.subr.mxu0 0.0
    %1239 = vmatpush1.msra.mxu0 %v1195
    %1240 = vmatprep.subr.mxu0 0.0
    %1241 = vmatpush1.msra.mxu0 %v1194
    %1242 = vmatprep.subr.mxu0 0.0
    %1243 = vmatpush2.msra.mxu0 0.0
    %1244 = vmatprep.subr.mxu0 0.0
    %1245 = vmatpush2.msra.mxu0 0.0
    %1246 = vmatprep.subr.mxu0 0.0
    %1247 = vmatpush2.msra.mxu0 0.0
    %1248 = vmatprep.subr.mxu0 0.0
    %1249 = vmatpush2.msra.mxu0 0.0
    %1250 = vmatprep.subr.mxu0 0.0
    %1251 = vmatpush2.msra.mxu0 0.0
    %1252 = vmatprep.subr.mxu0 0.0
    %1253 = vmatpush2.msra.mxu0 0.0
    %1254 = vmatprep.subr.mxu0 0.0
    %1255 = vmatpush2.msra.mxu0 0.0
    %1256 = vmatprep.subr.mxu0 0.0
    %1257 = vmatpush2.msra.mxu0 0.0
    %1258 = vmatprep.subr.mxu0 0.0
    %1259 = vmatpush2.msra.mxu0 0.0
    %1260 = vmatprep.subr.mxu0 0.0
    %1261 = vmatpush2.msra.mxu0 0.0
    %1262 = vmatprep.subr.mxu0 0.0
    %1263 = vmatpush2.msra.mxu0 0.0
    %1264 = vmatprep.subr.mxu0 0.0
    %1265 = vmatpush2.msra.mxu0 0.0
    %1266 = vmatprep.subr.mxu0 0.0
    %1267 = vmatpush2.msra.mxu0 0.0
    %1268 = vmatprep.subr.mxu0 0.0
    %1269 = vmatpush2.msra.mxu0 0.0
    %1270 = vmatprep.subr.mxu0 0.0
    %1271 = vmatpush2.msra.mxu0 0.0
    %1272 = vmatprep.subr.mxu0 0.0
    %1273 = vmatpush2.msra.mxu0 0.0
    %1274 = vmatprep.mubr.f32.mxu0 0.0
    %1275 = vmatmul.mubr.f32.gmra.mxu0 %v1193
    %v1276 = vpop.f32.mrf.mxu0
    %v1277 = vadd.f32 0.0, %v1276
    %v1278 = vpop.f32.mrf.mxu0
    %1279 = vdwg.mxu0
    %v1280 = vrot.slane %v1277, 4
    %v1281 = vadd.f32 %v1277, %v1280
    %v1282 = vrot.slane %v1281, 2
    %v1283 = vadd.f32 %v1281, %v1282
    %v1284 = vrot.slane %v1283, 1
    %v1285 = vadd.f32 %v1283, %v1284
    %v1286 = vmul.f32 %v1277, %v1277
    %v1287 = vrot.slane %v1286, 4
    %v1288 = vadd.f32 %v1286, %v1287
    %v1289 = vrot.slane %v1288, 2
    %v1290 = vadd.f32 %v1288, %v1289
    %v1291 = vrot.slane %v1290, 1
    %v1292 = vadd.f32 %v1290, %v1291
    %v1293 = vmul.f32 %v1285, 0.125
    %v1294 = vmul.f32 %v1292, 0.125
    %v1295 = vmul.f32 %v1293, %v1293
    %v1296 = vsub.f32 %v1294, %v1295
    %v1297 = vmax.f32 %v1296, 0.0
    %v1298 = vld [vmem:[#allocation7 + $0x14] sm:$0x1]
    %v1299 = vadd.f32 %v1297, 1e-05
    %v1300 = vrsqrt.pop %v1299
    %v1301 = vmul.f32 %v1298, %v1300
    %v1302 = vld [vmem:[#allocation7 + $0x15] sm:$0x1]
    %v1303 = vmul.f32 %v1293, %v1301
    %v1304 = vsub.f32 %v1302, %v1303
    %v1305 = vlaneseq
    %v1306 = vshrl.u32 %v1305, 7
    %v1307 = vsub.s32 0, %v1306
    %v1308 = vrot.slane %v1301, %v1307
    %v1309 = vmul.f32 %v1277, %v1308
    %v1310 = vlaneseq
    %v1311 = vshrl.u32 %v1310, 7
    %v1312 = vsub.s32 0, %v1311
    %v1313 = vrot.slane %v1304, %v1312
    %v1314 = vadd.f32 %v1309, %v1313
    %v1315 = vadd.f32 %v1314, %v1035
    %v1316 = vmax.f32 %v1315, 0.0
    %v1317 = vld [vmem:[#allocation5 + $0x68] sm:$0xff]
    %v1318 = vld [vmem:[#allocation5 + $0x70] sm:$0xff]
    %v1319 = vld [vmem:[#allocation5 + $0x118] sm:$0xff]
    %v1320 = vld [vmem:[#allocation5 + $0x120] sm:$0xff]
    %v1321 = vld [vmem:[#allocation5 + $0x1c8] sm:$0xff]
    %v1322 = vld [vmem:[#allocation5 + $0x1d0] sm:$0xff]
    %v1323 = vld [vmem:[#allocation5 + $0x278] sm:$0xff]
    %v1324 = vld [vmem:[#allocation5 + $0x280] sm:$0xff]
    %v1325 = vld [vmem:[#allocation5 + $0x328] sm:$0xff]
    %v1326 = vld [vmem:[#allocation5 + $0x330] sm:$0xff]
    %v1327 = vld [vmem:[#allocation5 + $0x3d8] sm:$0xff]
    %v1328 = vld [vmem:[#allocation5 + $0x3e0] sm:$0xff]
    %v1329 = vld [vmem:[#allocation5 + $0x488] sm:$0xff]
    %v1330 = vld [vmem:[#allocation5 + $0x490] sm:$0xff]
    %v1331 = vld [vmem:[#allocation5 + $0x538] sm:$0xff]
    %v1332 = vld [vmem:[#allocation5 + $0x540] sm:$0xff]
    %v1333 = vld [vmem:[#allocation5 + $0x5e8] sm:$0xff]
    %v1334 = vld [vmem:[#allocation5 + $0x5f0] sm:$0xff]
    %v1335 = vld [vmem:[#allocation5 + $0x698] sm:$0xff]
    %v1336 = vld [vmem:[#allocation5 + $0x6a0] sm:$0xff]
    %v1337 = vld [vmem:[#allocation5 + $0x748] sm:$0xff]
    %v1338 = vld [vmem:[#allocation5 + $0x750] sm:$0xff]
    %v1339 = vld [vmem:[#allocation5 + $0x7f8] sm:$0xff]
    %v1340 = vld [vmem:[#allocation5 + $0x800] sm:$0xff]
    %v1341 = vld [vmem:[#allocation5 + $0x8a8] sm:$0xff]
    %v1342 = vld [vmem:[#allocation5 + $0x8b0] sm:$0xff]
    %v1343 = vld [vmem:[#allocation5 + $0x958] sm:$0xff]
    %v1344 = vld [vmem:[#allocation5 + $0x960] sm:$0xff]
    %v1345 = vld [vmem:[#allocation5 + $0xa08] sm:$0xff]
    %v1346 = vld [vmem:[#allocation5 + $0xa10] sm:$0xff]
    %v1347 = vld [vmem:[#allocation5 + $0xab8] sm:$0xff]
    %v1348 = vld [vmem:[#allocation5 + $0xac0] sm:$0xff]
    %1349 = vmatprep.subr.mxu0 %v1348
    %1350 = vmatpush1.msra.mxu0 %v1347
    %1351 = vmatprep.subr.mxu0 %v1346
    %1352 = vmatpush1.msra.mxu0 %v1345
    %1353 = vmatprep.subr.mxu0 %v1344
    %1354 = vmatpush1.msra.mxu0 %v1343
    %1355 = vmatprep.subr.mxu0 %v1342
    %1356 = vmatpush1.msra.mxu0 %v1341
    %1357 = vmatprep.subr.mxu0 %v1340
    %1358 = vmatpush1.msra.mxu0 %v1339
    %1359 = vmatprep.subr.mxu0 %v1338
    %1360 = vmatpush1.msra.mxu0 %v1337
    %1361 = vmatprep.subr.mxu0 %v1336
    %1362 = vmatpush1.msra.mxu0 %v1335
    %1363 = vmatprep.subr.mxu0 %v1334
    %1364 = vmatpush1.msra.mxu0 %v1333
    %1365 = vmatprep.subr.mxu0 %v1332
    %1366 = vmatpush1.msra.mxu0 %v1331
    %1367 = vmatprep.subr.mxu0 %v1330
    %1368 = vmatpush1.msra.mxu0 %v1329
    %1369 = vmatprep.subr.mxu0 %v1328
    %1370 = vmatpush1.msra.mxu0 %v1327
    %1371 = vmatprep.subr.mxu0 %v1326
    %1372 = vmatpush1.msra.mxu0 %v1325
    %1373 = vmatprep.subr.mxu0 %v1324
    %1374 = vmatpush1.msra.mxu0 %v1323
    %1375 = vmatprep.subr.mxu0 %v1322
    %1376 = vmatpush1.msra.mxu0 %v1321
    %1377 = vmatprep.subr.mxu0 %v1320
    %1378 = vmatpush1.msra.mxu0 %v1319
    %1379 = vmatprep.subr.mxu0 %v1318
    %1380 = vmatpush1.msra.mxu0 %v1317
    %1381 = vmatprep.subr.mxu0 0.0
    %1382 = vmatpush2.msra.mxu0 0.0
    %1383 = vmatprep.subr.mxu0 0.0
    %1384 = vmatpush2.msra.mxu0 0.0
    %1385 = vmatprep.subr.mxu0 0.0
    %1386 = vmatpush2.msra.mxu0 0.0
    %1387 = vmatprep.subr.mxu0 0.0
    %1388 = vmatpush2.msra.mxu0 0.0
    %1389 = vmatprep.subr.mxu0 0.0
    %1390 = vmatpush2.msra.mxu0 0.0
    %1391 = vmatprep.subr.mxu0 0.0
    %1392 = vmatpush2.msra.mxu0 0.0
    %1393 = vmatprep.subr.mxu0 0.0
    %1394 = vmatpush2.msra.mxu0 0.0
    %1395 = vmatprep.subr.mxu0 0.0
    %1396 = vmatpush2.msra.mxu0 0.0
    %1397 = vmatprep.subr.mxu0 0.0
    %1398 = vmatpush2.msra.mxu0 0.0
    %1399 = vmatprep.subr.mxu0 0.0
    %1400 = vmatpush2.msra.mxu0 0.0
    %1401 = vmatprep.subr.mxu0 0.0
    %1402 = vmatpush2.msra.mxu0 0.0
    %1403 = vmatprep.subr.mxu0 0.0
    %1404 = vmatpush2.msra.mxu0 0.0
    %1405 = vmatprep.subr.mxu0 0.0
    %1406 = vmatpush2.msra.mxu0 0.0
    %1407 = vmatprep.subr.mxu0 0.0
    %1408 = vmatpush2.msra.mxu0 0.0
    %1409 = vmatprep.subr.mxu0 0.0
    %1410 = vmatpush2.msra.mxu0 0.0
    %1411 = vmatprep.subr.mxu0 0.0
    %1412 = vmatpush2.msra.mxu0 0.0
    %1413 = vmatprep.mubr.f32.mxu0 0.0
    %1414 = vmatmul.mubr.f32.gmra.mxu0 %v1316
    %v1415 = vpop.f32.mrf.mxu0
    %v1416 = vadd.f32 0.0, %v1415
    %v1417 = vpop.f32.mrf.mxu0
    %v1418 = vadd.f32 0.0, %v1417
    %1419 = vdwg.mxu0
    %v1420 = vld [vmem:[#allocation7 + $0x16] sm:$0x1]
    %v1421 = vlaneseq
    %v1422 = vshrl.u32 %v1421, 7
    %v1423 = vsub.s32 0, %v1422
    %v1424 = vrot.slane %v1420, %v1423
    %v1425 = vadd.f32 %v1416, %v1424
    %v1426 = vrot.slane %v1418, 4
    %v1427 = vadd.f32 %v1418, %v1426
    %v1428 = vrot.slane %v1427, 2
    %v1429 = vadd.f32 %v1427, %v1428
    %v1430 = vrot.slane %v1429, 1
    %v1431 = vadd.f32 %v1429, %v1430
    %v1432 = vmul.f32 %v1418, %v1418
    %v1433 = vrot.slane %v1432, 4
    %v1434 = vadd.f32 %v1432, %v1433
    %v1435 = vrot.slane %v1434, 2
    %v1436 = vadd.f32 %v1434, %v1435
    %v1437 = vrot.slane %v1436, 1
    %v1438 = vadd.f32 %v1436, %v1437
    %v1439 = vmul.f32 %v1431, 0.125
    %v1440 = vmul.f32 %v1438, 0.125
    %v1441 = vmul.f32 %v1439, %v1439
    %v1442 = vsub.f32 %v1440, %v1441
    %v1443 = vmax.f32 %v1442, 0.0
    %v1444 = vld [vmem:[#allocation7 + $0x17] sm:$0x1]
    %v1445 = vadd.f32 %v1443, 1e-05
    %v1446 = vrsqrt.pop %v1445
    %v1447 = vmul.f32 %v1444, %v1446
    %v1448 = vld [vmem:[#allocation7 + $0x18] sm:$0x1]
    %v1449 = vmul.f32 %v1439, %v1447
    %v1450 = vsub.f32 %v1448, %v1449
    %v1451 = vlaneseq
    %v1452 = vshrl.u32 %v1451, 7
    %v1453 = vsub.s32 0, %v1452
    %v1454 = vrot.slane %v1447, %v1453
    %v1455 = vmul.f32 %v1418, %v1454
    %v1456 = vlaneseq
    %v1457 = vshrl.u32 %v1456, 7
    %v1458 = vsub.s32 0, %v1457
    %v1459 = vrot.slane %v1450, %v1458
    %v1460 = vadd.f32 %v1455, %v1459
    %v1461 = vmax.f32 %v1460, 0.0
    %v1462 = vld [vmem:[#allocation5 + $0x78] sm:$0xff]
    %v1463 = vld [vmem:[#allocation5 + $0x128] sm:$0xff]
    %v1464 = vld [vmem:[#allocation5 + $0x1d8] sm:$0xff]
    %v1465 = vld [vmem:[#allocation5 + $0x288] sm:$0xff]
    %v1466 = vld [vmem:[#allocation5 + $0x338] sm:$0xff]
    %v1467 = vld [vmem:[#allocation5 + $0x3e8] sm:$0xff]
    %v1468 = vld [vmem:[#allocation5 + $0x498] sm:$0xff]
    %v1469 = vld [vmem:[#allocation5 + $0x548] sm:$0xff]
    %v1470 = vld [vmem:[#allocation5 + $0x5f8] sm:$0xff]
    %v1471 = vld [vmem:[#allocation5 + $0x6a8] sm:$0xff]
    %v1472 = vld [vmem:[#allocation5 + $0x758] sm:$0xff]
    %v1473 = vld [vmem:[#allocation5 + $0x808] sm:$0xff]
    %v1474 = vld [vmem:[#allocation5 + $0x8b8] sm:$0xff]
    %v1475 = vld [vmem:[#allocation5 + $0x968] sm:$0xff]
    %v1476 = vld [vmem:[#allocation5 + $0xa18] sm:$0xff]
    %v1477 = vld [vmem:[#allocation5 + $0xac8] sm:$0xff]
    %1478 = vmatprep.subr.mxu0 0.0
    %1479 = vmatpush1.msra.mxu0 %v1477
    %1480 = vmatprep.subr.mxu0 0.0
    %1481 = vmatpush1.msra.mxu0 %v1476
    %1482 = vmatprep.subr.mxu0 0.0
    %1483 = vmatpush1.msra.mxu0 %v1475
    %1484 = vmatprep.subr.mxu0 0.0
    %1485 = vmatpush1.msra.mxu0 %v1474
    %1486 = vmatprep.subr.mxu0 0.0
    %1487 = vmatpush1.msra.mxu0 %v1473
    %1488 = vmatprep.subr.mxu0 0.0
    %1489 = vmatpush1.msra.mxu0 %v1472
    %1490 = vmatprep.subr.mxu0 0.0
    %1491 = vmatpush1.msra.mxu0 %v1471
    %1492 = vmatprep.subr.mxu0 0.0
    %1493 = vmatpush1.msra.mxu0 %v1470
    %1494 = vmatprep.subr.mxu0 0.0
    %1495 = vmatpush1.msra.mxu0 %v1469
    %1496 = vmatprep.subr.mxu0 0.0
    %1497 = vmatpush1.msra.mxu0 %v1468
    %1498 = vmatprep.subr.mxu0 0.0
    %1499 = vmatpush1.msra.mxu0 %v1467
    %1500 = vmatprep.subr.mxu0 0.0
    %1501 = vmatpush1.msra.mxu0 %v1466
    %1502 = vmatprep.subr.mxu0 0.0
    %1503 = vmatpush1.msra.mxu0 %v1465
    %1504 = vmatprep.subr.mxu0 0.0
    %1505 = vmatpush1.msra.mxu0 %v1464
    %1506 = vmatprep.subr.mxu0 0.0
    %1507 = vmatpush1.msra.mxu0 %v1463
    %1508 = vmatprep.subr.mxu0 0.0
    %1509 = vmatpush1.msra.mxu0 %v1462
    %1510 = vmatprep.subr.mxu0 0.0
    %1511 = vmatpush2.msra.mxu0 0.0
    %1512 = vmatprep.subr.mxu0 0.0
    %1513 = vmatpush2.msra.mxu0 0.0
    %1514 = vmatprep.subr.mxu0 0.0
    %1515 = vmatpush2.msra.mxu0 0.0
    %1516 = vmatprep.subr.mxu0 0.0
    %1517 = vmatpush2.msra.mxu0 0.0
    %1518 = vmatprep.subr.mxu0 0.0
    %1519 = vmatpush2.msra.mxu0 0.0
    %1520 = vmatprep.subr.mxu0 0.0
    %1521 = vmatpush2.msra.mxu0 0.0
    %1522 = vmatprep.subr.mxu0 0.0
    %1523 = vmatpush2.msra.mxu0 0.0
    %1524 = vmatprep.subr.mxu0 0.0
    %1525 = vmatpush2.msra.mxu0 0.0
    %1526 = vmatprep.subr.mxu0 0.0
    %1527 = vmatpush2.msra.mxu0 0.0
    %1528 = vmatprep.subr.mxu0 0.0
    %1529 = vmatpush2.msra.mxu0 0.0
    %1530 = vmatprep.subr.mxu0 0.0
    %1531 = vmatpush2.msra.mxu0 0.0
    %1532 = vmatprep.subr.mxu0 0.0
    %1533 = vmatpush2.msra.mxu0 0.0
    %1534 = vmatprep.subr.mxu0 0.0
    %1535 = vmatpush2.msra.mxu0 0.0
    %1536 = vmatprep.subr.mxu0 0.0
    %1537 = vmatpush2.msra.mxu0 0.0
    %1538 = vmatprep.subr.mxu0 0.0
    %1539 = vmatpush2.msra.mxu0 0.0
    %1540 = vmatprep.subr.mxu0 0.0
    %1541 = vmatpush2.msra.mxu0 0.0
    %1542 = vmatprep.mubr.f32.mxu0 0.0
    %1543 = vmatmul.mubr.f32.gmra.mxu0 %v1461
    %v1544 = vpop.f32.mrf.mxu0
    %v1545 = vadd.f32 0.0, %v1544
    %v1546 = vpop.f32.mrf.mxu0
    %1547 = vdwg.mxu0
    %v1548 = vrot.slane %v1545, 4
    %v1549 = vadd.f32 %v1545, %v1548
    %v1550 = vrot.slane %v1549, 2
    %v1551 = vadd.f32 %v1549, %v1550
    %v1552 = vrot.slane %v1551, 1
    %v1553 = vadd.f32 %v1551, %v1552
    %v1554 = vmul.f32 %v1545, %v1545
    %v1555 = vrot.slane %v1554, 4
    %v1556 = vadd.f32 %v1554, %v1555
    %v1557 = vrot.slane %v1556, 2
    %v1558 = vadd.f32 %v1556, %v1557
    %v1559 = vrot.slane %v1558, 1
    %v1560 = vadd.f32 %v1558, %v1559
    %v1561 = vmul.f32 %v1553, 0.125
    %v1562 = vmul.f32 %v1560, 0.125
    %v1563 = vmul.f32 %v1561, %v1561
    %v1564 = vsub.f32 %v1562, %v1563
    %v1565 = vmax.f32 %v1564, 0.0
    %v1566 = vld [vmem:[#allocation7 + $0x19] sm:$0x1]
    %v1567 = vadd.f32 %v1565, 1e-05
    %v1568 = vrsqrt.pop %v1567
    %v1569 = vmul.f32 %v1566, %v1568
    %v1570 = vld [vmem:[#allocation7 + $0x1a] sm:$0x1]
    %v1571 = vmul.f32 %v1561, %v1569
    %v1572 = vsub.f32 %v1570, %v1571
    %v1573 = vlaneseq
    %v1574 = vshrl.u32 %v1573, 7
    %v1575 = vsub.s32 0, %v1574
    %v1576 = vrot.slane %v1569, %v1575
    %v1577 = vmul.f32 %v1545, %v1576
    %v1578 = vlaneseq
    %v1579 = vshrl.u32 %v1578, 7
    %v1580 = vsub.s32 0, %v1579
    %v1581 = vrot.slane %v1572, %v1580
    %v1582 = vadd.f32 %v1577, %v1581
    %v1583 = vmax.f32 %v1582, 0.0
    %v1584 = vld [vmem:[#allocation5 + $0x80] sm:$0xff]
    %v1585 = vld [vmem:[#allocation5 + $0x130] sm:$0xff]
    %v1586 = vld [vmem:[#allocation5 + $0x1e0] sm:$0xff]
    %v1587 = vld [vmem:[#allocation5 + $0x290] sm:$0xff]
    %v1588 = vld [vmem:[#allocation5 + $0x340] sm:$0xff]
    %v1589 = vld [vmem:[#allocation5 + $0x3f0] sm:$0xff]
    %v1590 = vld [vmem:[#allocation5 + $0x4a0] sm:$0xff]
    %v1591 = vld [vmem:[#allocation5 + $0x550] sm:$0xff]
    %v1592 = vld [vmem:[#allocation5 + $0x600] sm:$0xff]
    %v1593 = vld [vmem:[#allocation5 + $0x6b0] sm:$0xff]
    %v1594 = vld [vmem:[#allocation5 + $0x760] sm:$0xff]
    %v1595 = vld [vmem:[#allocation5 + $0x810] sm:$0xff]
    %v1596 = vld [vmem:[#allocation5 + $0x8c0] sm:$0xff]
    %v1597 = vld [vmem:[#allocation5 + $0x970] sm:$0xff]
    %v1598 = vld [vmem:[#allocation5 + $0xa20] sm:$0xff]
    %v1599 = vld [vmem:[#allocation5 + $0xad0] sm:$0xff]
    %1600 = vmatprep.subr.mxu0 0.0
    %1601 = vmatpush1.msra.mxu0 %v1599
    %1602 = vmatprep.subr.mxu0 0.0
    %1603 = vmatpush1.msra.mxu0 %v1598
    %1604 = vmatprep.subr.mxu0 0.0
    %1605 = vmatpush1.msra.mxu0 %v1597
    %1606 = vmatprep.subr.mxu0 0.0
    %1607 = vmatpush1.msra.mxu0 %v1596
    %1608 = vmatprep.subr.mxu0 0.0
    %1609 = vmatpush1.msra.mxu0 %v1595
    %1610 = vmatprep.subr.mxu0 0.0
    %1611 = vmatpush1.msra.mxu0 %v1594
    %1612 = vmatprep.subr.mxu0 0.0
    %1613 = vmatpush1.msra.mxu0 %v1593
    %1614 = vmatprep.subr.mxu0 0.0
    %1615 = vmatpush1.msra.mxu0 %v1592
    %1616 = vmatprep.subr.mxu0 0.0
    %1617 = vmatpush1.msra.mxu0 %v1591
    %1618 = vmatprep.subr.mxu0 0.0
    %1619 = vmatpush1.msra.mxu0 %v1590
    %1620 = vmatprep.subr.mxu0 0.0
    %1621 = vmatpush1.msra.mxu0 %v1589
    %1622 = vmatprep.subr.mxu0 0.0
    %1623 = vmatpush1.msra.mxu0 %v1588
    %1624 = vmatprep.subr.mxu0 0.0
    %1625 = vmatpush1.msra.mxu0 %v1587
    %1626 = vmatprep.subr.mxu0 0.0
    %1627 = vmatpush1.msra.mxu0 %v1586
    %1628 = vmatprep.subr.mxu0 0.0
    %1629 = vmatpush1.msra.mxu0 %v1585
    %1630 = vmatprep.subr.mxu0 0.0
    %1631 = vmatpush1.msra.mxu0 %v1584
    %1632 = vmatprep.subr.mxu0 0.0
    %1633 = vmatpush2.msra.mxu0 0.0
    %1634 = vmatprep.subr.mxu0 0.0
    %1635 = vmatpush2.msra.mxu0 0.0
    %1636 = vmatprep.subr.mxu0 0.0
    %1637 = vmatpush2.msra.mxu0 0.0
    %1638 = vmatprep.subr.mxu0 0.0
    %1639 = vmatpush2.msra.mxu0 0.0
    %1640 = vmatprep.subr.mxu0 0.0
    %1641 = vmatpush2.msra.mxu0 0.0
    %1642 = vmatprep.subr.mxu0 0.0
    %1643 = vmatpush2.msra.mxu0 0.0
    %1644 = vmatprep.subr.mxu0 0.0
    %1645 = vmatpush2.msra.mxu0 0.0
    %1646 = vmatprep.subr.mxu0 0.0
    %1647 = vmatpush2.msra.mxu0 0.0
    %1648 = vmatprep.subr.mxu0 0.0
    %1649 = vmatpush2.msra.mxu0 0.0
    %1650 = vmatprep.subr.mxu0 0.0
    %1651 = vmatpush2.msra.mxu0 0.0
    %1652 = vmatprep.subr.mxu0 0.0
    %1653 = vmatpush2.msra.mxu0 0.0
    %1654 = vmatprep.subr.mxu0 0.0
    %1655 = vmatpush2.msra.mxu0 0.0
    %1656 = vmatprep.subr.mxu0 0.0
    %1657 = vmatpush2.msra.mxu0 0.0
    %1658 = vmatprep.subr.mxu0 0.0
    %1659 = vmatpush2.msra.mxu0 0.0
    %1660 = vmatprep.subr.mxu0 0.0
    %1661 = vmatpush2.msra.mxu0 0.0
    %1662 = vmatprep.subr.mxu0 0.0
    %1663 = vmatpush2.msra.mxu0 0.0
    %1664 = vmatprep.mubr.f32.mxu0 0.0
    %1665 = vmatmul.mubr.f32.gmra.mxu0 %v1583
    %v1666 = vpop.f32.mrf.mxu0
    %v1667 = vadd.f32 0.0, %v1666
    %v1668 = vpop.f32.mrf.mxu0
    %1669 = vdwg.mxu0
    %v1670 = vrot.slane %v1667, 4
    %v1671 = vadd.f32 %v1667, %v1670
    %v1672 = vrot.slane %v1671, 2
    %v1673 = vadd.f32 %v1671, %v1672
    %v1674 = vrot.slane %v1673, 1
    %v1675 = vadd.f32 %v1673, %v1674
    %v1676 = vmul.f32 %v1667, %v1667
    %v1677 = vrot.slane %v1676, 4
    %v1678 = vadd.f32 %v1676, %v1677
    %v1679 = vrot.slane %v1678, 2
    %v1680 = vadd.f32 %v1678, %v1679
    %v1681 = vrot.slane %v1680, 1
    %v1682 = vadd.f32 %v1680, %v1681
    %v1683 = vmul.f32 %v1675, 0.125
    %v1684 = vmul.f32 %v1682, 0.125
    %v1685 = vmul.f32 %v1683, %v1683
    %v1686 = vsub.f32 %v1684, %v1685
    %v1687 = vmax.f32 %v1686, 0.0
    %v1688 = vld [vmem:[#allocation7 + $0x1b] sm:$0x1]
    %v1689 = vadd.f32 %v1687, 1e-05
    %v1690 = vrsqrt.pop %v1689
    %v1691 = vmul.f32 %v1688, %v1690
    %v1692 = vld [vmem:[#allocation7 + $0x1c] sm:$0x1]
    %v1693 = vmul.f32 %v1683, %v1691
    %v1694 = vsub.f32 %v1692, %v1693
    %v1695 = vlaneseq
    %v1696 = vshrl.u32 %v1695, 7
    %v1697 = vsub.s32 0, %v1696
    %v1698 = vrot.slane %v1691, %v1697
    %v1699 = vmul.f32 %v1667, %v1698
    %v1700 = vlaneseq
    %v1701 = vshrl.u32 %v1700, 7
    %v1702 = vsub.s32 0, %v1701
    %v1703 = vrot.slane %v1694, %v1702
    %v1704 = vadd.f32 %v1699, %v1703
    %v1705 = vadd.f32 %v1704, %v1425
    %v1706 = vmax.f32 %v1705, 0.0
    %v1707 = vld [vmem:[#allocation5 + $0x88] sm:$0xff]
    %v1708 = vld [vmem:[#allocation5 + $0x90] sm:$0xff]
    %v1709 = vld [vmem:[#allocation5 + $0x138] sm:$0xff]
    %v1710 = vld [vmem:[#allocation5 + $0x140] sm:$0xff]
    %v1711 = vld [vmem:[#allocation5 + $0x1e8] sm:$0xff]
    %v1712 = vld [vmem:[#allocation5 + $0x1f0] sm:$0xff]
    %v1713 = vld [vmem:[#allocation5 + $0x298] sm:$0xff]
    %v1714 = vld [vmem:[#allocation5 + $0x2a0] sm:$0xff]
    %v1715 = vld [vmem:[#allocation5 + $0x348] sm:$0xff]
    %v1716 = vld [vmem:[#allocation5 + $0x350] sm:$0xff]
    %v1717 = vld [vmem:[#allocation5 + $0x3f8] sm:$0xff]
    %v1718 = vld [vmem:[#allocation5 + $0x400] sm:$0xff]
    %v1719 = vld [vmem:[#allocation5 + $0x4a8] sm:$0xff]
    %v1720 = vld [vmem:[#allocation5 + $0x4b0] sm:$0xff]
    %v1721 = vld [vmem:[#allocation5 + $0x558] sm:$0xff]
    %v1722 = vld [vmem:[#allocation5 + $0x560] sm:$0xff]
    %v1723 = vld [vmem:[#allocation5 + $0x608] sm:$0xff]
    %v1724 = vld [vmem:[#allocation5 + $0x610] sm:$0xff]
    %v1725 = vld [vmem:[#allocation5 + $0x6b8] sm:$0xff]
    %v1726 = vld [vmem:[#allocation5 + $0x6c0] sm:$0xff]
    %v1727 = vld [vmem:[#allocation5 + $0x768] sm:$0xff]
    %v1728 = vld [vmem:[#allocation5 + $0x770] sm:$0xff]
    %v1729 = vld [vmem:[#allocation5 + $0x818] sm:$0xff]
    %v1730 = vld [vmem:[#allocation5 + $0x820] sm:$0xff]
    %v1731 = vld [vmem:[#allocation5 + $0x8c8] sm:$0xff]
    %v1732 = vld [vmem:[#allocation5 + $0x8d0] sm:$0xff]
    %v1733 = vld [vmem:[#allocation5 + $0x978] sm:$0xff]
    %v1734 = vld [vmem:[#allocation5 + $0x980] sm:$0xff]
    %v1735 = vld [vmem:[#allocation5 + $0xa28] sm:$0xff]
    %v1736 = vld [vmem:[#allocation5 + $0xa30] sm:$0xff]
    %v1737 = vld [vmem:[#allocation5 + $0xad8] sm:$0xff]
    %v1738 = vld [vmem:[#allocation5 + $0xae0] sm:$0xff]
    %1739 = vmatprep.subr.mxu0 %v1738
    %1740 = vmatpush1.msra.mxu0 %v1737
    %1741 = vmatprep.subr.mxu0 %v1736
    %1742 = vmatpush1.msra.mxu0 %v1735
    %1743 = vmatprep.subr.mxu0 %v1734
    %1744 = vmatpush1.msra.mxu0 %v1733
    %1745 = vmatprep.subr.mxu0 %v1732
    %1746 = vmatpush1.msra.mxu0 %v1731
    %1747 = vmatprep.subr.mxu0 %v1730
    %1748 = vmatpush1.msra.mxu0 %v1729
    %1749 = vmatprep.subr.mxu0 %v1728
    %1750 = vmatpush1.msra.mxu0 %v1727
    %1751 = vmatprep.subr.mxu0 %v1726
    %1752 = vmatpush1.msra.mxu0 %v1725
    %1753 = vmatprep.subr.mxu0 %v1724
    %1754 = vmatpush1.msra.mxu0 %v1723
    %1755 = vmatprep.subr.mxu0 %v1722
    %1756 = vmatpush1.msra.mxu0 %v1721
    %1757 = vmatprep.subr.mxu0 %v1720
    %1758 = vmatpush1.msra.mxu0 %v1719
    %1759 = vmatprep.subr.mxu0 %v1718
    %1760 = vmatpush1.msra.mxu0 %v1717
    %1761 = vmatprep.subr.mxu0 %v1716
    %1762 = vmatpush1.msra.mxu0 %v1715
    %1763 = vmatprep.subr.mxu0 %v1714
    %1764 = vmatpush1.msra.mxu0 %v1713
    %1765 = vmatprep.subr.mxu0 %v1712
    %1766 = vmatpush1.msra.mxu0 %v1711
    %1767 = vmatprep.subr.mxu0 %v1710
    %1768 = vmatpush1.msra.mxu0 %v1709
    %1769 = vmatprep.subr.mxu0 %v1708
    %1770 = vmatpush1.msra.mxu0 %v1707
    %1771 = vmatprep.subr.mxu0 0.0
    %1772 = vmatpush2.msra.mxu0 0.0
    %1773 = vmatprep.subr.mxu0 0.0
    %1774 = vmatpush2.msra.mxu0 0.0
    %1775 = vmatprep.subr.mxu0 0.0
    %1776 = vmatpush2.msra.mxu0 0.0
    %1777 = vmatprep.subr.mxu0 0.0
    %1778 = vmatpush2.msra.mxu0 0.0
    %1779 = vmatprep.subr.mxu0 0.0
    %1780 = vmatpush2.msra.mxu0 0.0
    %1781 = vmatprep.subr.mxu0 0.0
    %1782 = vmatpush2.msra.mxu0 0.0
    %1783 = vmatprep.subr.mxu0 0.0
    %1784 = vmatpush2.msra.mxu0 0.0
    %1785 = vmatprep.subr.mxu0 0.0
    %1786 = vmatpush2.msra.mxu0 0.0
    %1787 = vmatprep.subr.mxu0 0.0
    %1788 = vmatpush2.msra.mxu0 0.0
    %1789 = vmatprep.subr.mxu0 0.0
    %1790 = vmatpush2.msra.mxu0 0.0
    %1791 = vmatprep.subr.mxu0 0.0
    %1792 = vmatpush2.msra.mxu0 0.0
    %1793 = vmatprep.subr.mxu0 0.0
    %1794 = vmatpush2.msra.mxu0 0.0
    %1795 = vmatprep.subr.mxu0 0.0
    %1796 = vmatpush2.msra.mxu0 0.0
    %1797 = vmatprep.subr.mxu0 0.0
    %1798 = vmatpush2.msra.mxu0 0.0
    %1799 = vmatprep.subr.mxu0 0.0
    %1800 = vmatpush2.msra.mxu0 0.0
    %1801 = vmatprep.subr.mxu0 0.0
    %1802 = vmatpush2.msra.mxu0 0.0
    %1803 = vmatprep.mubr.f32.mxu0 0.0
    %1804 = vmatmul.mubr.f32.gmra.mxu0 %v1706
    %v1805 = vpop.f32.mrf.mxu0
    %v1806 = vadd.f32 0.0, %v1805
    %v1807 = vpop.f32.mrf.mxu0
    %v1808 = vadd.f32 0.0, %v1807
    %1809 = vdwg.mxu0
    %v1810 = vld [vmem:[#allocation7 + $0x1d] sm:$0x1]
    %v1811 = vlaneseq
    %v1812 = vshrl.u32 %v1811, 7
    %v1813 = vsub.s32 0, %v1812
    %v1814 = vrot.slane %v1810, %v1813
    %v1815 = vadd.f32 %v1806, %v1814
    %v1816 = vrot.slane %v1808, 4
    %v1817 = vadd.f32 %v1808, %v1816
    %v1818 = vrot.slane %v1817, 2
    %v1819 = vadd.f32 %v1817, %v1818
    %v1820 = vrot.slane %v1819, 1
    %v1821 = vadd.f32 %v1819, %v1820
    %v1822 = vmul.f32 %v1808, %v1808
    %v1823 = vrot.slane %v1822, 4
    %v1824 = vadd.f32 %v1822, %v1823
    %v1825 = vrot.slane %v1824, 2
    %v1826 = vadd.f32 %v1824, %v1825
    %v1827 = vrot.slane %v1826, 1
    %v1828 = vadd.f32 %v1826, %v1827
    %v1829 = vmul.f32 %v1821, 0.125
    %v1830 = vmul.f32 %v1828, 0.125
    %v1831 = vmul.f32 %v1829, %v1829
    %v1832 = vsub.f32 %v1830, %v1831
    %v1833 = vmax.f32 %v1832, 0.0
    %v1834 = vld [vmem:[#allocation7 + $0x1e] sm:$0x1]
    %v1835 = vadd.f32 %v1833, 1e-05
    %v1836 = vrsqrt.pop %v1835
    %v1837 = vmul.f32 %v1834, %v1836
    %v1838 = vld [vmem:[#allocation7 + $0x1f] sm:$0x1]
    %v1839 = vmul.f32 %v1829, %v1837
    %v1840 = vsub.f32 %v1838, %v1839
    %v1841 = vlaneseq
    %v1842 = vshrl.u32 %v1841, 7
    %v1843 = vsub.s32 0, %v1842
    %v1844 = vrot.slane %v1837, %v1843
    %v1845 = vmul.f32 %v1808, %v1844
    %v1846 = vlaneseq
    %v1847 = vshrl.u32 %v1846, 7
    %v1848 = vsub.s32 0, %v1847
    %v1849 = vrot.slane %v1840, %v1848
    %v1850 = vadd.f32 %v1845, %v1849
    %v1851 = vmax.f32 %v1850, 0.0
    %v1852 = vld [vmem:[#allocation5 + $0x98] sm:$0xff]
    %v1853 = vld [vmem:[#allocation5 + $0x148] sm:$0xff]
    %v1854 = vld [vmem:[#allocation5 + $0x1f8] sm:$0xff]
    %v1855 = vld [vmem:[#allocation5 + $0x2a8] sm:$0xff]
    %v1856 = vld [vmem:[#allocation5 + $0x358] sm:$0xff]
    %v1857 = vld [vmem:[#allocation5 + $0x408] sm:$0xff]
    %v1858 = vld [vmem:[#allocation5 + $0x4b8] sm:$0xff]
    %v1859 = vld [vmem:[#allocation5 + $0x568] sm:$0xff]
    %v1860 = vld [vmem:[#allocation5 + $0x618] sm:$0xff]
    %v1861 = vld [vmem:[#allocation5 + $0x6c8] sm:$0xff]
    %v1862 = vld [vmem:[#allocation5 + $0x778] sm:$0xff]
    %v1863 = vld [vmem:[#allocation5 + $0x828] sm:$0xff]
    %v1864 = vld [vmem:[#allocation5 + $0x8d8] sm:$0xff]
    %v1865 = vld [vmem:[#allocation5 + $0x988] sm:$0xff]
    %v1866 = vld [vmem:[#allocation5 + $0xa38] sm:$0xff]
    %v1867 = vld [vmem:[#allocation5 + $0xae8] sm:$0xff]
    %1868 = vmatprep.subr.mxu0 0.0
    %1869 = vmatpush1.msra.mxu0 %v1867
    %1870 = vmatprep.subr.mxu0 0.0
    %1871 = vmatpush1.msra.mxu0 %v1866
    %1872 = vmatprep.subr.mxu0 0.0
    %1873 = vmatpush1.msra.mxu0 %v1865
    %1874 = vmatprep.subr.mxu0 0.0
    %1875 = vmatpush1.msra.mxu0 %v1864
    %1876 = vmatprep.subr.mxu0 0.0
    %1877 = vmatpush1.msra.mxu0 %v1863
    %1878 = vmatprep.subr.mxu0 0.0
    %1879 = vmatpush1.msra.mxu0 %v1862
    %1880 = vmatprep.subr.mxu0 0.0
    %1881 = vmatpush1.msra.mxu0 %v1861
    %1882 = vmatprep.subr.mxu0 0.0
    %1883 = vmatpush1.msra.mxu0 %v1860
    %1884 = vmatprep.subr.mxu0 0.0
    %1885 = vmatpush1.msra.mxu0 %v1859
    %1886 = vmatprep.subr.mxu0 0.0
    %1887 = vmatpush1.msra.mxu0 %v1858
    %1888 = vmatprep.subr.mxu0 0.0
    %1889 = vmatpush1.msra.mxu0 %v1857
    %1890 = vmatprep.subr.mxu0 0.0
    %1891 = vmatpush1.msra.mxu0 %v1856
    %1892 = vmatprep.subr.mxu0 0.0
    %1893 = vmatpush1.msra.mxu0 %v1855
    %1894 = vmatprep.subr.mxu0 0.0
    %1895 = vmatpush1.msra.mxu0 %v1854
    %1896 = vmatprep.subr.mxu0 0.0
    %1897 = vmatpush1.msra.mxu0 %v1853
    %1898 = vmatprep.subr.mxu0 0.0
    %1899 = vmatpush1.msra.mxu0 %v1852
    %1900 = vmatprep.subr.mxu0 0.0
    %1901 = vmatpush2.msra.mxu0 0.0
    %1902 = vmatprep.subr.mxu0 0.0
    %1903 = vmatpush2.msra.mxu0 0.0
    %1904 = vmatprep.subr.mxu0 0.0
    %1905 = vmatpush2.msra.mxu0 0.0
    %1906 = vmatprep.subr.mxu0 0.0
    %1907 = vmatpush2.msra.mxu0 0.0
    %1908 = vmatprep.subr.mxu0 0.0
    %1909 = vmatpush2.msra.mxu0 0.0
    %1910 = vmatprep.subr.mxu0 0.0
    %1911 = vmatpush2.msra.mxu0 0.0
    %1912 = vmatprep.subr.mxu0 0.0
    %1913 = vmatpush2.msra.mxu0 0.0
    %1914 = vmatprep.subr.mxu0 0.0
    %1915 = vmatpush2.msra.mxu0 0.0
    %1916 = vmatprep.subr.mxu0 0.0
    %1917 = vmatpush2.msra.mxu0 0.0
    %1918 = vmatprep.subr.mxu0 0.0
    %1919 = vmatpush2.msra.mxu0 0.0
    %1920 = vmatprep.subr.mxu0 0.0
    %1921 = vmatpush2.msra.mxu0 0.0
    %1922 = vmatprep.subr.mxu0 0.0
    %1923 = vmatpush2.msra.mxu0 0.0
    %1924 = vmatprep.subr.mxu0 0.0
    %1925 = vmatpush2.msra.mxu0 0.0
    %1926 = vmatprep.subr.mxu0 0.0
    %1927 = vmatpush2.msra.mxu0 0.0
    %1928 = vmatprep.subr.mxu0 0.0
    %1929 = vmatpush2.msra.mxu0 0.0
    %1930 = vmatprep.subr.mxu0 0.0
    %1931 = vmatpush2.msra.mxu0 0.0
    %1932 = vmatprep.mubr.f32.mxu0 0.0
    %1933 = vmatmul.mubr.f32.gmra.mxu0 %v1851
    %v1934 = vpop.f32.mrf.mxu0
    %v1935 = vadd.f32 0.0, %v1934
    %v1936 = vpop.f32.mrf.mxu0
    %1937 = vdwg.mxu0
    %v1938 = vrot.slane %v1935, 4
    %v1939 = vadd.f32 %v1935, %v1938
    %v1940 = vrot.slane %v1939, 2
    %v1941 = vadd.f32 %v1939, %v1940
    %v1942 = vrot.slane %v1941, 1
    %v1943 = vadd.f32 %v1941, %v1942
    %v1944 = vmul.f32 %v1935, %v1935
    %v1945 = vrot.slane %v1944, 4
    %v1946 = vadd.f32 %v1944, %v1945
    %v1947 = vrot.slane %v1946, 2
    %v1948 = vadd.f32 %v1946, %v1947
    %v1949 = vrot.slane %v1948, 1
    %v1950 = vadd.f32 %v1948, %v1949
    %v1951 = vmul.f32 %v1943, 0.125
    %v1952 = vmul.f32 %v1950, 0.125
    %v1953 = vmul.f32 %v1951, %v1951
    %v1954 = vsub.f32 %v1952, %v1953
    %v1955 = vmax.f32 %v1954, 0.0
    %v1956 = vld [vmem:[#allocation7 + $0x20] sm:$0x1]
    %v1957 = vadd.f32 %v1955, 1e-05
    %v1958 = vrsqrt.pop %v1957
    %v1959 = vmul.f32 %v1956, %v1958
    %v1960 = vld [vmem:[#allocation7 + $0x21] sm:$0x1]
    %v1961 = vmul.f32 %v1951, %v1959
    %v1962 = vsub.f32 %v1960, %v1961
    %v1963 = vlaneseq
    %v1964 = vshrl.u32 %v1963, 7
    %v1965 = vsub.s32 0, %v1964
    %v1966 = vrot.slane %v1959, %v1965
    %v1967 = vmul.f32 %v1935, %v1966
    %v1968 = vlaneseq
    %v1969 = vshrl.u32 %v1968, 7
    %v1970 = vsub.s32 0, %v1969
    %v1971 = vrot.slane %v1962, %v1970
    %v1972 = vadd.f32 %v1967, %v1971
    %v1973 = vmax.f32 %v1972, 0.0
    %v1974 = vld [vmem:[#allocation5 + $0xa0] sm:$0xff]
    %v1975 = vld [vmem:[#allocation5 + $0x150] sm:$0xff]
    %v1976 = vld [vmem:[#allocation5 + $0x200] sm:$0xff]
    %v1977 = vld [vmem:[#allocation5 + $0x2b0] sm:$0xff]
    %v1978 = vld [vmem:[#allocation5 + $0x360] sm:$0xff]
    %v1979 = vld [vmem:[#allocation5 + $0x410] sm:$0xff]
    %v1980 = vld [vmem:[#allocation5 + $0x4c0] sm:$0xff]
    %v1981 = vld [vmem:[#allocation5 + $0x570] sm:$0xff]
    %v1982 = vld [vmem:[#allocation5 + $0x620] sm:$0xff]
    %v1983 = vld [vmem:[#allocation5 + $0x6d0] sm:$0xff]
    %v1984 = vld [vmem:[#allocation5 + $0x780] sm:$0xff]
    %v1985 = vld [vmem:[#allocation5 + $0x830] sm:$0xff]
    %v1986 = vld [vmem:[#allocation5 + $0x8e0] sm:$0xff]
    %v1987 = vld [vmem:[#allocation5 + $0x990] sm:$0xff]
    %v1988 = vld [vmem:[#allocation5 + $0xa40] sm:$0xff]
    %v1989 = vld [vmem:[#allocation5 + $0xaf0] sm:$0xff]
    %1990 = vmatprep.subr.mxu0 0.0
    %1991 = vmatpush1.msra.mxu0 %v1989
    %1992 = vmatprep.subr.mxu0 0.0
    %1993 = vmatpush1.msra.mxu0 %v1988
    %1994 = vmatprep.subr.mxu0 0.0
    %1995 = vmatpush1.msra.mxu0 %v1987
    %1996 = vmatprep.subr.mxu0 0.0
    %1997 = vmatpush1.msra.mxu0 %v1986
    %1998 = vmatprep.subr.mxu0 0.0
    %1999 = vmatpush1.msra.mxu0 %v1985
    %2000 = vmatprep.subr.mxu0 0.0
    %2001 = vmatpush1.msra.mxu0 %v1984
    %2002 = vmatprep.subr.mxu0 0.0
    %2003 = vmatpush1.msra.mxu0 %v1983
    %2004 = vmatprep.subr.mxu0 0.0
    %2005 = vmatpush1.msra.mxu0 %v1982
    %2006 = vmatprep.subr.mxu0 0.0
    %2007 = vmatpush1.msra.mxu0 %v1981
    %2008 = vmatprep.subr.mxu0 0.0
    %2009 = vmatpush1.msra.mxu0 %v1980
    %2010 = vmatprep.subr.mxu0 0.0
    %2011 = vmatpush1.msra.mxu0 %v1979
    %2012 = vmatprep.subr.mxu0 0.0
    %2013 = vmatpush1.msra.mxu0 %v1978
    %2014 = vmatprep.subr.mxu0 0.0
    %2015 = vmatpush1.msra.mxu0 %v1977
    %2016 = vmatprep.subr.mxu0 0.0
    %2017 = vmatpush1.msra.mxu0 %v1976
    %2018 = vmatprep.subr.mxu0 0.0
    %2019 = vmatpush1.msra.mxu0 %v1975
    %2020 = vmatprep.subr.mxu0 0.0
    %2021 = vmatpush1.msra.mxu0 %v1974
    %2022 = vmatprep.subr.mxu0 0.0
    %2023 = vmatpush2.msra.mxu0 0.0
    %2024 = vmatprep.subr.mxu0 0.0
    %2025 = vmatpush2.msra.mxu0 0.0
    %2026 = vmatprep.subr.mxu0 0.0
    %2027 = vmatpush2.msra.mxu0 0.0
    %2028 = vmatprep.subr.mxu0 0.0
    %2029 = vmatpush2.msra.mxu0 0.0
    %2030 = vmatprep.subr.mxu0 0.0
    %2031 = vmatpush2.msra.mxu0 0.0
    %2032 = vmatprep.subr.mxu0 0.0
    %2033 = vmatpush2.msra.mxu0 0.0
    %2034 = vmatprep.subr.mxu0 0.0
    %2035 = vmatpush2.msra.mxu0 0.0
    %2036 = vmatprep.subr.mxu0 0.0
    %2037 = vmatpush2.msra.mxu0 0.0
    %2038 = vmatprep.subr.mxu0 0.0
    %2039 = vmatpush2.msra.mxu0 0.0
    %2040 = vmatprep.subr.mxu0 0.0
    %2041 = vmatpush2.msra.mxu0 0.0
    %2042 = vmatprep.subr.mxu0 0.0
    %2043 = vmatpush2.msra.mxu0 0.0
    %2044 = vmatprep.subr.mxu0 0.0
    %2045 = vmatpush2.msra.mxu0 0.0
    %2046 = vmatprep.subr.mxu0 0.0
    %2047 = vmatpush2.msra.mxu0 0.0
    %2048 = vmatprep.subr.mxu0 0.0
    %2049 = vmatpush2.msra.mxu0 0.0
    %2050 = vmatprep.subr.mxu0 0.0
    %2051 = vmatpush2.msra.mxu0 0.0
    %2052 = vmatprep.subr.mxu0 0.0
    %2053 = vmatpush2.msra.mxu0 0.0
    %2054 = vmatprep.mubr.f32.mxu0 0.0
    %2055 = vmatmul.mubr.f32.gmra.mxu0 %v1973
    %v2056 = vpop.f32.mrf.mxu0
    %v2057 = vadd.f32 0.0, %v2056
    %v2058 = vpop.f32.mrf.mxu0
    %2059 = vdwg.mxu0
    %v2060 = vrot.slane %v2057, 4
    %v2061 = vadd.f32 %v2057, %v2060
    %v2062 = vrot.slane %v2061, 2
    %v2063 = vadd.f32 %v2061, %v2062
    %v2064 = vrot.slane %v2063, 1
    %v2065 = vadd.f32 %v2063, %v2064
    %v2066 = vmul.f32 %v2057, %v2057
    %v2067 = vrot.slane %v2066, 4
    %v2068 = vadd.f32 %v2066, %v2067
    %v2069 = vrot.slane %v2068, 2
    %v2070 = vadd.f32 %v2068, %v2069
    %v2071 = vrot.slane %v2070, 1
    %v2072 = vadd.f32 %v2070, %v2071
    %v2073 = vmul.f32 %v2065, 0.125
    %v2074 = vmul.f32 %v2072, 0.125
    %v2075 = vmul.f32 %v2073, %v2073
    %v2076 = vsub.f32 %v2074, %v2075
    %v2077 = vmax.f32 %v2076, 0.0
    %v2078 = vld [vmem:[#allocation7 + $0x22] sm:$0x1]
    %v2079 = vadd.f32 %v2077, 1e-05
    %v2080 = vrsqrt.pop %v2079
    %v2081 = vmul.f32 %v2078, %v2080
    %v2082 = vld [vmem:[#allocation7 + $0x23] sm:$0x1]
    %v2083 = vmul.f32 %v2073, %v2081
    %v2084 = vsub.f32 %v2082, %v2083
    %v2085 = vlaneseq
    %v2086 = vshrl.u32 %v2085, 7
    %v2087 = vsub.s32 0, %v2086
    %v2088 = vrot.slane %v2081, %v2087
    %v2089 = vmul.f32 %v2057, %v2088
    %v2090 = vlaneseq
    %v2091 = vshrl.u32 %v2090, 7
    %v2092 = vsub.s32 0, %v2091
    %v2093 = vrot.slane %v2084, %v2092
    %v2094 = vadd.f32 %v2089, %v2093
    %v2095 = vadd.f32 %v2094, %v1815
    %v2096 = vmax.f32 %v2095, 0.0
    %v2097 = vld [vmem:[#allocation5 + $0xa8] sm:$0xff]
    %v2098 = vld [vmem:[#allocation5 + $0x158] sm:$0xff]
    %v2099 = vld [vmem:[#allocation5 + $0x208] sm:$0xff]
    %v2100 = vld [vmem:[#allocation5 + $0x2b8] sm:$0xff]
    %v2101 = vld [vmem:[#allocation5 + $0x368] sm:$0xff]
    %v2102 = vld [vmem:[#allocation5 + $0x418] sm:$0xff]
    %v2103 = vld [vmem:[#allocation5 + $0x4c8] sm:$0xff]
    %v2104 = vld [vmem:[#allocation5 + $0x578] sm:$0xff]
    %v2105 = vld [vmem:[#allocation5 + $0x628] sm:$0xff]
    %v2106 = vld [vmem:[#allocation5 + $0x6d8] sm:$0xff]
    %v2107 = vld [vmem:[#allocation5 + $0x788] sm:$0xff]
    %v2108 = vld [vmem:[#allocation5 + $0x838] sm:$0xff]
    %v2109 = vld [vmem:[#allocation5 + $0x8e8] sm:$0xff]
    %v2110 = vld [vmem:[#allocation5 + $0x998] sm:$0xff]
    %v2111 = vld [vmem:[#allocation5 + $0xa48] sm:$0xff]
    %v2112 = vld [vmem:[#allocation5 + $0xaf8] sm:$0xff]
    %v2113 = vld [vmem:[#allocation7 + $0x24] sm:$0x1]
    %v2114 = vlaneseq
    %v2115 = vshrl.u32 %v2114, 7
    %v2116 = vsub.s32 0, %v2115
    %v2117 = vrot.slane %v2113, %v2116
    %2118 = vmatprep.subr.mxu0 0.0
    %2119 = vmatpush1.msra.mxu0 %v2112
    %2120 = vmatprep.subr.mxu0 0.0
    %2121 = vmatpush1.msra.mxu0 %v2111
    %2122 = vmatprep.subr.mxu0 0.0
    %2123 = vmatpush1.msra.mxu0 %v2110
    %2124 = vmatprep.subr.mxu0 0.0
    %2125 = vmatpush1.msra.mxu0 %v2109
    %2126 = vmatprep.subr.mxu0 0.0
    %2127 = vmatpush1.msra.mxu0 %v2108
    %2128 = vmatprep.subr.mxu0 0.0
    %2129 = vmatpush1.msra.mxu0 %v2107
    %2130 = vmatprep.subr.mxu0 0.0
    %2131 = vmatpush1.msra.mxu0 %v2106
    %2132 = vmatprep.subr.mxu0 0.0
    %2133 = vmatpush1.msra.mxu0 %v2105
    %2134 = vmatprep.subr.mxu0 0.0
    %2135 = vmatpush1.msra.mxu0 %v2104
    %2136 = vmatprep.subr.mxu0 0.0
    %2137 = vmatpush1.msra.mxu0 %v2103
    %2138 = vmatprep.subr.mxu0 0.0
    %2139 = vmatpush1.msra.mxu0 %v2102
    %2140 = vmatprep.subr.mxu0 0.0
    %2141 = vmatpush1.msra.mxu0 %v2101
    %2142 = vmatprep.subr.mxu0 0.0
    %2143 = vmatpush1.msra.mxu0 %v2100
    %2144 = vmatprep.subr.mxu0 0.0
    %2145 = vmatpush1.msra.mxu0 %v2099
    %2146 = vmatprep.subr.mxu0 0.0
    %2147 = vmatpush1.msra.mxu0 %v2098
    %2148 = vmatprep.subr.mxu0 0.0
    %2149 = vmatpush1.msra.mxu0 %v2097
    %2150 = vmatprep.subr.mxu0 0.0
    %2151 = vmatpush2.msra.mxu0 0.0
    %2152 = vmatprep.subr.mxu0 0.0
    %2153 = vmatpush2.msra.mxu0 0.0
    %2154 = vmatprep.subr.mxu0 0.0
    %2155 = vmatpush2.msra.mxu0 0.0
    %2156 = vmatprep.subr.mxu0 0.0
    %2157 = vmatpush2.msra.mxu0 0.0
    %2158 = vmatprep.subr.mxu0 0.0
    %2159 = vmatpush2.msra.mxu0 0.0
    %2160 = vmatprep.subr.mxu0 0.0
    %2161 = vmatpush2.msra.mxu0 0.0
    %2162 = vmatprep.subr.mxu0 0.0
    %2163 = vmatpush2.msra.mxu0 0.0
    %2164 = vmatprep.subr.mxu0 0.0
    %2165 = vmatpush2.msra.mxu0 0.0
    %2166 = vmatprep.subr.mxu0 0.0
    %2167 = vmatpush2.msra.mxu0 0.0
    %2168 = vmatprep.subr.mxu0 0.0
    %2169 = vmatpush2.msra.mxu0 0.0
    %2170 = vmatprep.subr.mxu0 0.0
    %2171 = vmatpush2.msra.mxu0 0.0
    %2172 = vmatprep.subr.mxu0 0.0
    %2173 = vmatpush2.msra.mxu0 0.0
    %2174 = vmatprep.subr.mxu0 0.0
    %2175 = vmatpush2.msra.mxu0 0.0
    %2176 = vmatprep.subr.mxu0 0.0
    %2177 = vmatpush2.msra.mxu0 0.0
    %2178 = vmatprep.subr.mxu0 0.0
    %2179 = vmatpush2.msra.mxu0 0.0
    %2180 = vmatprep.subr.mxu0 0.0
    %2181 = vmatpush2.msra.mxu0 0.0
    %2182 = vmatprep.mubr.f32.mxu0 0.0
    %2183 = vmatmul.mubr.f32.gmra.mxu0 %v2096
    %v2184 = vpop.f32.mrf.mxu0
    %v2185 = vadd.f32 %v2117, %v2184
    %v2186 = vpop.f32.mrf.mxu0
    %2187 = vdwg.mxu0
    %v2188 = vxor.u32 %v2185, 2147483648
    %v2189 = vmul.f32 %v2188, 1.442695
    %v2190 = vpow.pop %v2189
    %v2191 = vadd.f32 %v2190, 1.0
    %v2192 = vrcp.pop %v2191
    %v2193 = vmul.f32 1.0, %v2192
    %2194 = vst [vmem:[#allocation8] sm:$0xff] %v2193
    // Predicated region
    $region26: #{tpu_custom_call.1} parent=1 // pred_check
      _
    $region27: #{tpu_custom_call.1} parent=1 // pred_check_branch
      %2196 = sbr.rel (0) target = $region29
    $region28: #{tpu_custom_call.1} parent=1 // pred_region
      %s2198 = ssub.s32 128, 128
      %2199 = vsyncadd [#allocation4], %s2198
      %s2201 = sshll.u32 [#allocation8], 4
      %s2202 = int_to_ptr.vmem [resolvable:$true] %s2201
      %2204 = dma.vmem_to_hbm [thread:$0]  %s2202, 128, %s3, [#allocation4]
    $region29: #{tpu_custom_call.1} parent=1 // pred_fallthru
      _
    // Predicated region
    $region30: #{tpu_custom_call.1} parent=1 // pred_check
      _
    $region31: #{tpu_custom_call.1} parent=1 // pred_check_branch
      %2206 = sbr.rel (0) target = $region33
    $region32: #{tpu_custom_call.1} parent=1 // pred_region
      %2207 = dma.done [#allocation4], 128
    $region33: #{tpu_custom_call.1} parent=1 // pred_fallthru
      _
    %2208 = vsyncpa [#allocation3], 1
    %2209 = vsyncpa [#allocation6], 1
    %2210 = vsyncpa [#allocation4], 1

</llo_original>
